<compile_context>
chip_gen: v6e
topology: v6e:2x2x1
jax: 0.10.0
libtpu: 0.0.40
codegen_flags: <defaults>
</compile_context>

<pallas_src>
import functools

import jax
import jax.numpy as jnp
from jax.experimental import pallas as pl
from jax.experimental.pallas import tpu as pltpu

LANE = 128
VMEM_BUDGET = 28 * 1024 * 1024  # leave headroom under the 32 MiB scoped limit


def _round_up(v, m):
    return ((v + m - 1) // m) * m


def _pad2d(a, rows, cols, dtype):
    out = jnp.zeros((rows, cols), dtype)
    return out.at[: a.shape[0], : a.shape[1]].set(a.astype(dtype))


def _choose_tiles(n, c_in_max, c_out_max):
    """Pick (n_pad, tm, tk): large tiles, >=2 row tiles, VMEM-budget aware."""
    tm = 512
    tk = 2048 if n > 2048 else 1024

    def vmem_bytes(tk_):
        a = 2 * tm * tk_ * 1                      # int8 A tile, double-buffered
        xk = 2 * tk_ * c_in_max * 2               # bf16 X (aggregation)
        xi = 2 * tm * c_in_max * 2                # bf16 X (self term)
        w = 4 * c_in_max * c_out_max * 2          # W_l + W_r, double-buffered
        acc = tm * c_in_max * 4                   # f32 accumulator scratch
        outb = 2 * tm * c_out_max * 4             # output block (worst case f32)
        misc = 2 * tm * c_out_max * 2 + 2 * tm * 4 + 2 * c_out_max * 4
        return a + xk + xi + w + acc + outb + misc

    while tk > 512 and vmem_bytes(tk) > VMEM_BUDGET:
        tk //= 2
    # tk is always a multiple of tm here, so n_pad is a multiple of tm too;
    # max(n, 2*tm) guarantees >= 2 row tiles (v7x 2-TensorCore sharding).
    n_pad = _round_up(max(n, 2 * tm), tk)
    return n_pad, tm, tk


def sage_layer_kernel(a_ref, xk_ref, xi_ref, dinv_ref, wl_ref, wr_ref, b_ref,
                      *rest, apply_relu, has_mask):
    """One SAGEConv layer over a (row-tile i, reduction-tile k) grid.

    acc[i]  = sum_k A_int8[i, k] @ X[k]                 (f32 accumulator)
    out[i]  = act((acc[i] * deg_inv[i]) @ W_l + X[i] @ W_r + b) * mask[i]
    """
    if has_mask:
        mask_ref, out_ref, acc_ref = rest
    else:
        mask_ref = None
        out_ref, acc_ref = rest

    k = pl.program_id(1)

    @pl.when(k == 0)
    def _init():
        acc_ref[...] = jnp.zeros_like(acc_ref)

    # int8 0/1 adjacency tile -> bf16 (VPU cast, hidden under the A DMA),
    # MXU matmul with f32 accumulation.
    a_blk = a_ref[...].astype(jnp.bfloat16)
    acc_ref[...] += jnp.dot(a_blk, xk_ref[...],
                            preferred_element_type=jnp.float32)

    @pl.when(k == pl.num_programs(1) - 1)
    def _finalize():
        # Mean aggregation: exact f32 1/deg scaling folded in here.
        agg = (acc_ref[...] * dinv_ref[...]).astype(jnp.bfloat16)
        r = (jnp.dot(agg, wl_ref[...], preferred_element_type=jnp.float32)
             + jnp.dot(xi_ref[...], wr_ref[...], preferred_element_type=jnp.float32)
             + b_ref[...])
        if apply_relu:
            r = jnp.maximum(r, 0.0)
        if mask_ref is not None:
            r = r * mask_ref[...].astype(jnp.float32)   # dropout keep/scale
        out_ref[...] = r.astype(out_ref.dtype)


def _sage_layer(a_p, x_p, deg_inv, wl_p, wr_p, b_p, *, mask, apply_relu,
                out_dtype, tm, tk):
    n_pad = a_p.shape[0]
    c_in = x_p.shape[1]
    c_out = wl_p.shape[1]
    grid = (n_pad // tm, n_pad // tk)

    in_specs = [
        pl.BlockSpec((tm, tk), lambda i, k: (i, k)),        # A tile (int8)
        pl.BlockSpec((tk, c_in), lambda i, k: (k, 0)),      # X rows (aggregation)
        pl.BlockSpec((tm, c_in), lambda i, k: (i, 0)),      # X rows (self term)
        pl.BlockSpec((tm, 1), lambda i, k: (i, 0)),         # deg_inv (f32)
        pl.BlockSpec((c_in, c_out), lambda i, k: (0, 0)),   # W_l
        pl.BlockSpec((c_in, c_out), lambda i, k: (0, 0)),   # W_r
        pl.BlockSpec((1, c_out), lambda i, k: (0, 0)),      # bias
    ]
    args = [a_p, x_p, x_p, deg_inv, wl_p, wr_p, b_p]
    if mask is not None:
        in_specs.append(pl.BlockSpec((tm, c_out), lambda i, k: (i, 0)))
        args.append(mask)

    kernel = functools.partial(sage_layer_kernel, apply_relu=apply_relu,
                               has_mask=mask is not None)
    return pl.pallas_call(
        kernel,
        out_shape=jax.ShapeDtypeStruct((n_pad, c_out), out_dtype),
        grid=grid,
        in_specs=in_specs,
        out_specs=pl.BlockSpec((tm, c_out), lambda i, k: (i, 0)),
        scratch_shapes=[pltpu.VMEM((tm, c_in), jnp.float32)],
        compiler_params=pltpu.CompilerParams(
            dimension_semantics=("parallel", "arbitrary"),
            vmem_limit_bytes=32 * 1024 * 1024),
    )(*args)


def sage_forward(x, edge_index, params, *, training=True, p_drop=0.5, seed=0):
    """x: [N, F] float32, edge_index: [2, E] int32 (row0=src, row1=dst)."""
    n, f = x.shape
    w1l, w1r, b1, w2l, w2r, b2 = params
    hidden = w1l.shape[1]
    num_classes = w2l.shape[1]

    f_pad = _round_up(f, LANE)
    h_pad = _round_up(hidden, LANE)
    c_pad = _round_up(num_classes, LANE)
    n_pad, tm, tk = _choose_tiles(n, max(f_pad, h_pad), max(h_pad, c_pad))

    # Unnormalized 0/1 adjacency, built ONCE, directly at the padded shape, in
    # int8 (1 byte/elem).  Duplicate edges add (matches PyG scatter-mean counts).
    # TODO(synk): for large sparse graphs, replace the dense adjacency with a
    # CSR scalar-prefetch gather so traffic scales with E instead of N^2.
    src, dst = edge_index[0], edge_index[1]
    adj = jnp.zeros((n_pad, n_pad), jnp.int8).at[dst, src].add(
        jnp.ones(dst.shape, jnp.int8))

    # Degree from the edge list (O(E), no full-matrix pass); exact f32 1/deg.
    deg = jnp.zeros((n_pad,), jnp.float32).at[dst].add(1.0)
    deg_inv = (1.0 / jnp.maximum(deg, 1.0)).reshape(n_pad, 1)

    # Pad features / weights to lane-dense (multiple-of-128) shapes; bf16 MXU inputs.
    x_p = _pad2d(x, n_pad, f_pad, jnp.bfloat16)
    w1l_p = _pad2d(w1l, f_pad, h_pad, jnp.bfloat16)
    w1r_p = _pad2d(w1r, f_pad, h_pad, jnp.bfloat16)
    b1_p = _pad2d(b1.reshape(1, -1), 1, h_pad, jnp.float32)
    w2l_p = _pad2d(w2l, h_pad, c_pad, jnp.bfloat16)
    w2r_p = _pad2d(w2r, h_pad, c_pad, jnp.bfloat16)
    b2_p = _pad2d(b2.reshape(1, -1), 1, c_pad, jnp.float32)

    # Dropout keep/scale mask (F.dropout, p=0.5 default); bf16 (0 and 2.0 exact).
    # TODO(synk): RNG stream differs from torch's; distribution/scaling match.
    if training and p_drop > 0.0:
        keep = jax.random.bernoulli(jax.random.PRNGKey(seed), 1.0 - p_drop,
                                    (n_pad, h_pad))
        mask = (keep.astype(jnp.float32) * (1.0 / (1.0 - p_drop))
                ).astype(jnp.bfloat16)
    else:
        mask = None

    h = _sage_layer(adj, x_p, deg_inv, w1l_p, w1r_p, b1_p, mask=mask,
                    apply_relu=True, out_dtype=jnp.bfloat16, tm=tm, tk=tk)
    out = _sage_layer(adj, h, deg_inv, w2l_p, w2r_p, b2_p, mask=None,
                      apply_relu=False, out_dtype=jnp.float32, tm=tm, tk=tk)
    return out[:n, :num_classes]


def init_params(key, num_features, hidden_channels, num_classes):
    """Glorot-uniform weights (shapes as PyG SAGEConv), pre-transposed to [in, out]."""
    ks = jax.random.split(key, 4)

    def glorot(k, fan_in, fan_out):
        lim = jnp.sqrt(6.0 / (fan_in + fan_out))
        return jax.random.uniform(k, (fan_in, fan_out), jnp.float32, -lim, lim)

    w1l = glorot(ks[0], num_features, hidden_channels)   # lin_l of conv1
    w1r = glorot(ks[1], num_features, hidden_channels)   # lin_r of conv1
    b1 = jnp.zeros((1, hidden_channels), jnp.float32)
    w2l = glorot(ks[2], hidden_channels, num_classes)    # lin_l of conv2
    w2r = glorot(ks[3], hidden_channels, num_classes)    # lin_r of conv2
    b2 = jnp.zeros((1, num_classes), jnp.float32)
    return (w1l, w1r, b1, w2l, w2r, b2)


if __name__ == "__main__":
    key = jax.random.PRNGKey(0)
    kx, ke, kp = jax.random.split(key, 3)

    N, NUM_FEATURES, HIDDEN, NUM_CLASSES, E = 16, 32, 32, 8, 48
    x = jax.random.normal(kx, (N, NUM_FEATURES), dtype=jnp.float32)
    edge_index = jax.random.randint(ke, (2, E), 0, N, dtype=jnp.int32)
    params = init_params(kp, NUM_FEATURES, HIDDEN, NUM_CLASSES)

    out = sage_forward(x, edge_index, params, training=True, p_drop=0.5, seed=0)
    jax.block_until_ready(out)
    assert out.shape == (N, NUM_CLASSES) and out.dtype == jnp.float32
    print("KERNEL_OK")
</pallas_src>

<mosaic_0001>
module attributes {stable_mosaic.version = 11 : i64} {
  func.func @sage_layer_kernel(%arg0: i32, %arg1: i32, %arg2: memref<512x1024xi8, #tpu.memory_space<vmem>>, %arg3: memref<1024x128xbf16, #tpu.memory_space<vmem>>, %arg4: memref<512x128xbf16, #tpu.memory_space<vmem>>, %arg5: memref<512x1xf32, #tpu.memory_space<vmem>>, %arg6: memref<128x128xbf16, #tpu.memory_space<vmem>>, %arg7: memref<128x128xbf16, #tpu.memory_space<vmem>>, %arg8: memref<1x128xf32, #tpu.memory_space<vmem>>, %arg9: memref<512x128xbf16, #tpu.memory_space<vmem>>, %arg10: memref<512x128xbf16, #tpu.memory_space<vmem>>, %arg11: memref<512x128xf32, #tpu.memory_space<vmem>>) attributes {dimension_semantics = [#tpu.dimension_semantics<parallel>, #tpu.dimension_semantics<arbitrary>], iteration_bounds = array<i64: 2, 1>, scalar_prefetch = 0 : i64, scratch_operands = 1 : i64, tpu.core_type = #tpu.core_type<tc>, window_params = [{transform_indices = @transform_0, window_bounds = array<i64: 512, 1024>}, {transform_indices = @transform_1, window_bounds = array<i64: 1024, 128>}, {transform_indices = @transform_2, window_bounds = array<i64: 512, 128>}, {transform_indices = @transform_3, window_bounds = array<i64: 512, 1>}, {pipeline_mode = #tpu.pipeline_mode<synchronous>, transform_indices = @transform_4, window_bounds = array<i64: 128, 128>}, {pipeline_mode = #tpu.pipeline_mode<synchronous>, transform_indices = @transform_5, window_bounds = array<i64: 128, 128>}, {pipeline_mode = #tpu.pipeline_mode<synchronous>, transform_indices = @transform_6, window_bounds = array<i64: 1, 128>}, {transform_indices = @transform_7, window_bounds = array<i64: 512, 128>}, {transform_indices = @transform_8, window_bounds = array<i64: 512, 128>}]} {
    %c0_i32 = arith.constant 0 : i32
    %0 = arith.cmpi eq, %arg1, %c0_i32 : i32
    %1 = arith.extui %0 : i1 to i32
    %c0_i32_0 = arith.constant 0 : i32
    %2 = arith.cmpi ne, %1, %c0_i32_0 : i32
    scf.if %2 {
      %cst_10 = arith.constant 0.000000e+00 : f32
      %13 = vector.broadcast %cst_10 : f32 to vector<512x128xf32>
      %c0_11 = arith.constant 0 : index
      %c0_12 = arith.constant 0 : index
      %14 = vector.load %arg11[%c0_11, %c0_12] : memref<512x128xf32, #tpu.memory_space<vmem>>, vector<512x128xf32>
      tpu.vector_store %arg11[%c0_11, %c0_12], %13 {strides = array<i32>} : memref<512x128xf32, #tpu.memory_space<vmem>>, vector<512x128xf32>,
    } else {
    }
    %c0 = arith.constant 0 : index
    %c0_1 = arith.constant 0 : index
    %3 = vector.load %arg2[%c0, %c0_1] : memref<512x1024xi8, #tpu.memory_space<vmem>>, vector<512x1024xi8>
    %4 = arith.sitofp %3 : vector<512x1024xi8> to vector<512x1024xbf16>
    %c0_2 = arith.constant 0 : index
    %c0_3 = arith.constant 0 : index
    %5 = vector.load %arg11[%c0_2, %c0_3] : memref<512x128xf32, #tpu.memory_space<vmem>>, vector<512x128xf32>
    %c0_4 = arith.constant 0 : index
    %c0_5 = arith.constant 0 : index
    %6 = vector.load %arg3[%c0_4, %c0_5] : memref<1024x128xbf16, #tpu.memory_space<vmem>>, vector<1024x128xbf16>
    %cst = arith.constant dense<0.000000e+00> : vector<512x128xf32>
    %7 = tpu.matmul %4, %6, %cst {dimension_numbers = #tpu.dot_dimension_numbers<[1], [0], [0], [1], [0, 0, 1, 1], [], []>} : vector<512x1024xbf16>, vector<1024x128xbf16>, vector<512x128xf32> -> vector<512x128xf32>
    %8 = arith.addf %5, %7 : vector<512x128xf32>
    %c0_6 = arith.constant 0 : index
    %c0_7 = arith.constant 0 : index
    %9 = vector.load %arg11[%c0_6, %c0_7] : memref<512x128xf32, #tpu.memory_space<vmem>>, vector<512x128xf32>
    tpu.vector_store %arg11[%c0_6, %c0_7], %8 {strides = array<i32>} : memref<512x128xf32, #tpu.memory_space<vmem>>, vector<512x128xf32>,
    %c0_i32_8 = arith.constant 0 : i32
    %10 = arith.cmpi eq, %arg1, %c0_i32_8 : i32
    %11 = arith.extui %10 : i1 to i32
    %c0_i32_9 = arith.constant 0 : i32
    %12 = arith.cmpi ne, %11, %c0_i32_9 : i32
    scf.if %12 {
      %c0_10 = arith.constant 0 : index
      %c0_11 = arith.constant 0 : index
      %13 = vector.load %arg11[%c0_10, %c0_11] : memref<512x128xf32, #tpu.memory_space<vmem>>, vector<512x128xf32>
      %c0_12 = arith.constant 0 : index
      %c0_13 = arith.constant 0 : index
      %14 = vector.load %arg5[%c0_12, %c0_13] : memref<512x1xf32, #tpu.memory_space<vmem>>, vector<512x1xf32>
      %15 = vector.broadcast %14 : vector<512x1xf32> to vector<512x128xf32>
      %16 = arith.mulf %13, %15 : vector<512x128xf32>
      %17 = arith.truncf %16 : vector<512x128xf32> to vector<512x128xbf16>
      %c0_14 = arith.constant 0 : index
      %c0_15 = arith.constant 0 : index
      %18 = vector.load %arg6[%c0_14, %c0_15] : memref<128x128xbf16, #tpu.memory_space<vmem>>, vector<128x128xbf16>
      %cst_16 = arith.constant dense<0.000000e+00> : vector<512x128xf32>
      %19 = tpu.matmul %17, %18, %cst_16 {dimension_numbers = #tpu.dot_dimension_numbers<[1], [0], [0], [1], [0, 0, 1, 1], [], []>} : vector<512x128xbf16>, vector<128x128xbf16>, vector<512x128xf32> -> vector<512x128xf32>
      %c0_17 = arith.constant 0 : index
      %c0_18 = arith.constant 0 : index
      %20 = vector.load %arg4[%c0_17, %c0_18] : memref<512x128xbf16, #tpu.memory_space<vmem>>, vector<512x128xbf16>
      %c0_19 = arith.constant 0 : index
      %c0_20 = arith.constant 0 : index
      %21 = vector.load %arg7[%c0_19, %c0_20] : memref<128x128xbf16, #tpu.memory_space<vmem>>, vector<128x128xbf16>
      %cst_21 = arith.constant dense<0.000000e+00> : vector<512x128xf32>
      %22 = tpu.matmul %20, %21, %cst_21 {dimension_numbers = #tpu.dot_dimension_numbers<[1], [0], [0], [1], [0, 0, 1, 1], [], []>} : vector<512x128xbf16>, vector<128x128xbf16>, vector<512x128xf32> -> vector<512x128xf32>
      %23 = arith.addf %19, %22 : vector<512x128xf32>
      %c0_22 = arith.constant 0 : index
      %c0_23 = arith.constant 0 : index
      %24 = vector.load %arg8[%c0_22, %c0_23] : memref<1x128xf32, #tpu.memory_space<vmem>>, vector<1x128xf32>
      %25 = vector.broadcast %24 : vector<1x128xf32> to vector<512x128xf32>
      %26 = arith.addf %23, %25 : vector<512x128xf32>
      %cst_24 = arith.constant 0.000000e+00 : f32
      %27 = vector.broadcast %cst_24 : f32 to vector<512x128xf32>
      %28 = arith.maximumf %26, %27 : vector<512x128xf32>
      %c0_25 = arith.constant 0 : index
      %c0_26 = arith.constant 0 : index
      %29 = vector.load %arg9[%c0_25, %c0_26] : memref<512x128xbf16, #tpu.memory_space<vmem>>, vector<512x128xbf16>
      %30 = arith.extf %29 : vector<512x128xbf16> to vector<512x128xf32>
      %31 = arith.mulf %28, %30 : vector<512x128xf32>
      %32 = arith.truncf %31 : vector<512x128xf32> to vector<512x128xbf16>
      %c0_27 = arith.constant 0 : index
      %c0_28 = arith.constant 0 : index
      %33 = vector.load %arg10[%c0_27, %c0_28] : memref<512x128xbf16, #tpu.memory_space<vmem>>, vector<512x128xbf16>
      tpu.vector_store %arg10[%c0_27, %c0_28], %32 {strides = array<i32>} : memref<512x128xbf16, #tpu.memory_space<vmem>>, vector<512x128xbf16>,
    } else {
    }
    return
  }
  func.func @transform_0(%arg0: i32, %arg1: i32) -> (i32, i32) {
    %c0_i32 = arith.constant 0 : i32
    return %arg0, %arg1 : i32, i32
  }
  func.func @transform_1(%arg0: i32, %arg1: i32) -> (i32, i32) {
    %c0_i32 = arith.constant 0 : i32
    %c0_i32_0 = arith.constant 0 : i32
    return %arg1, %c0_i32 : i32, i32
  }
  func.func @transform_2(%arg0: i32, %arg1: i32) -> (i32, i32) {
    %c0_i32 = arith.constant 0 : i32
    %c0_i32_0 = arith.constant 0 : i32
    return %arg0, %c0_i32 : i32, i32
  }
  func.func @transform_3(%arg0: i32, %arg1: i32) -> (i32, i32) {
    %c0_i32 = arith.constant 0 : i32
    %c0_i32_0 = arith.constant 0 : i32
    return %arg0, %c0_i32 : i32, i32
  }
  func.func @transform_4(%arg0: i32, %arg1: i32) -> (i32, i32) {
    %c0_i32 = arith.constant 0 : i32
    %c0_i32_0 = arith.constant 0 : i32
    %c0_i32_1 = arith.constant 0 : i32
    return %c0_i32, %c0_i32_0 : i32, i32
  }
  func.func @transform_5(%arg0: i32, %arg1: i32) -> (i32, i32) {
    %c0_i32 = arith.constant 0 : i32
    %c0_i32_0 = arith.constant 0 : i32
    %c0_i32_1 = arith.constant 0 : i32
    return %c0_i32, %c0_i32_0 : i32, i32
  }
  func.func @transform_6(%arg0: i32, %arg1: i32) -> (i32, i32) {
    %c0_i32 = arith.constant 0 : i32
    %c0_i32_0 = arith.constant 0 : i32
    %c0_i32_1 = arith.constant 0 : i32
    return %c0_i32, %c0_i32_0 : i32, i32
  }
  func.func @transform_7(%arg0: i32, %arg1: i32) -> (i32, i32) {
    %c0_i32 = arith.constant 0 : i32
    %c0_i32_0 = arith.constant 0 : i32
    return %arg0, %c0_i32 : i32, i32
  }
  func.func @transform_8(%arg0: i32, %arg1: i32) -> (i32, i32) {
    %c0_i32 = arith.constant 0 : i32
    %c0_i32_0 = arith.constant 0 : i32
    return %arg0, %c0_i32 : i32, i32
  }
}

</mosaic_0001>

<llo_original>
// kernel: tpu_custom_call.1
$region0: #{tpu_custom_call.1}
  #allocation0 [shape = 'u32[]', space=smem, size = 0x4, offset = 0x4, fixed_abs, tag = 'smem constant byte address 0x4 - core index']
  #allocation1 [shape = 'u32[144,128]{1,0:T(1,128)}', space=vmem, size = 0x12000, scoped, tag = 'internal scratch']
  #allocation2 [shape = 'f32[512,128]{1,0:T(8,128)}', space=vmem, size = 0x40000, scoped, tag = 'scratch operand']
  %s0 = inlined_call_operand.hbm [shape: s8[1024,1024], index: 0, kind: input, shape index: {}]
  %s1 = inlined_call_operand.vmem [shape: bf16[1024,128], index: 1, kind: input, shape index: {}]
  %s2 = inlined_call_operand.vmem [shape: bf16[1024,128], index: 2, kind: input, shape index: {}]
  %s3 = inlined_call_operand.vmem [shape: f32[1024,1], index: 3, kind: input, shape index: {}]
  %s4 = inlined_call_operand.hbm [shape: bf16[128,128], index: 4, kind: input, shape index: {}]
  %s5 = inlined_call_operand.hbm [shape: bf16[128,128], index: 5, kind: input, shape index: {}]
  %s6 = inlined_call_operand.vmem [shape: f32[1,128], index: 6, kind: input, shape index: {}]
  %s7 = inlined_call_operand.hbm [shape: bf16[1024,128], index: 7, kind: input, shape index: {}]
  %s8 = inlined_call_operand.hbm [shape: bf16[1024,128], index: 8, kind: output, shape index: {}]
  %s9 = sld [smem:[#allocation0]]
  $region89: #{tpu_custom_call.1} parent=0
    _
  %s11 = ssub.s32 1, %s9
  %s12 = scalar_select 0, %s11, %s9
  $region1: #{tpu_custom_call.1} parent=0
    #allocation3 [shape = 'u8[1048576]{0}', space=vmem, size = 0x100000, scoped, tag = 'input window, operand 0']
    #allocation4 [shape = 's32[2]{0}', space=sflag, size = 0x8, scoped, tag = 'scoped memory for tpu_custom_call.1']
    #allocation5 [shape = 's32[2]{0}', space=sflag, size = 0x8, scoped, tag = 'scoped memory for tpu_custom_call.1']
    #allocation6 [shape = 'u8[32768]{0}', space=vmem, size = 0x8000, scoped, tag = 'input window, operand 4, single buffered']
    #allocation7 [shape = 's32[1]{0}', space=sflag, size = 0x4, scoped, tag = 'scoped memory for tpu_custom_call.1']
    #allocation8 [shape = 'u8[32768]{0}', space=vmem, size = 0x8000, scoped, tag = 'input window, operand 5, single buffered']
    #allocation9 [shape = 'u8[262144]{0}', space=vmem, size = 0x40000, scoped, tag = 'input window, operand 7']
    #allocation10 [shape = 's32[2]{0}', space=sflag, size = 0x8, scoped, tag = 'scoped memory for tpu_custom_call.1']
    #allocation11 [shape = 'u8[262144]{0}', space=vmem, size = 0x40000, scoped, tag = 'output window, operand 0']
    %13 = vsyncpa [#allocation4], 0
    %s14 = scalar_lea.sflag [#allocation4], 1
    %15 = vsyncpa %s14, 0
    %16 = vsyncpa [#allocation7], 0
    %17 = vsyncpa [#allocation10], 0
    %s18 = scalar_lea.sflag [#allocation10], 1
    %19 = vsyncpa %s18, 0
    %20 = vsyncpa [#allocation5], 0
    %s21 = scalar_lea.sflag [#allocation5], 1
    %22 = vsyncpa %s21, 0
    loop: start=0, step=1, limit=4
    $region2: #{tpu_custom_call.1} parent=1 // loop_pre_header
      _
    $region3: #{tpu_custom_call.1} parent=1 // loop_header
      %s24 = sphi 0, %s28
      %p25 = scmp.ge.s32.totalorder %s24, 4
      %s31 = sphi 0, %s43
      %s32 = sphi 0, %s39
      %s33 = sphi 0, %s31
      %s34 = sphi 0, %s32
      %s35 = sphi 0, %s33
      %s36 = sphi 0, %s34
      %s48 = sphi 0, %s50
      %s51 = sphi 0, %s48
      %s52 = sphi 0, %s51
      %s68 = sphi 0, %s52
      %s74 = sphi 0, %s76
      %s77 = sphi 0, %s74
      %s78 = sphi 0, %s77
      %s94 = sphi 0, %s78
      %s100 = sphi 0, %s102
      %s103 = sphi 0, %s100
      %s104 = sphi 0, %s103
      %s120 = sphi 0, %s104
      %s126 = sphi 0, %s128
      %s129 = sphi 0, %s126
      %s130 = sphi 0, %s129
      %s146 = sphi 0, %s130
      %s150 = sphi 0, %s150
      %s152 = sphi 0, %s150
      %s153 = sphi 0, %s152
      %s167 = sphi 0, %s153
      %s171 = sphi 0, %s171
      %s173 = sphi 0, %s171
      %s174 = sphi 0, %s173
      %s188 = sphi 0, %s174
      %s192 = sphi 0, %s192
      %s194 = sphi 0, %s192
      %s195 = sphi 0, %s194
      %s209 = sphi 0, %s195
      %s215 = sphi 0, %s217
      %s218 = sphi 0, %s215
      %s219 = sphi 0, %s218
      %s235 = sphi 0, %s219
      %s241 = sphi 0, %s243
      %s244 = sphi 0, %s241
      %s245 = sphi 0, %s244
      %s261 = sphi 0, %s245
    $region4: #{tpu_custom_call.1} parent=1 // loop_header_branch
      %27 = sbr.rel (%p25) target = $region8
    $region5: #{tpu_custom_call.1} parent=1 // loop_body
      %s29 = ssub.s32 %s24, 1
      %s30 = ssub.s32 %s24, 2
      %s37 = sadd.s32 1, %s32
      %p38 = scmp.ge.s32.totalorder %s37, 1
      %s39 = scalar_select %p38, 0, %s37
      %s40 = sadd.s32 1, %s31
      %s41 = scalar_select %p38, %s40, %s31
      %p42 = scmp.ge.s32.totalorder %s41, 2
      %s43 = scalar_select %p42, 0, %s41
      %s44 = ssub.s32 %s31, %s43
      %s45 = ssub.s32 %s32, %s39
      %s46 = sor.u32 %s44, %s45
      %p47 = scmp.eq.s32.totalorder %s46, 0
      %s49 = sadd.s32 %s48, 1
      %s50 = scalar_select %p47, %s48, %s49
      %p53 = pneg %p47
      %p54 = scmp.eq.s32.totalorder %s24, 1
      %p55 = por %p53, %p54
      %p56 = scmp.ne.s32.totalorder %s48, %s51
      %p57 = scmp.eq.s32.totalorder %s24, 0
      %p58 = por %p56, %p57
      %p59 = scmp.ne.s32.totalorder %s48, %s51
      %p60 = scmp.eq.s32.totalorder %s29, 1
      %p61 = por %p59, %p60
      %p62 = scmp.ne.s32.totalorder %s51, %s52
      %p63 = scmp.eq.s32.totalorder %s29, 0
      %p64 = por %p62, %p63
      %p65 = scmp.ne.s32.totalorder %s51, %s52
      %p66 = scmp.eq.s32.totalorder %s30, 1
      %p67 = por %p65, %p66
      %p69 = scmp.ne.s32.totalorder %s52, %s68
      %p70 = scmp.eq.s32.totalorder %s30, 0
      %p71 = por %p69, %p70
      %s72 = ssub.s32 %s32, %s39
      %p73 = scmp.eq.s32.totalorder %s72, 0
      %s75 = sadd.s32 %s74, 1
      %s76 = scalar_select %p73, %s74, %s75
      %p79 = pneg %p73
      %p80 = scmp.eq.s32.totalorder %s24, 1
      %p81 = por %p79, %p80
      %p82 = scmp.ne.s32.totalorder %s74, %s77
      %p83 = scmp.eq.s32.totalorder %s24, 0
      %p84 = por %p82, %p83
      %p85 = scmp.ne.s32.totalorder %s74, %s77
      %p86 = scmp.eq.s32.totalorder %s29, 1
      %p87 = por %p85, %p86
      %p88 = scmp.ne.s32.totalorder %s77, %s78
      %p89 = scmp.eq.s32.totalorder %s29, 0
      %p90 = por %p88, %p89
      %p91 = scmp.ne.s32.totalorder %s77, %s78
      %p92 = scmp.eq.s32.totalorder %s30, 1
      %p93 = por %p91, %p92
      %p95 = scmp.ne.s32.totalorder %s78, %s94
      %p96 = scmp.eq.s32.totalorder %s30, 0
      %p97 = por %p95, %p96
      %s98 = ssub.s32 %s31, %s43
      %p99 = scmp.eq.s32.totalorder %s98, 0
      %s101 = sadd.s32 %s100, 1
      %s102 = scalar_select %p99, %s100, %s101
      %p105 = pneg %p99
      %p106 = scmp.eq.s32.totalorder %s24, 1
      %p107 = por %p105, %p106
      %p108 = scmp.ne.s32.totalorder %s100, %s103
      %p109 = scmp.eq.s32.totalorder %s24, 0
      %p110 = por %p108, %p109
      %p111 = scmp.ne.s32.totalorder %s100, %s103
      %p112 = scmp.eq.s32.totalorder %s29, 1
      %p113 = por %p111, %p112
      %p114 = scmp.ne.s32.totalorder %s103, %s104
      %p115 = scmp.eq.s32.totalorder %s29, 0
      %p116 = por %p114, %p115
      %p117 = scmp.ne.s32.totalorder %s103, %s104
      %p118 = scmp.eq.s32.totalorder %s30, 1
      %p119 = por %p117, %p118
      %p121 = scmp.ne.s32.totalorder %s104, %s120
      %p122 = scmp.eq.s32.totalorder %s30, 0
      %p123 = por %p121, %p122
      %s124 = ssub.s32 %s31, %s43
      %p125 = scmp.eq.s32.totalorder %s124, 0
      %s127 = sadd.s32 %s126, 1
      %s128 = scalar_select %p125, %s126, %s127
      %p131 = pneg %p125
      %p132 = scmp.eq.s32.totalorder %s24, 1
      %p133 = por %p131, %p132
      %p134 = scmp.ne.s32.totalorder %s126, %s129
      %p135 = scmp.eq.s32.totalorder %s24, 0
      %p136 = por %p134, %p135
      %p137 = scmp.ne.s32.totalorder %s126, %s129
      %p138 = scmp.eq.s32.totalorder %s29, 1
      %p139 = por %p137, %p138
      %p140 = scmp.ne.s32.totalorder %s129, %s130
      %p141 = scmp.eq.s32.totalorder %s29, 0
      %p142 = por %p140, %p141
      %p143 = scmp.ne.s32.totalorder %s129, %s130
      %p144 = scmp.eq.s32.totalorder %s30, 1
      %p145 = por %p143, %p144
      %p147 = scmp.ne.s32.totalorder %s130, %s146
      %p148 = scmp.eq.s32.totalorder %s30, 0
      %p149 = por %p147, %p148
      %s151 = sadd.s32 %s150, 1
      %p154 = scmp.eq.s32.totalorder %s24, 1
      %p155 = scmp.ne.s32.totalorder %s150, %s152
      %p156 = scmp.eq.s32.totalorder %s24, 0
      %p157 = por %p155, %p156
      %p158 = scmp.ne.s32.totalorder %s150, %s152
      %p159 = scmp.eq.s32.totalorder %s29, 1
      %p160 = por %p158, %p159
      %p161 = scmp.ne.s32.totalorder %s152, %s153
      %p162 = scmp.eq.s32.totalorder %s29, 0
      %p163 = por %p161, %p162
      %p164 = scmp.ne.s32.totalorder %s152, %s153
      %p165 = scmp.eq.s32.totalorder %s30, 1
      %p166 = por %p164, %p165
      %p168 = scmp.ne.s32.totalorder %s153, %s167
      %p169 = scmp.eq.s32.totalorder %s30, 0
      %p170 = por %p168, %p169
      %s172 = sadd.s32 %s171, 1
      %p175 = scmp.eq.s32.totalorder %s24, 1
      %p176 = scmp.ne.s32.totalorder %s171, %s173
      %p177 = scmp.eq.s32.totalorder %s24, 0
      %p178 = por %p176, %p177
      %p179 = scmp.ne.s32.totalorder %s171, %s173
      %p180 = scmp.eq.s32.totalorder %s29, 1
      %p181 = por %p179, %p180
      %p182 = scmp.ne.s32.totalorder %s173, %s174
      %p183 = scmp.eq.s32.totalorder %s29, 0
      %p184 = por %p182, %p183
      %p185 = scmp.ne.s32.totalorder %s173, %s174
      %p186 = scmp.eq.s32.totalorder %s30, 1
      %p187 = por %p185, %p186
      %p189 = scmp.ne.s32.totalorder %s174, %s188
      %p190 = scmp.eq.s32.totalorder %s30, 0
      %p191 = por %p189, %p190
      %s193 = sadd.s32 %s192, 1
      %p196 = scmp.eq.s32.totalorder %s24, 1
      %p197 = scmp.ne.s32.totalorder %s192, %s194
      %p198 = scmp.eq.s32.totalorder %s24, 0
      %p199 = por %p197, %p198
      %p200 = scmp.ne.s32.totalorder %s192, %s194
      %p201 = scmp.eq.s32.totalorder %s29, 1
      %p202 = por %p200, %p201
      %p203 = scmp.ne.s32.totalorder %s194, %s195
      %p204 = scmp.eq.s32.totalorder %s29, 0
      %p205 = por %p203, %p204
      %p206 = scmp.ne.s32.totalorder %s194, %s195
      %p207 = scmp.eq.s32.totalorder %s30, 1
      %p208 = por %p206, %p207
      %p210 = scmp.ne.s32.totalorder %s195, %s209
      %p211 = scmp.eq.s32.totalorder %s30, 0
      %p212 = por %p210, %p211
      %s213 = ssub.s32 %s31, %s43
      %p214 = scmp.eq.s32.totalorder %s213, 0
      %s216 = sadd.s32 %s215, 1
      %s217 = scalar_select %p214, %s215, %s216
      %p220 = pneg %p214
      %p221 = scmp.eq.s32.totalorder %s24, 1
      %p222 = por %p220, %p221
      %p223 = scmp.ne.s32.totalorder %s215, %s218
      %p224 = scmp.eq.s32.totalorder %s24, 0
      %p225 = por %p223, %p224
      %p226 = scmp.ne.s32.totalorder %s215, %s218
      %p227 = scmp.eq.s32.totalorder %s29, 1
      %p228 = por %p226, %p227
      %p229 = scmp.ne.s32.totalorder %s218, %s219
      %p230 = scmp.eq.s32.totalorder %s29, 0
      %p231 = por %p229, %p230
      %p232 = scmp.ne.s32.totalorder %s218, %s219
      %p233 = scmp.eq.s32.totalorder %s30, 1
      %p234 = por %p232, %p233
      %p236 = scmp.ne.s32.totalorder %s219, %s235
      %p237 = scmp.eq.s32.totalorder %s30, 0
      %p238 = por %p236, %p237
      %s239 = ssub.s32 %s31, %s43
      %p240 = scmp.eq.s32.totalorder %s239, 0
      %s242 = sadd.s32 %s241, 1
      %s243 = scalar_select %p240, %s241, %s242
      %p246 = pneg %p240
      %p247 = scmp.eq.s32.totalorder %s24, 1
      %p248 = por %p246, %p247
      %p249 = scmp.ne.s32.totalorder %s241, %s244
      %p250 = scmp.eq.s32.totalorder %s24, 0
      %p251 = por %p249, %p250
      %p252 = scmp.ne.s32.totalorder %s241, %s244
      %p253 = scmp.eq.s32.totalorder %s29, 1
      %p254 = por %p252, %p253
      %p255 = scmp.ne.s32.totalorder %s244, %s245
      %p256 = scmp.eq.s32.totalorder %s29, 0
      %p257 = por %p255, %p256
      %p258 = scmp.ne.s32.totalorder %s244, %s245
      %p259 = scmp.eq.s32.totalorder %s30, 1
      %p260 = por %p258, %p259
      %p262 = scmp.ne.s32.totalorder %s245, %s261
      %p263 = scmp.eq.s32.totalorder %s30, 0
      %p264 = por %p262, %p263
      %p265 = scmp.le.s32.totalorder 1, %s24
      %p266 = scmp.lt.s32.totalorder %s24, 3
      %p267 = pnand %p265, %p266
      %p268 = pneg %p267
      // Predicated region
      $region9: #{tpu_custom_call.1} parent=5 // pred_check
        _
      $region10: #{tpu_custom_call.1} parent=5 // pred_check_branch
        %270 = sbr.rel (%p267) target = $region12
      $region11: #{tpu_custom_call.1} parent=5 // pred_region
        %s271 = ssub.s32 %s24, 1
        // Predicated region
        $region13: #{tpu_custom_call.1} parent=11 // pred_check
          %p272 = pneg %p90
        $region14: #{tpu_custom_call.1} parent=11 // pred_check_branch
          %274 = sbr.rel (%p272) target = $region16
        $region15: #{tpu_custom_call.1} parent=11 // pred_region
          %s275 = smul.u32 128, %s34
          %p276 = scmp.lt.s32.totalorder %s275, 127
          %s277 = scalar_select %p276, %s275, 127
          %s278 = smul.addr %s277, 4
          %s279 = scalar_lea.vmem %s1, %s278
          %s280 = smul.u32 128, %s34
        $region16: #{tpu_custom_call.1} parent=11 // pred_fallthru
          _
        // Predicated region
        $region17: #{tpu_custom_call.1} parent=11 // pred_check
          %p281 = pneg %p163
        $region18: #{tpu_custom_call.1} parent=11 // pred_check_branch
          %283 = sbr.rel (%p281) target = $region20
        $region19: #{tpu_custom_call.1} parent=11 // pred_region
          %s285 = ssub.s32 1024, 1024
          %286 = vsyncadd [#allocation7], %s285
          %s287 = sshll.u32 [#allocation6], 4
          %s288 = int_to_ptr.vmem [resolvable:$true] %s287
          %293 = dma.hbm_to_vmem [thread:$0]  %s4, 1024, %s288, [#allocation7], 64, 64, 4
        $region20: #{tpu_custom_call.1} parent=11 // pred_fallthru
          _
        // Predicated region
        $region21: #{tpu_custom_call.1} parent=11 // pred_check
          %p294 = pneg %p184
        $region22: #{tpu_custom_call.1} parent=11 // pred_check_branch
          %296 = sbr.rel (%p294) target = $region24
        $region23: #{tpu_custom_call.1} parent=11 // pred_region
          %s298 = ssub.s32 1024, 1024
          %299 = vsyncadd [#allocation7], %s298
          %s300 = sshll.u32 [#allocation8], 4
          %s301 = int_to_ptr.vmem [resolvable:$true] %s300
          %306 = dma.hbm_to_vmem [thread:$0]  %s5, 1024, %s301, [#allocation7], 64, 64, 4
        $region24: #{tpu_custom_call.1} parent=11 // pred_fallthru
          _
        // Predicated region
        $region25: #{tpu_custom_call.1} parent=11 // pred_check
          %p307 = pneg %p205
        $region26: #{tpu_custom_call.1} parent=11 // pred_check_branch
          %309 = sbr.rel (%p307) target = $region28
        $region27: #{tpu_custom_call.1} parent=11 // pred_region
          _
        $region28: #{tpu_custom_call.1} parent=11 // pred_fallthru
          _
      $region12: #{tpu_custom_call.1} parent=5 // pred_fallthru
        _
      %p310 = scmp.lt.s32.totalorder %s24, 2
      // Predicated region
      $region29: #{tpu_custom_call.1} parent=5 // pred_check
        %p311 = pneg %p310
      $region30: #{tpu_custom_call.1} parent=5 // pred_check_branch
        %313 = sbr.rel (%p311) target = $region32
      $region31: #{tpu_custom_call.1} parent=5 // pred_region
        // Predicated region
        $region33: #{tpu_custom_call.1} parent=31 // pred_check
          %p314 = pneg %p58
        $region34: #{tpu_custom_call.1} parent=31 // pred_check_branch
          %316 = sbr.rel (%p314) target = $region36
        $region35: #{tpu_custom_call.1} parent=31 // pred_region
          %s317 = sand.u32 %s48, 1
          %s318 = scalar_lea.sflag [#allocation4], %s317
          %s319 = sand.u32 %s48, 1
          %s320 = smul.addr %s319, 1024
          %s321 = scalar_lea.vmem [#allocation3], %s320
          %s322 = smul.u32 16, %s31
          %s323 = smul.u32 8, %s32
          %s325 = ssub.s32 16384, 16384
          %326 = vsyncadd %s318, %s325
          %s327 = smul.addr %s322, 8
          %s328 = sadd.s32 %s323, %s327
          %s329 = smul.addr %s328, 128
          %s330 = scalar_lea.hbm %s0, %s329
          %s331 = sshll.u32 %s321, 4
          %s332 = int_to_ptr.vmem [resolvable:$true] %s331
          %337 = dma.hbm_to_vmem [thread:$0]  %s330, 16384, %s332, %s318, 1024, 1024, 64
        $region36: #{tpu_custom_call.1} parent=31 // pred_fallthru
          _
        // Predicated region
        $region37: #{tpu_custom_call.1} parent=31 // pred_check
          %p338 = pneg %p110
        $region38: #{tpu_custom_call.1} parent=31 // pred_check_branch
          %340 = sbr.rel (%p338) target = $region40
        $region39: #{tpu_custom_call.1} parent=31 // pred_region
          %s341 = smul.u32 64, %s31
          %p342 = scmp.lt.s32.totalorder %s341, 127
          %s343 = scalar_select %p342, %s341, 127
          %s344 = smul.addr %s343, 4
          %s345 = scalar_lea.vmem %s2, %s344
          %s346 = smul.u32 64, %s31
        $region40: #{tpu_custom_call.1} parent=31 // pred_fallthru
          _
        // Predicated region
        $region41: #{tpu_custom_call.1} parent=31 // pred_check
          %p347 = pneg %p136
        $region42: #{tpu_custom_call.1} parent=31 // pred_check_branch
          %349 = sbr.rel (%p347) target = $region44
        $region43: #{tpu_custom_call.1} parent=31 // pred_region
          %s350 = smul.u32 64, %s31
          %p351 = scmp.lt.s32.totalorder %s350, 127
          %s352 = scalar_select %p351, %s350, 127
          %s353 = smul.addr %s352, 8
          %s354 = scalar_lea.vmem %s3, %s353
          %s355 = smul.u32 64, %s31
        $region44: #{tpu_custom_call.1} parent=31 // pred_fallthru
          _
        // Predicated region
        $region45: #{tpu_custom_call.1} parent=31 // pred_check
          %p356 = pneg %p225
        $region46: #{tpu_custom_call.1} parent=31 // pred_check_branch
          %358 = sbr.rel (%p356) target = $region48
        $region47: #{tpu_custom_call.1} parent=31 // pred_region
          %s359 = sand.u32 %s215, 1
          %s360 = scalar_lea.sflag [#allocation10], %s359
          %s361 = sand.u32 %s215, 1
          %s362 = smul.addr %s361, 256
          %s363 = scalar_lea.vmem [#allocation9], %s362
          %s364 = smul.u32 64, %s31
          %s366 = ssub.s32 4096, 4096
          %367 = vsyncadd %s360, %s366
          %s368 = smul.addr %s364, 64
          %s369 = scalar_lea.hbm %s7, %s368
          %s370 = sshll.u32 %s363, 4
          %s371 = int_to_ptr.vmem [resolvable:$true] %s370
          %376 = dma.hbm_to_vmem [thread:$0]  %s369, 4096, %s371, %s360, 64, 64, 4
        $region48: #{tpu_custom_call.1} parent=31 // pred_fallthru
          _
      $region32: #{tpu_custom_call.1} parent=5 // pred_fallthru
        _
      %p377 = scmp.le.s32.totalorder 1, %s24
      %p378 = scmp.lt.s32.totalorder %s24, 3
      %p379 = pnand %p377, %p378
      %p380 = pneg %p379
      // Predicated region
      $region49: #{tpu_custom_call.1} parent=5 // pred_check
        _
      $region50: #{tpu_custom_call.1} parent=5 // pred_check_branch
        %382 = sbr.rel (%p379) target = $region52
      $region51: #{tpu_custom_call.1} parent=5 // pred_region
        %s383 = ssub.s32 %s24, 1
        %s384 = sand.u32 %s51, 1
        %s385 = scalar_lea.sflag [#allocation4], %s384
        %s386 = sand.u32 %s51, 1
        %s387 = smul.addr %s386, 1024
        %s388 = scalar_lea.vmem [#allocation3], %s387
        // Predicated region
        $region53: #{tpu_custom_call.1} parent=51 // pred_check
          %p389 = pneg %p64
        $region54: #{tpu_custom_call.1} parent=51 // pred_check_branch
          %391 = sbr.rel (%p389) target = $region56
        $region55: #{tpu_custom_call.1} parent=51 // pred_region
          %392 = dma.done %s385, 16384
        $region56: #{tpu_custom_call.1} parent=51 // pred_fallthru
          _
        // Predicated region
        $region57: #{tpu_custom_call.1} parent=51 // pred_check
          %p393 = pneg %p163
        $region58: #{tpu_custom_call.1} parent=51 // pred_check_branch
          %395 = sbr.rel (%p393) target = $region60
        $region59: #{tpu_custom_call.1} parent=51 // pred_region
          %396 = dma.done [#allocation7], 1024
        $region60: #{tpu_custom_call.1} parent=51 // pred_fallthru
          _
        // Predicated region
        $region61: #{tpu_custom_call.1} parent=51 // pred_check
          %p397 = pneg %p184
        $region62: #{tpu_custom_call.1} parent=51 // pred_check_branch
          %399 = sbr.rel (%p397) target = $region64
        $region63: #{tpu_custom_call.1} parent=51 // pred_region
          %400 = dma.done [#allocation7], 1024
        $region64: #{tpu_custom_call.1} parent=51 // pred_fallthru
          _
        %s401 = sand.u32 %s218, 1
        %s402 = scalar_lea.sflag [#allocation10], %s401
        %s403 = sand.u32 %s218, 1
        %s404 = smul.addr %s403, 256
        %s405 = scalar_lea.vmem [#allocation9], %s404
        // Predicated region
        $region65: #{tpu_custom_call.1} parent=51 // pred_check
          %p406 = pneg %p231
        $region66: #{tpu_custom_call.1} parent=51 // pred_check_branch
          %408 = sbr.rel (%p406) target = $region68
        $region67: #{tpu_custom_call.1} parent=51 // pred_region
          %409 = dma.done %s402, 4096
        $region68: #{tpu_custom_call.1} parent=51 // pred_fallthru
          _
        %s410 = sand.u32 %s51, 1
        %s411 = scalar_lea.sflag [#allocation4], %s410
        %s412 = sand.u32 %s51, 1
        %s413 = smul.addr %s412, 1024
        %s414 = scalar_lea.vmem [#allocation3], %s413
        %p415 = pneg %p64
        %p416 = pneg %p61
        %s417 = smul.u32 128, %s34
        %p418 = scmp.lt.s32.totalorder %s417, 127
        %s419 = scalar_select %p418, %s417, 127
        %s420 = smul.addr %s419, 4
        %s421 = scalar_lea.vmem %s1, %s420
        %p422 = pneg %p90
        %p423 = pneg %p87
        %s424 = smul.u32 64, %s33
        %p425 = scmp.lt.s32.totalorder %s424, 127
        %s426 = scalar_select %p425, %s424, 127
        %s427 = smul.addr %s426, 4
        %s428 = scalar_lea.vmem %s2, %s427
        %p429 = pneg %p116
        %p430 = pneg %p113
        %s431 = smul.u32 64, %s33
        %p432 = scmp.lt.s32.totalorder %s431, 127
        %s433 = scalar_select %p432, %s431, 127
        %s434 = smul.addr %s433, 8
        %s435 = scalar_lea.vmem %s3, %s434
        %p436 = pneg %p142
        %p437 = pneg %p139
        %p438 = pneg %p163
        %p439 = pneg %p160
        %p440 = pneg %p184
        %p441 = pneg %p181
        %p442 = pneg %p205
        %p443 = pneg %p202
        %s444 = sand.u32 %s218, 1
        %s445 = scalar_lea.sflag [#allocation10], %s444
        %s446 = sand.u32 %s218, 1
        %s447 = smul.addr %s446, 256
        %s448 = scalar_lea.vmem [#allocation9], %s447
        %p449 = pneg %p231
        %p450 = pneg %p228
        %p451 = pneg %p257
        %p452 = pneg %p254
        %s453 = sand.u32 %s244, 1
        %s454 = scalar_lea.sflag [#allocation5], %s453
        %s455 = sand.u32 %s244, 1
        %s456 = smul.addr %s455, 256
        %s457 = scalar_lea.vmem [#allocation11], %s456
        %s458 = smul.u32 16, %s33
        %s459 = smul.u32 8, %s34
        %s460 = smul.u32 128, %s34
        %p461 = scmp.lt.s32.totalorder %s460, 127
        %s462 = scalar_select %p461, %s460, 127
        %s463 = smul.addr %s462, 4
        %s464 = scalar_lea.vmem %s1, %s463
        %s465 = smul.u32 128, %s34
        %s466 = smul.u32 64, %s33
        %p467 = scmp.lt.s32.totalorder %s466, 127
        %s468 = scalar_select %p467, %s466, 127
        %s469 = smul.addr %s468, 4
        %s470 = scalar_lea.vmem %s2, %s469
        %s471 = smul.u32 64, %s33
        %s472 = smul.u32 64, %s33
        %p473 = scmp.lt.s32.totalorder %s472, 127
        %s474 = scalar_select %p473, %s472, 127
        %s475 = smul.addr %s474, 8
        %s476 = scalar_lea.vmem %s3, %s475
        %s477 = smul.u32 64, %s33
        %s478 = smul.u32 64, %s33
        %s479 = smul.u32 64, %s33
        %p481 = scmp.eq.s32.totalorder %s34, 0
        // Predicated region
        $region69: #{tpu_custom_call.1} parent=51 // pred_check
          %p482 = pneg %p481
        $region70: #{tpu_custom_call.1} parent=51 // pred_check_branch
          %484 = sbr.rel (%p482) target = $region72
        $region71: #{tpu_custom_call.1} parent=51 // pred_region
          %485 = vst [vmem:[#allocation2] sm:$0xff] 0.0
          %486 = vst [vmem:[#allocation2 + $0x8] sm:$0xff] 0.0
          %487 = vst [vmem:[#allocation2 + $0x10] sm:$0xff] 0.0
          %488 = vst [vmem:[#allocation2 + $0x18] sm:$0xff] 0.0
          %489 = vst [vmem:[#allocation2 + $0x20] sm:$0xff] 0.0
          %490 = vst [vmem:[#allocation2 + $0x28] sm:$0xff] 0.0
          %491 = vst [vmem:[#allocation2 + $0x30] sm:$0xff] 0.0
          %492 = vst [vmem:[#allocation2 + $0x38] sm:$0xff] 0.0
          %493 = vst [vmem:[#allocation2 + $0x40] sm:$0xff] 0.0
          %494 = vst [vmem:[#allocation2 + $0x48] sm:$0xff] 0.0
          %495 = vst [vmem:[#allocation2 + $0x50] sm:$0xff] 0.0
          %496 = vst [vmem:[#allocation2 + $0x58] sm:$0xff] 0.0
          %497 = vst [vmem:[#allocation2 + $0x60] sm:$0xff] 0.0
          %498 = vst [vmem:[#allocation2 + $0x68] sm:$0xff] 0.0
          %499 = vst [vmem:[#allocation2 + $0x70] sm:$0xff] 0.0
          %500 = vst [vmem:[#allocation2 + $0x78] sm:$0xff] 0.0
          %501 = vst [vmem:[#allocation2 + $0x80] sm:$0xff] 0.0
          %502 = vst [vmem:[#allocation2 + $0x88] sm:$0xff] 0.0
          %503 = vst [vmem:[#allocation2 + $0x90] sm:$0xff] 0.0
          %504 = vst [vmem:[#allocation2 + $0x98] sm:$0xff] 0.0
          %505 = vst [vmem:[#allocation2 + $0xa0] sm:$0xff] 0.0
          %506 = vst [vmem:[#allocation2 + $0xa8] sm:$0xff] 0.0
          %507 = vst [vmem:[#allocation2 + $0xb0] sm:$0xff] 0.0
          %508 = vst [vmem:[#allocation2 + $0xb8] sm:$0xff] 0.0
          %509 = vst [vmem:[#allocation2 + $0xc0] sm:$0xff] 0.0
          %510 = vst [vmem:[#allocation2 + $0xc8] sm:$0xff] 0.0
          %511 = vst [vmem:[#allocation2 + $0xd0] sm:$0xff] 0.0
          %512 = vst [vmem:[#allocation2 + $0xd8] sm:$0xff] 0.0
          %513 = vst [vmem:[#allocation2 + $0xe0] sm:$0xff] 0.0
          %514 = vst [vmem:[#allocation2 + $0xe8] sm:$0xff] 0.0
          %515 = vst [vmem:[#allocation2 + $0xf0] sm:$0xff] 0.0
          %516 = vst [vmem:[#allocation2 + $0xf8] sm:$0xff] 0.0
          %517 = vst [vmem:[#allocation2 + $0x100] sm:$0xff] 0.0
          %518 = vst [vmem:[#allocation2 + $0x108] sm:$0xff] 0.0
          %519 = vst [vmem:[#allocation2 + $0x110] sm:$0xff] 0.0
          %520 = vst [vmem:[#allocation2 + $0x118] sm:$0xff] 0.0
          %521 = vst [vmem:[#allocation2 + $0x120] sm:$0xff] 0.0
          %522 = vst [vmem:[#allocation2 + $0x128] sm:$0xff] 0.0
          %523 = vst [vmem:[#allocation2 + $0x130] sm:$0xff] 0.0
          %524 = vst [vmem:[#allocation2 + $0x138] sm:$0xff] 0.0
          %525 = vst [vmem:[#allocation2 + $0x140] sm:$0xff] 0.0
          %526 = vst [vmem:[#allocation2 + $0x148] sm:$0xff] 0.0
          %527 = vst [vmem:[#allocation2 + $0x150] sm:$0xff] 0.0
          %528 = vst [vmem:[#allocation2 + $0x158] sm:$0xff] 0.0
          %529 = vst [vmem:[#allocation2 + $0x160] sm:$0xff] 0.0
          %530 = vst [vmem:[#allocation2 + $0x168] sm:$0xff] 0.0
          %531 = vst [vmem:[#allocation2 + $0x170] sm:$0xff] 0.0
          %532 = vst [vmem:[#allocation2 + $0x178] sm:$0xff] 0.0
          %533 = vst [vmem:[#allocation2 + $0x180] sm:$0xff] 0.0
          %534 = vst [vmem:[#allocation2 + $0x188] sm:$0xff] 0.0
          %535 = vst [vmem:[#allocation2 + $0x190] sm:$0xff] 0.0
          %536 = vst [vmem:[#allocation2 + $0x198] sm:$0xff] 0.0
          %537 = vst [vmem:[#allocation2 + $0x1a0] sm:$0xff] 0.0
          %538 = vst [vmem:[#allocation2 + $0x1a8] sm:$0xff] 0.0
          %539 = vst [vmem:[#allocation2 + $0x1b0] sm:$0xff] 0.0
          %540 = vst [vmem:[#allocation2 + $0x1b8] sm:$0xff] 0.0
          %541 = vst [vmem:[#allocation2 + $0x1c0] sm:$0xff] 0.0
          %542 = vst [vmem:[#allocation2 + $0x1c8] sm:$0xff] 0.0
          %543 = vst [vmem:[#allocation2 + $0x1d0] sm:$0xff] 0.0
          %544 = vst [vmem:[#allocation2 + $0x1d8] sm:$0xff] 0.0
          %545 = vst [vmem:[#allocation2 + $0x1e0] sm:$0xff] 0.0
          %546 = vst [vmem:[#allocation2 + $0x1e8] sm:$0xff] 0.0
          %547 = vst [vmem:[#allocation2 + $0x1f0] sm:$0xff] 0.0
          %548 = vst [vmem:[#allocation2 + $0x1f8] sm:$0xff] 0.0
        $region72: #{tpu_custom_call.1} parent=51 // pred_fallthru
          _
        %v549 = vld [vmem:[%s388] sm:$0xff]
        %v550 = vld [vmem:[%s388 + $0x8] sm:$0xff]
        %v551 = vld [vmem:[%s388 + $0x10] sm:$0xff]
        %v552 = vld [vmem:[%s388 + $0x18] sm:$0xff]
        %v553 = vld [vmem:[%s388 + $0x20] sm:$0xff]
        %v554 = vld [vmem:[%s388 + $0x28] sm:$0xff]
        %v555 = vld [vmem:[%s388 + $0x30] sm:$0xff]
        %v556 = vld [vmem:[%s388 + $0x38] sm:$0xff]
        %v557 = vld [vmem:[%s388 + $0x40] sm:$0xff]
        %v558 = vld [vmem:[%s388 + $0x48] sm:$0xff]
        %v559 = vld [vmem:[%s388 + $0x50] sm:$0xff]
        %v560 = vld [vmem:[%s388 + $0x58] sm:$0xff]
        %v561 = vld [vmem:[%s388 + $0x60] sm:$0xff]
        %v562 = vld [vmem:[%s388 + $0x68] sm:$0xff]
        %v563 = vld [vmem:[%s388 + $0x70] sm:$0xff]
        %v564 = vld [vmem:[%s388 + $0x78] sm:$0xff]
        %v565 = vld [vmem:[%s388 + $0x80] sm:$0xff]
        %v566 = vld [vmem:[%s388 + $0x88] sm:$0xff]
        %v567 = vld [vmem:[%s388 + $0x90] sm:$0xff]
        %v568 = vld [vmem:[%s388 + $0x98] sm:$0xff]
        %v569 = vld [vmem:[%s388 + $0xa0] sm:$0xff]
        %v570 = vld [vmem:[%s388 + $0xa8] sm:$0xff]
        %v571 = vld [vmem:[%s388 + $0xb0] sm:$0xff]
        %v572 = vld [vmem:[%s388 + $0xb8] sm:$0xff]
        %v573 = vld [vmem:[%s388 + $0xc0] sm:$0xff]
        %v574 = vld [vmem:[%s388 + $0xc8] sm:$0xff]
        %v575 = vld [vmem:[%s388 + $0xd0] sm:$0xff]
        %v576 = vld [vmem:[%s388 + $0xd8] sm:$0xff]
        %v577 = vld [vmem:[%s388 + $0xe0] sm:$0xff]
        %v578 = vld [vmem:[%s388 + $0xe8] sm:$0xff]
        %v579 = vld [vmem:[%s388 + $0xf0] sm:$0xff]
        %v580 = vld [vmem:[%s388 + $0xf8] sm:$0xff]
        %v581 = vld [vmem:[%s388 + $0x100] sm:$0xff]
        %v582 = vld [vmem:[%s388 + $0x108] sm:$0xff]
        %v583 = vld [vmem:[%s388 + $0x110] sm:$0xff]
        %v584 = vld [vmem:[%s388 + $0x118] sm:$0xff]
        %v585 = vld [vmem:[%s388 + $0x120] sm:$0xff]
        %v586 = vld [vmem:[%s388 + $0x128] sm:$0xff]
        %v587 = vld [vmem:[%s388 + $0x130] sm:$0xff]
        %v588 = vld [vmem:[%s388 + $0x138] sm:$0xff]
        %v589 = vld [vmem:[%s388 + $0x140] sm:$0xff]
        %v590 = vld [vmem:[%s388 + $0x148] sm:$0xff]
        %v591 = vld [vmem:[%s388 + $0x150] sm:$0xff]
        %v592 = vld [vmem:[%s388 + $0x158] sm:$0xff]
        %v593 = vld [vmem:[%s388 + $0x160] sm:$0xff]
        %v594 = vld [vmem:[%s388 + $0x168] sm:$0xff]
        %v595 = vld [vmem:[%s388 + $0x170] sm:$0xff]
        %v596 = vld [vmem:[%s388 + $0x178] sm:$0xff]
        %v597 = vld [vmem:[%s388 + $0x180] sm:$0xff]
        %v598 = vld [vmem:[%s388 + $0x188] sm:$0xff]
        %v599 = vld [vmem:[%s388 + $0x190] sm:$0xff]
        %v600 = vld [vmem:[%s388 + $0x198] sm:$0xff]
        %v601 = vld [vmem:[%s388 + $0x1a0] sm:$0xff]
        %v602 = vld [vmem:[%s388 + $0x1a8] sm:$0xff]
        %v603 = vld [vmem:[%s388 + $0x1b0] sm:$0xff]
        %v604 = vld [vmem:[%s388 + $0x1b8] sm:$0xff]
        %v605 = vld [vmem:[%s388 + $0x1c0] sm:$0xff]
        %v606 = vld [vmem:[%s388 + $0x1c8] sm:$0xff]
        %v607 = vld [vmem:[%s388 + $0x1d0] sm:$0xff]
        %v608 = vld [vmem:[%s388 + $0x1d8] sm:$0xff]
        %v609 = vld [vmem:[%s388 + $0x1e0] sm:$0xff]
        %v610 = vld [vmem:[%s388 + $0x1e8] sm:$0xff]
        %v611 = vld [vmem:[%s388 + $0x1f0] sm:$0xff]
        %v612 = vld [vmem:[%s388 + $0x1f8] sm:$0xff]
        %v613 = vld [vmem:[%s388 + $0x200] sm:$0xff]
        %v614 = vld [vmem:[%s388 + $0x208] sm:$0xff]
        %v615 = vld [vmem:[%s388 + $0x210] sm:$0xff]
        %v616 = vld [vmem:[%s388 + $0x218] sm:$0xff]
        %v617 = vld [vmem:[%s388 + $0x220] sm:$0xff]
        %v618 = vld [vmem:[%s388 + $0x228] sm:$0xff]
        %v619 = vld [vmem:[%s388 + $0x230] sm:$0xff]
        %v620 = vld [vmem:[%s388 + $0x238] sm:$0xff]
        %v621 = vld [vmem:[%s388 + $0x240] sm:$0xff]
        %v622 = vld [vmem:[%s388 + $0x248] sm:$0xff]
        %v623 = vld [vmem:[%s388 + $0x250] sm:$0xff]
        %v624 = vld [vmem:[%s388 + $0x258] sm:$0xff]
        %v625 = vld [vmem:[%s388 + $0x260] sm:$0xff]
        %v626 = vld [vmem:[%s388 + $0x268] sm:$0xff]
        %v627 = vld [vmem:[%s388 + $0x270] sm:$0xff]
        %v628 = vld [vmem:[%s388 + $0x278] sm:$0xff]
        %v629 = vld [vmem:[%s388 + $0x280] sm:$0xff]
        %v630 = vld [vmem:[%s388 + $0x288] sm:$0xff]
        %v631 = vld [vmem:[%s388 + $0x290] sm:$0xff]
        %v632 = vld [vmem:[%s388 + $0x298] sm:$0xff]
        %v633 = vld [vmem:[%s388 + $0x2a0] sm:$0xff]
        %v634 = vld [vmem:[%s388 + $0x2a8] sm:$0xff]
        %v635 = vld [vmem:[%s388 + $0x2b0] sm:$0xff]
        %v636 = vld [vmem:[%s388 + $0x2b8] sm:$0xff]
        %v637 = vld [vmem:[%s388 + $0x2c0] sm:$0xff]
        %v638 = vld [vmem:[%s388 + $0x2c8] sm:$0xff]
        %v639 = vld [vmem:[%s388 + $0x2d0] sm:$0xff]
        %v640 = vld [vmem:[%s388 + $0x2d8] sm:$0xff]
        %v641 = vld [vmem:[%s388 + $0x2e0] sm:$0xff]
        %v642 = vld [vmem:[%s388 + $0x2e8] sm:$0xff]
        %v643 = vld [vmem:[%s388 + $0x2f0] sm:$0xff]
        %v644 = vld [vmem:[%s388 + $0x2f8] sm:$0xff]
        %v645 = vld [vmem:[%s388 + $0x300] sm:$0xff]
        %v646 = vld [vmem:[%s388 + $0x308] sm:$0xff]
        %v647 = vld [vmem:[%s388 + $0x310] sm:$0xff]
        %v648 = vld [vmem:[%s388 + $0x318] sm:$0xff]
        %v649 = vld [vmem:[%s388 + $0x320] sm:$0xff]
        %v650 = vld [vmem:[%s388 + $0x328] sm:$0xff]
        %v651 = vld [vmem:[%s388 + $0x330] sm:$0xff]
        %v652 = vld [vmem:[%s388 + $0x338] sm:$0xff]
        %v653 = vld [vmem:[%s388 + $0x340] sm:$0xff]
        %v654 = vld [vmem:[%s388 + $0x348] sm:$0xff]
        %v655 = vld [vmem:[%s388 + $0x350] sm:$0xff]
        %v656 = vld [vmem:[%s388 + $0x358] sm:$0xff]
        %v657 = vld [vmem:[%s388 + $0x360] sm:$0xff]
        %v658 = vld [vmem:[%s388 + $0x368] sm:$0xff]
        %v659 = vld [vmem:[%s388 + $0x370] sm:$0xff]
        %v660 = vld [vmem:[%s388 + $0x378] sm:$0xff]
        %v661 = vld [vmem:[%s388 + $0x380] sm:$0xff]
        %v662 = vld [vmem:[%s388 + $0x388] sm:$0xff]
        %v663 = vld [vmem:[%s388 + $0x390] sm:$0xff]
        %v664 = vld [vmem:[%s388 + $0x398] sm:$0xff]
        %v665 = vld [vmem:[%s388 + $0x3a0] sm:$0xff]
        %v666 = vld [vmem:[%s388 + $0x3a8] sm:$0xff]
        %v667 = vld [vmem:[%s388 + $0x3b0] sm:$0xff]
        %v668 = vld [vmem:[%s388 + $0x3b8] sm:$0xff]
        %v669 = vld [vmem:[%s388 + $0x3c0] sm:$0xff]
        %v670 = vld [vmem:[%s388 + $0x3c8] sm:$0xff]
        %v671 = vld [vmem:[%s388 + $0x3d0] sm:$0xff]
        %v672 = vld [vmem:[%s388 + $0x3d8] sm:$0xff]
        %v673 = vld [vmem:[%s388 + $0x3e0] sm:$0xff]
        %v674 = vld [vmem:[%s388 + $0x3e8] sm:$0xff]
        %v675 = vld [vmem:[%s388 + $0x3f0] sm:$0xff]
        %v676 = vld [vmem:[%s388 + $0x3f8] sm:$0xff]
        %v677 = vunpack.c.l.s8.bf16 %v549
        %v678 = vunpack.c.l.s8.bf16 %v550
        %v679 = vunpack.c.l.s8.bf16 %v551
        %v680 = vunpack.c.l.s8.bf16 %v552
        %v681 = vunpack.c.l.s8.bf16 %v553
        %v682 = vunpack.c.l.s8.bf16 %v554
        %v683 = vunpack.c.l.s8.bf16 %v555
        %v684 = vunpack.c.l.s8.bf16 %v556
        %v685 = vunpack.c.h.s8.bf16 %v549
        %v686 = vunpack.c.h.s8.bf16 %v550
        %v687 = vunpack.c.h.s8.bf16 %v551
        %v688 = vunpack.c.h.s8.bf16 %v552
        %v689 = vunpack.c.h.s8.bf16 %v553
        %v690 = vunpack.c.h.s8.bf16 %v554
        %v691 = vunpack.c.h.s8.bf16 %v555
        %v692 = vunpack.c.h.s8.bf16 %v556
        %v693 = vunpack.c.l.s8.bf16 %v557
        %v694 = vunpack.c.l.s8.bf16 %v558
        %v695 = vunpack.c.l.s8.bf16 %v559
        %v696 = vunpack.c.l.s8.bf16 %v560
        %v697 = vunpack.c.l.s8.bf16 %v561
        %v698 = vunpack.c.l.s8.bf16 %v562
        %v699 = vunpack.c.l.s8.bf16 %v563
        %v700 = vunpack.c.l.s8.bf16 %v564
        %v701 = vunpack.c.h.s8.bf16 %v557
        %v702 = vunpack.c.h.s8.bf16 %v558
        %v703 = vunpack.c.h.s8.bf16 %v559
        %v704 = vunpack.c.h.s8.bf16 %v560
        %v705 = vunpack.c.h.s8.bf16 %v561
        %v706 = vunpack.c.h.s8.bf16 %v562
        %v707 = vunpack.c.h.s8.bf16 %v563
        %v708 = vunpack.c.h.s8.bf16 %v564
        %v709 = vunpack.c.l.s8.bf16 %v565
        %v710 = vunpack.c.l.s8.bf16 %v566
        %v711 = vunpack.c.l.s8.bf16 %v567
        %v712 = vunpack.c.l.s8.bf16 %v568
        %v713 = vunpack.c.l.s8.bf16 %v569
        %v714 = vunpack.c.l.s8.bf16 %v570
        %v715 = vunpack.c.l.s8.bf16 %v571
        %v716 = vunpack.c.l.s8.bf16 %v572
        %v717 = vunpack.c.h.s8.bf16 %v565
        %v718 = vunpack.c.h.s8.bf16 %v566
        %v719 = vunpack.c.h.s8.bf16 %v567
        %v720 = vunpack.c.h.s8.bf16 %v568
        %v721 = vunpack.c.h.s8.bf16 %v569
        %v722 = vunpack.c.h.s8.bf16 %v570
        %v723 = vunpack.c.h.s8.bf16 %v571
        %v724 = vunpack.c.h.s8.bf16 %v572
        %v725 = vunpack.c.l.s8.bf16 %v573
        %v726 = vunpack.c.l.s8.bf16 %v574
        %v727 = vunpack.c.l.s8.bf16 %v575
        %v728 = vunpack.c.l.s8.bf16 %v576
        %v729 = vunpack.c.l.s8.bf16 %v577
        %v730 = vunpack.c.l.s8.bf16 %v578
        %v731 = vunpack.c.l.s8.bf16 %v579
        %v732 = vunpack.c.l.s8.bf16 %v580
        %v733 = vunpack.c.h.s8.bf16 %v573
        %v734 = vunpack.c.h.s8.bf16 %v574
        %v735 = vunpack.c.h.s8.bf16 %v575
        %v736 = vunpack.c.h.s8.bf16 %v576
        %v737 = vunpack.c.h.s8.bf16 %v577
        %v738 = vunpack.c.h.s8.bf16 %v578
        %v739 = vunpack.c.h.s8.bf16 %v579
        %v740 = vunpack.c.h.s8.bf16 %v580
        %v741 = vunpack.c.l.s8.bf16 %v581
        %v742 = vunpack.c.l.s8.bf16 %v582
        %v743 = vunpack.c.l.s8.bf16 %v583
        %v744 = vunpack.c.l.s8.bf16 %v584
        %v745 = vunpack.c.l.s8.bf16 %v585
        %v746 = vunpack.c.l.s8.bf16 %v586
        %v747 = vunpack.c.l.s8.bf16 %v587
        %v748 = vunpack.c.l.s8.bf16 %v588
        %v749 = vunpack.c.h.s8.bf16 %v581
        %v750 = vunpack.c.h.s8.bf16 %v582
        %v751 = vunpack.c.h.s8.bf16 %v583
        %v752 = vunpack.c.h.s8.bf16 %v584
        %v753 = vunpack.c.h.s8.bf16 %v585
        %v754 = vunpack.c.h.s8.bf16 %v586
        %v755 = vunpack.c.h.s8.bf16 %v587
        %v756 = vunpack.c.h.s8.bf16 %v588
        %v757 = vunpack.c.l.s8.bf16 %v589
        %v758 = vunpack.c.l.s8.bf16 %v590
        %v759 = vunpack.c.l.s8.bf16 %v591
        %v760 = vunpack.c.l.s8.bf16 %v592
        %v761 = vunpack.c.l.s8.bf16 %v593
        %v762 = vunpack.c.l.s8.bf16 %v594
        %v763 = vunpack.c.l.s8.bf16 %v595
        %v764 = vunpack.c.l.s8.bf16 %v596
        %v765 = vunpack.c.h.s8.bf16 %v589
        %v766 = vunpack.c.h.s8.bf16 %v590
        %v767 = vunpack.c.h.s8.bf16 %v591
        %v768 = vunpack.c.h.s8.bf16 %v592
        %v769 = vunpack.c.h.s8.bf16 %v593
        %v770 = vunpack.c.h.s8.bf16 %v594
        %v771 = vunpack.c.h.s8.bf16 %v595
        %v772 = vunpack.c.h.s8.bf16 %v596
        %v773 = vunpack.c.l.s8.bf16 %v597
        %v774 = vunpack.c.l.s8.bf16 %v598
        %v775 = vunpack.c.l.s8.bf16 %v599
        %v776 = vunpack.c.l.s8.bf16 %v600
        %v777 = vunpack.c.l.s8.bf16 %v601
        %v778 = vunpack.c.l.s8.bf16 %v602
        %v779 = vunpack.c.l.s8.bf16 %v603
        %v780 = vunpack.c.l.s8.bf16 %v604
        %v781 = vunpack.c.h.s8.bf16 %v597
        %v782 = vunpack.c.h.s8.bf16 %v598
        %v783 = vunpack.c.h.s8.bf16 %v599
        %v784 = vunpack.c.h.s8.bf16 %v600
        %v785 = vunpack.c.h.s8.bf16 %v601
        %v786 = vunpack.c.h.s8.bf16 %v602
        %v787 = vunpack.c.h.s8.bf16 %v603
        %v788 = vunpack.c.h.s8.bf16 %v604
        %v789 = vunpack.c.l.s8.bf16 %v605
        %v790 = vunpack.c.l.s8.bf16 %v606
        %v791 = vunpack.c.l.s8.bf16 %v607
        %v792 = vunpack.c.l.s8.bf16 %v608
        %v793 = vunpack.c.l.s8.bf16 %v609
        %v794 = vunpack.c.l.s8.bf16 %v610
        %v795 = vunpack.c.l.s8.bf16 %v611
        %v796 = vunpack.c.l.s8.bf16 %v612
        %v797 = vunpack.c.h.s8.bf16 %v605
        %v798 = vunpack.c.h.s8.bf16 %v606
        %v799 = vunpack.c.h.s8.bf16 %v607
        %v800 = vunpack.c.h.s8.bf16 %v608
        %v801 = vunpack.c.h.s8.bf16 %v609
        %v802 = vunpack.c.h.s8.bf16 %v610
        %v803 = vunpack.c.h.s8.bf16 %v611
        %v804 = vunpack.c.h.s8.bf16 %v612
        %v805 = vunpack.c.l.s8.bf16 %v613
        %v806 = vunpack.c.l.s8.bf16 %v614
        %v807 = vunpack.c.l.s8.bf16 %v615
        %v808 = vunpack.c.l.s8.bf16 %v616
        %v809 = vunpack.c.l.s8.bf16 %v617
        %v810 = vunpack.c.l.s8.bf16 %v618
        %v811 = vunpack.c.l.s8.bf16 %v619
        %v812 = vunpack.c.l.s8.bf16 %v620
        %v813 = vunpack.c.h.s8.bf16 %v613
        %v814 = vunpack.c.h.s8.bf16 %v614
        %v815 = vunpack.c.h.s8.bf16 %v615
        %v816 = vunpack.c.h.s8.bf16 %v616
        %v817 = vunpack.c.h.s8.bf16 %v617
        %v818 = vunpack.c.h.s8.bf16 %v618
        %v819 = vunpack.c.h.s8.bf16 %v619
        %v820 = vunpack.c.h.s8.bf16 %v620
        %v821 = vunpack.c.l.s8.bf16 %v621
        %v822 = vunpack.c.l.s8.bf16 %v622
        %v823 = vunpack.c.l.s8.bf16 %v623
        %v824 = vunpack.c.l.s8.bf16 %v624
        %v825 = vunpack.c.l.s8.bf16 %v625
        %v826 = vunpack.c.l.s8.bf16 %v626
        %v827 = vunpack.c.l.s8.bf16 %v627
        %v828 = vunpack.c.l.s8.bf16 %v628
        %v829 = vunpack.c.h.s8.bf16 %v621
        %v830 = vunpack.c.h.s8.bf16 %v622
        %v831 = vunpack.c.h.s8.bf16 %v623
        %v832 = vunpack.c.h.s8.bf16 %v624
        %v833 = vunpack.c.h.s8.bf16 %v625
        %v834 = vunpack.c.h.s8.bf16 %v626
        %v835 = vunpack.c.h.s8.bf16 %v627
        %v836 = vunpack.c.h.s8.bf16 %v628
        %v837 = vunpack.c.l.s8.bf16 %v629
        %v838 = vunpack.c.l.s8.bf16 %v630
        %v839 = vunpack.c.l.s8.bf16 %v631
        %v840 = vunpack.c.l.s8.bf16 %v632
        %v841 = vunpack.c.l.s8.bf16 %v633
        %v842 = vunpack.c.l.s8.bf16 %v634
        %v843 = vunpack.c.l.s8.bf16 %v635
        %v844 = vunpack.c.l.s8.bf16 %v636
        %v845 = vunpack.c.h.s8.bf16 %v629
        %v846 = vunpack.c.h.s8.bf16 %v630
        %v847 = vunpack.c.h.s8.bf16 %v631
        %v848 = vunpack.c.h.s8.bf16 %v632
        %v849 = vunpack.c.h.s8.bf16 %v633
        %v850 = vunpack.c.h.s8.bf16 %v634
        %v851 = vunpack.c.h.s8.bf16 %v635
        %v852 = vunpack.c.h.s8.bf16 %v636
        %v853 = vunpack.c.l.s8.bf16 %v637
        %v854 = vunpack.c.l.s8.bf16 %v638
        %v855 = vunpack.c.l.s8.bf16 %v639
        %v856 = vunpack.c.l.s8.bf16 %v640
        %v857 = vunpack.c.l.s8.bf16 %v641
        %v858 = vunpack.c.l.s8.bf16 %v642
        %v859 = vunpack.c.l.s8.bf16 %v643
        %v860 = vunpack.c.l.s8.bf16 %v644
        %v861 = vunpack.c.h.s8.bf16 %v637
        %v862 = vunpack.c.h.s8.bf16 %v638
        %v863 = vunpack.c.h.s8.bf16 %v639
        %v864 = vunpack.c.h.s8.bf16 %v640
        %v865 = vunpack.c.h.s8.bf16 %v641
        %v866 = vunpack.c.h.s8.bf16 %v642
        %v867 = vunpack.c.h.s8.bf16 %v643
        %v868 = vunpack.c.h.s8.bf16 %v644
        %v869 = vunpack.c.l.s8.bf16 %v645
        %v870 = vunpack.c.l.s8.bf16 %v646
        %v871 = vunpack.c.l.s8.bf16 %v647
        %v872 = vunpack.c.l.s8.bf16 %v648
        %v873 = vunpack.c.l.s8.bf16 %v649
        %v874 = vunpack.c.l.s8.bf16 %v650
        %v875 = vunpack.c.l.s8.bf16 %v651
        %v876 = vunpack.c.l.s8.bf16 %v652
        %v877 = vunpack.c.h.s8.bf16 %v645
        %v878 = vunpack.c.h.s8.bf16 %v646
        %v879 = vunpack.c.h.s8.bf16 %v647
        %v880 = vunpack.c.h.s8.bf16 %v648
        %v881 = vunpack.c.h.s8.bf16 %v649
        %v882 = vunpack.c.h.s8.bf16 %v650
        %v883 = vunpack.c.h.s8.bf16 %v651
        %v884 = vunpack.c.h.s8.bf16 %v652
        %v885 = vunpack.c.l.s8.bf16 %v653
        %v886 = vunpack.c.l.s8.bf16 %v654
        %v887 = vunpack.c.l.s8.bf16 %v655
        %v888 = vunpack.c.l.s8.bf16 %v656
        %v889 = vunpack.c.l.s8.bf16 %v657
        %v890 = vunpack.c.l.s8.bf16 %v658
        %v891 = vunpack.c.l.s8.bf16 %v659
        %v892 = vunpack.c.l.s8.bf16 %v660
        %v893 = vunpack.c.h.s8.bf16 %v653
        %v894 = vunpack.c.h.s8.bf16 %v654
        %v895 = vunpack.c.h.s8.bf16 %v655
        %v896 = vunpack.c.h.s8.bf16 %v656
        %v897 = vunpack.c.h.s8.bf16 %v657
        %v898 = vunpack.c.h.s8.bf16 %v658
        %v899 = vunpack.c.h.s8.bf16 %v659
        %v900 = vunpack.c.h.s8.bf16 %v660
        %v901 = vunpack.c.l.s8.bf16 %v661
        %v902 = vunpack.c.l.s8.bf16 %v662
        %v903 = vunpack.c.l.s8.bf16 %v663
        %v904 = vunpack.c.l.s8.bf16 %v664
        %v905 = vunpack.c.l.s8.bf16 %v665
        %v906 = vunpack.c.l.s8.bf16 %v666
        %v907 = vunpack.c.l.s8.bf16 %v667
        %v908 = vunpack.c.l.s8.bf16 %v668
        %v909 = vunpack.c.h.s8.bf16 %v661
        %v910 = vunpack.c.h.s8.bf16 %v662
        %v911 = vunpack.c.h.s8.bf16 %v663
        %v912 = vunpack.c.h.s8.bf16 %v664
        %v913 = vunpack.c.h.s8.bf16 %v665
        %v914 = vunpack.c.h.s8.bf16 %v666
        %v915 = vunpack.c.h.s8.bf16 %v667
        %v916 = vunpack.c.h.s8.bf16 %v668
        %v917 = vunpack.c.l.s8.bf16 %v669
        %v918 = vunpack.c.l.s8.bf16 %v670
        %v919 = vunpack.c.l.s8.bf16 %v671
        %v920 = vunpack.c.l.s8.bf16 %v672
        %v921 = vunpack.c.l.s8.bf16 %v673
        %v922 = vunpack.c.l.s8.bf16 %v674
        %v923 = vunpack.c.l.s8.bf16 %v675
        %v924 = vunpack.c.l.s8.bf16 %v676
        %v925 = vunpack.c.h.s8.bf16 %v669
        %v926 = vunpack.c.h.s8.bf16 %v670
        %v927 = vunpack.c.h.s8.bf16 %v671
        %v928 = vunpack.c.h.s8.bf16 %v672
        %v929 = vunpack.c.h.s8.bf16 %v673
        %v930 = vunpack.c.h.s8.bf16 %v674
        %v931 = vunpack.c.h.s8.bf16 %v675
        %v932 = vunpack.c.h.s8.bf16 %v676
        %v933 = vld [vmem:[#allocation2] sm:$0xff]
        %v934 = vld [vmem:[#allocation2 + $0x8] sm:$0xff]
        %v935 = vld [vmem:[#allocation2 + $0x10] sm:$0xff]
        %v936 = vld [vmem:[#allocation2 + $0x18] sm:$0xff]
        %v937 = vld [vmem:[#allocation2 + $0x20] sm:$0xff]
        %v938 = vld [vmem:[#allocation2 + $0x28] sm:$0xff]
        %v939 = vld [vmem:[#allocation2 + $0x30] sm:$0xff]
        %v940 = vld [vmem:[#allocation2 + $0x38] sm:$0xff]
        %v941 = vld [vmem:[#allocation2 + $0x40] sm:$0xff]
        %v942 = vld [vmem:[#allocation2 + $0x48] sm:$0xff]
        %v943 = vld [vmem:[#allocation2 + $0x50] sm:$0xff]
        %v944 = vld [vmem:[#allocation2 + $0x58] sm:$0xff]
        %v945 = vld [vmem:[#allocation2 + $0x60] sm:$0xff]
        %v946 = vld [vmem:[#allocation2 + $0x68] sm:$0xff]
        %v947 = vld [vmem:[#allocation2 + $0x70] sm:$0xff]
        %v948 = vld [vmem:[#allocation2 + $0x78] sm:$0xff]
        %v949 = vld [vmem:[#allocation2 + $0x80] sm:$0xff]
        %v950 = vld [vmem:[#allocation2 + $0x88] sm:$0xff]
        %v951 = vld [vmem:[#allocation2 + $0x90] sm:$0xff]
        %v952 = vld [vmem:[#allocation2 + $0x98] sm:$0xff]
        %v953 = vld [vmem:[#allocation2 + $0xa0] sm:$0xff]
        %v954 = vld [vmem:[#allocation2 + $0xa8] sm:$0xff]
        %v955 = vld [vmem:[#allocation2 + $0xb0] sm:$0xff]
        %v956 = vld [vmem:[#allocation2 + $0xb8] sm:$0xff]
        %v957 = vld [vmem:[#allocation2 + $0xc0] sm:$0xff]
        %v958 = vld [vmem:[#allocation2 + $0xc8] sm:$0xff]
        %v959 = vld [vmem:[#allocation2 + $0xd0] sm:$0xff]
        %v960 = vld [vmem:[#allocation2 + $0xd8] sm:$0xff]
        %v961 = vld [vmem:[#allocation2 + $0xe0] sm:$0xff]
        %v962 = vld [vmem:[#allocation2 + $0xe8] sm:$0xff]
        %v963 = vld [vmem:[#allocation2 + $0xf0] sm:$0xff]
        %v964 = vld [vmem:[#allocation2 + $0xf8] sm:$0xff]
        %v965 = vld [vmem:[#allocation2 + $0x100] sm:$0xff]
        %v966 = vld [vmem:[#allocation2 + $0x108] sm:$0xff]
        %v967 = vld [vmem:[#allocation2 + $0x110] sm:$0xff]
        %v968 = vld [vmem:[#allocation2 + $0x118] sm:$0xff]
        %v969 = vld [vmem:[#allocation2 + $0x120] sm:$0xff]
        %v970 = vld [vmem:[#allocation2 + $0x128] sm:$0xff]
        %v971 = vld [vmem:[#allocation2 + $0x130] sm:$0xff]
        %v972 = vld [vmem:[#allocation2 + $0x138] sm:$0xff]
        %v973 = vld [vmem:[#allocation2 + $0x140] sm:$0xff]
        %v974 = vld [vmem:[#allocation2 + $0x148] sm:$0xff]
        %v975 = vld [vmem:[#allocation2 + $0x150] sm:$0xff]
        %v976 = vld [vmem:[#allocation2 + $0x158] sm:$0xff]
        %v977 = vld [vmem:[#allocation2 + $0x160] sm:$0xff]
        %v978 = vld [vmem:[#allocation2 + $0x168] sm:$0xff]
        %v979 = vld [vmem:[#allocation2 + $0x170] sm:$0xff]
        %v980 = vld [vmem:[#allocation2 + $0x178] sm:$0xff]
        %v981 = vld [vmem:[#allocation2 + $0x180] sm:$0xff]
        %v982 = vld [vmem:[#allocation2 + $0x188] sm:$0xff]
        %v983 = vld [vmem:[#allocation2 + $0x190] sm:$0xff]
        %v984 = vld [vmem:[#allocation2 + $0x198] sm:$0xff]
        %v985 = vld [vmem:[#allocation2 + $0x1a0] sm:$0xff]
        %v986 = vld [vmem:[#allocation2 + $0x1a8] sm:$0xff]
        %v987 = vld [vmem:[#allocation2 + $0x1b0] sm:$0xff]
        %v988 = vld [vmem:[#allocation2 + $0x1b8] sm:$0xff]
        %v989 = vld [vmem:[#allocation2 + $0x1c0] sm:$0xff]
        %v990 = vld [vmem:[#allocation2 + $0x1c8] sm:$0xff]
        %v991 = vld [vmem:[#allocation2 + $0x1d0] sm:$0xff]
        %v992 = vld [vmem:[#allocation2 + $0x1d8] sm:$0xff]
        %v993 = vld [vmem:[#allocation2 + $0x1e0] sm:$0xff]
        %v994 = vld [vmem:[#allocation2 + $0x1e8] sm:$0xff]
        %v995 = vld [vmem:[#allocation2 + $0x1f0] sm:$0xff]
        %v996 = vld [vmem:[#allocation2 + $0x1f8] sm:$0xff]
        %v997 = vld [vmem:[%s464] sm:$0xf]
        %v998 = vld [vmem:[%s464 + $0x4] sm:$0xf]
        %v999 = vld [vmem:[%s464 + $0x8] sm:$0xf]
        %v1000 = vld [vmem:[%s464 + $0xc] sm:$0xf]
        %v1001 = vld [vmem:[%s464 + $0x10] sm:$0xf]
        %v1002 = vld [vmem:[%s464 + $0x14] sm:$0xf]
        %v1003 = vld [vmem:[%s464 + $0x18] sm:$0xf]
        %v1004 = vld [vmem:[%s464 + $0x1c] sm:$0xf]
        %v1005 = vld [vmem:[%s464 + $0x20] sm:$0xf]
        %v1006 = vld [vmem:[%s464 + $0x24] sm:$0xf]
        %v1007 = vld [vmem:[%s464 + $0x28] sm:$0xf]
        %v1008 = vld [vmem:[%s464 + $0x2c] sm:$0xf]
        %v1009 = vld [vmem:[%s464 + $0x30] sm:$0xf]
        %v1010 = vld [vmem:[%s464 + $0x34] sm:$0xf]
        %v1011 = vld [vmem:[%s464 + $0x38] sm:$0xf]
        %v1012 = vld [vmem:[%s464 + $0x3c] sm:$0xf]
        %v1013 = vld [vmem:[%s464 + $0x40] sm:$0xf]
        %v1014 = vld [vmem:[%s464 + $0x44] sm:$0xf]
        %v1015 = vld [vmem:[%s464 + $0x48] sm:$0xf]
        %v1016 = vld [vmem:[%s464 + $0x4c] sm:$0xf]
        %v1017 = vld [vmem:[%s464 + $0x50] sm:$0xf]
        %v1018 = vld [vmem:[%s464 + $0x54] sm:$0xf]
        %v1019 = vld [vmem:[%s464 + $0x58] sm:$0xf]
        %v1020 = vld [vmem:[%s464 + $0x5c] sm:$0xf]
        %v1021 = vld [vmem:[%s464 + $0x60] sm:$0xf]
        %v1022 = vld [vmem:[%s464 + $0x64] sm:$0xf]
        %v1023 = vld [vmem:[%s464 + $0x68] sm:$0xf]
        %v1024 = vld [vmem:[%s464 + $0x6c] sm:$0xf]
        %v1025 = vld [vmem:[%s464 + $0x70] sm:$0xf]
        %v1026 = vld [vmem:[%s464 + $0x74] sm:$0xf]
        %v1027 = vld [vmem:[%s464 + $0x78] sm:$0xf]
        %v1028 = vld [vmem:[%s464 + $0x7c] sm:$0xf]
        %v1029 = vld [vmem:[%s464 + $0x80] sm:$0xf]
        %v1030 = vld [vmem:[%s464 + $0x84] sm:$0xf]
        %v1031 = vld [vmem:[%s464 + $0x88] sm:$0xf]
        %v1032 = vld [vmem:[%s464 + $0x8c] sm:$0xf]
        %v1033 = vld [vmem:[%s464 + $0x90] sm:$0xf]
        %v1034 = vld [vmem:[%s464 + $0x94] sm:$0xf]
        %v1035 = vld [vmem:[%s464 + $0x98] sm:$0xf]
        %v1036 = vld [vmem:[%s464 + $0x9c] sm:$0xf]
        %v1037 = vld [vmem:[%s464 + $0xa0] sm:$0xf]
        %v1038 = vld [vmem:[%s464 + $0xa4] sm:$0xf]
        %v1039 = vld [vmem:[%s464 + $0xa8] sm:$0xf]
        %v1040 = vld [vmem:[%s464 + $0xac] sm:$0xf]
        %v1041 = vld [vmem:[%s464 + $0xb0] sm:$0xf]
        %v1042 = vld [vmem:[%s464 + $0xb4] sm:$0xf]
        %v1043 = vld [vmem:[%s464 + $0xb8] sm:$0xf]
        %v1044 = vld [vmem:[%s464 + $0xbc] sm:$0xf]
        %v1045 = vld [vmem:[%s464 + $0xc0] sm:$0xf]
        %v1046 = vld [vmem:[%s464 + $0xc4] sm:$0xf]
        %v1047 = vld [vmem:[%s464 + $0xc8] sm:$0xf]
        %v1048 = vld [vmem:[%s464 + $0xcc] sm:$0xf]
        %v1049 = vld [vmem:[%s464 + $0xd0] sm:$0xf]
        %v1050 = vld [vmem:[%s464 + $0xd4] sm:$0xf]
        %v1051 = vld [vmem:[%s464 + $0xd8] sm:$0xf]
        %v1052 = vld [vmem:[%s464 + $0xdc] sm:$0xf]
        %v1053 = vld [vmem:[%s464 + $0xe0] sm:$0xf]
        %v1054 = vld [vmem:[%s464 + $0xe4] sm:$0xf]
        %v1055 = vld [vmem:[%s464 + $0xe8] sm:$0xf]
        %v1056 = vld [vmem:[%s464 + $0xec] sm:$0xf]
        %v1057 = vld [vmem:[%s464 + $0xf0] sm:$0xf]
        %v1058 = vld [vmem:[%s464 + $0xf4] sm:$0xf]
        %v1059 = vld [vmem:[%s464 + $0xf8] sm:$0xf]
        %v1060 = vld [vmem:[%s464 + $0xfc] sm:$0xf]
        %v1061 = vld [vmem:[%s464 + $0x100] sm:$0xf]
        %v1062 = vld [vmem:[%s464 + $0x104] sm:$0xf]
        %v1063 = vld [vmem:[%s464 + $0x108] sm:$0xf]
        %v1064 = vld [vmem:[%s464 + $0x10c] sm:$0xf]
        %v1065 = vld [vmem:[%s464 + $0x110] sm:$0xf]
        %v1066 = vld [vmem:[%s464 + $0x114] sm:$0xf]
        %v1067 = vld [vmem:[%s464 + $0x118] sm:$0xf]
        %v1068 = vld [vmem:[%s464 + $0x11c] sm:$0xf]
        %v1069 = vld [vmem:[%s464 + $0x120] sm:$0xf]
        %v1070 = vld [vmem:[%s464 + $0x124] sm:$0xf]
        %v1071 = vld [vmem:[%s464 + $0x128] sm:$0xf]
        %v1072 = vld [vmem:[%s464 + $0x12c] sm:$0xf]
        %v1073 = vld [vmem:[%s464 + $0x130] sm:$0xf]
        %v1074 = vld [vmem:[%s464 + $0x134] sm:$0xf]
        %v1075 = vld [vmem:[%s464 + $0x138] sm:$0xf]
        %v1076 = vld [vmem:[%s464 + $0x13c] sm:$0xf]
        %v1077 = vld [vmem:[%s464 + $0x140] sm:$0xf]
        %v1078 = vld [vmem:[%s464 + $0x144] sm:$0xf]
        %v1079 = vld [vmem:[%s464 + $0x148] sm:$0xf]
        %v1080 = vld [vmem:[%s464 + $0x14c] sm:$0xf]
        %v1081 = vld [vmem:[%s464 + $0x150] sm:$0xf]
        %v1082 = vld [vmem:[%s464 + $0x154] sm:$0xf]
        %v1083 = vld [vmem:[%s464 + $0x158] sm:$0xf]
        %v1084 = vld [vmem:[%s464 + $0x15c] sm:$0xf]
        %v1085 = vld [vmem:[%s464 + $0x160] sm:$0xf]
        %v1086 = vld [vmem:[%s464 + $0x164] sm:$0xf]
        %v1087 = vld [vmem:[%s464 + $0x168] sm:$0xf]
        %v1088 = vld [vmem:[%s464 + $0x16c] sm:$0xf]
        %v1089 = vld [vmem:[%s464 + $0x170] sm:$0xf]
        %v1090 = vld [vmem:[%s464 + $0x174] sm:$0xf]
        %v1091 = vld [vmem:[%s464 + $0x178] sm:$0xf]
        %v1092 = vld [vmem:[%s464 + $0x17c] sm:$0xf]
        %v1093 = vld [vmem:[%s464 + $0x180] sm:$0xf]
        %v1094 = vld [vmem:[%s464 + $0x184] sm:$0xf]
        %v1095 = vld [vmem:[%s464 + $0x188] sm:$0xf]
        %v1096 = vld [vmem:[%s464 + $0x18c] sm:$0xf]
        %v1097 = vld [vmem:[%s464 + $0x190] sm:$0xf]
        %v1098 = vld [vmem:[%s464 + $0x194] sm:$0xf]
        %v1099 = vld [vmem:[%s464 + $0x198] sm:$0xf]
        %v1100 = vld [vmem:[%s464 + $0x19c] sm:$0xf]
        %v1101 = vld [vmem:[%s464 + $0x1a0] sm:$0xf]
        %v1102 = vld [vmem:[%s464 + $0x1a4] sm:$0xf]
        %v1103 = vld [vmem:[%s464 + $0x1a8] sm:$0xf]
        %v1104 = vld [vmem:[%s464 + $0x1ac] sm:$0xf]
        %v1105 = vld [vmem:[%s464 + $0x1b0] sm:$0xf]
        %v1106 = vld [vmem:[%s464 + $0x1b4] sm:$0xf]
        %v1107 = vld [vmem:[%s464 + $0x1b8] sm:$0xf]
        %v1108 = vld [vmem:[%s464 + $0x1bc] sm:$0xf]
        %v1109 = vld [vmem:[%s464 + $0x1c0] sm:$0xf]
        %v1110 = vld [vmem:[%s464 + $0x1c4] sm:$0xf]
        %v1111 = vld [vmem:[%s464 + $0x1c8] sm:$0xf]
        %v1112 = vld [vmem:[%s464 + $0x1cc] sm:$0xf]
        %v1113 = vld [vmem:[%s464 + $0x1d0] sm:$0xf]
        %v1114 = vld [vmem:[%s464 + $0x1d4] sm:$0xf]
        %v1115 = vld [vmem:[%s464 + $0x1d8] sm:$0xf]
        %v1116 = vld [vmem:[%s464 + $0x1dc] sm:$0xf]
        %v1117 = vld [vmem:[%s464 + $0x1e0] sm:$0xf]
        %v1118 = vld [vmem:[%s464 + $0x1e4] sm:$0xf]
        %v1119 = vld [vmem:[%s464 + $0x1e8] sm:$0xf]
        %v1120 = vld [vmem:[%s464 + $0x1ec] sm:$0xf]
        %v1121 = vld [vmem:[%s464 + $0x1f0] sm:$0xf]
        %v1122 = vld [vmem:[%s464 + $0x1f4] sm:$0xf]
        %v1123 = vld [vmem:[%s464 + $0x1f8] sm:$0xf]
        %v1124 = vld [vmem:[%s464 + $0x1fc] sm:$0xf]
        %v1253 = vunpack.c.l.b16 %v997
        %v1254 = vunpack.c.l.b16 %v998
        %v1255 = vunpack.c.l.b16 %v999
        %v1256 = vunpack.c.l.b16 %v1000
        %v1257 = vunpack.c.l.b16 %v1001
        %v1258 = vunpack.c.l.b16 %v1002
        %v1259 = vunpack.c.l.b16 %v1003
        %v1260 = vunpack.c.l.b16 %v1004
        %v1261 = vunpack.c.l.b16 %v1005
        %v1262 = vunpack.c.l.b16 %v1006
        %v1263 = vunpack.c.l.b16 %v1007
        %v1264 = vunpack.c.l.b16 %v1008
        %v1265 = vunpack.c.l.b16 %v1009
        %v1266 = vunpack.c.l.b16 %v1010
        %v1267 = vunpack.c.l.b16 %v1011
        %v1268 = vunpack.c.l.b16 %v1012
        %v1269 = vunpack.c.l.b16 %v1013
        %v1270 = vunpack.c.l.b16 %v1014
        %v1271 = vunpack.c.l.b16 %v1015
        %v1272 = vunpack.c.l.b16 %v1016
        %v1273 = vunpack.c.l.b16 %v1017
        %v1274 = vunpack.c.l.b16 %v1018
        %v1275 = vunpack.c.l.b16 %v1019
        %v1276 = vunpack.c.l.b16 %v1020
        %v1277 = vunpack.c.l.b16 %v1021
        %v1278 = vunpack.c.l.b16 %v1022
        %v1279 = vunpack.c.l.b16 %v1023
        %v1280 = vunpack.c.l.b16 %v1024
        %v1281 = vunpack.c.l.b16 %v1025
        %v1282 = vunpack.c.l.b16 %v1026
        %v1283 = vunpack.c.l.b16 %v1027
        %v1284 = vunpack.c.l.b16 %v1028
        %v1285 = vunpack.c.l.b16 %v1029
        %v1286 = vunpack.c.l.b16 %v1030
        %v1287 = vunpack.c.l.b16 %v1031
        %v1288 = vunpack.c.l.b16 %v1032
        %v1289 = vunpack.c.l.b16 %v1033
        %v1290 = vunpack.c.l.b16 %v1034
        %v1291 = vunpack.c.l.b16 %v1035
        %v1292 = vunpack.c.l.b16 %v1036
        %v1293 = vunpack.c.l.b16 %v1037
        %v1294 = vunpack.c.l.b16 %v1038
        %v1295 = vunpack.c.l.b16 %v1039
        %v1296 = vunpack.c.l.b16 %v1040
        %v1297 = vunpack.c.l.b16 %v1041
        %v1298 = vunpack.c.l.b16 %v1042
        %v1299 = vunpack.c.l.b16 %v1043
        %v1300 = vunpack.c.l.b16 %v1044
        %v1301 = vunpack.c.l.b16 %v1045
        %v1302 = vunpack.c.l.b16 %v1046
        %v1303 = vunpack.c.l.b16 %v1047
        %v1304 = vunpack.c.l.b16 %v1048
        %v1305 = vunpack.c.l.b16 %v1049
        %v1306 = vunpack.c.l.b16 %v1050
        %v1307 = vunpack.c.l.b16 %v1051
        %v1308 = vunpack.c.l.b16 %v1052
        %v1309 = vunpack.c.l.b16 %v1053
        %v1310 = vunpack.c.l.b16 %v1054
        %v1311 = vunpack.c.l.b16 %v1055
        %v1312 = vunpack.c.l.b16 %v1056
        %v1313 = vunpack.c.l.b16 %v1057
        %v1314 = vunpack.c.l.b16 %v1058
        %v1315 = vunpack.c.l.b16 %v1059
        %v1316 = vunpack.c.l.b16 %v1060
        %v1317 = vunpack.c.l.b16 %v1061
        %v1318 = vunpack.c.l.b16 %v1062
        %v1319 = vunpack.c.l.b16 %v1063
        %v1320 = vunpack.c.l.b16 %v1064
        %v1321 = vunpack.c.l.b16 %v1065
        %v1322 = vunpack.c.l.b16 %v1066
        %v1323 = vunpack.c.l.b16 %v1067
        %v1324 = vunpack.c.l.b16 %v1068
        %v1325 = vunpack.c.l.b16 %v1069
        %v1326 = vunpack.c.l.b16 %v1070
        %v1327 = vunpack.c.l.b16 %v1071
        %v1328 = vunpack.c.l.b16 %v1072
        %v1329 = vunpack.c.l.b16 %v1073
        %v1330 = vunpack.c.l.b16 %v1074
        %v1331 = vunpack.c.l.b16 %v1075
        %v1332 = vunpack.c.l.b16 %v1076
        %v1333 = vunpack.c.l.b16 %v1077
        %v1334 = vunpack.c.l.b16 %v1078
        %v1335 = vunpack.c.l.b16 %v1079
        %v1336 = vunpack.c.l.b16 %v1080
        %v1337 = vunpack.c.l.b16 %v1081
        %v1338 = vunpack.c.l.b16 %v1082
        %v1339 = vunpack.c.l.b16 %v1083
        %v1340 = vunpack.c.l.b16 %v1084
        %v1341 = vunpack.c.l.b16 %v1085
        %v1342 = vunpack.c.l.b16 %v1086
        %v1343 = vunpack.c.l.b16 %v1087
        %v1344 = vunpack.c.l.b16 %v1088
        %v1345 = vunpack.c.l.b16 %v1089
        %v1346 = vunpack.c.l.b16 %v1090
        %v1347 = vunpack.c.l.b16 %v1091
        %v1348 = vunpack.c.l.b16 %v1092
        %v1349 = vunpack.c.l.b16 %v1093
        %v1350 = vunpack.c.l.b16 %v1094
        %v1351 = vunpack.c.l.b16 %v1095
        %v1352 = vunpack.c.l.b16 %v1096
        %v1353 = vunpack.c.l.b16 %v1097
        %v1354 = vunpack.c.l.b16 %v1098
        %v1355 = vunpack.c.l.b16 %v1099
        %v1356 = vunpack.c.l.b16 %v1100
        %v1357 = vunpack.c.l.b16 %v1101
        %v1358 = vunpack.c.l.b16 %v1102
        %v1359 = vunpack.c.l.b16 %v1103
        %v1360 = vunpack.c.l.b16 %v1104
        %v1361 = vunpack.c.l.b16 %v1105
        %v1362 = vunpack.c.l.b16 %v1106
        %v1363 = vunpack.c.l.b16 %v1107
        %v1364 = vunpack.c.l.b16 %v1108
        %v1365 = vunpack.c.l.b16 %v1109
        %v1366 = vunpack.c.l.b16 %v1110
        %v1367 = vunpack.c.l.b16 %v1111
        %v1368 = vunpack.c.l.b16 %v1112
        %v1369 = vunpack.c.l.b16 %v1113
        %v1370 = vunpack.c.l.b16 %v1114
        %v1371 = vunpack.c.l.b16 %v1115
        %v1372 = vunpack.c.l.b16 %v1116
        %v1373 = vunpack.c.l.b16 %v1117
        %v1374 = vunpack.c.l.b16 %v1118
        %v1375 = vunpack.c.l.b16 %v1119
        %v1376 = vunpack.c.l.b16 %v1120
        %v1377 = vunpack.c.l.b16 %v1121
        %v1378 = vunpack.c.l.b16 %v1122
        %v1379 = vunpack.c.l.b16 %v1123
        %v1380 = vunpack.c.l.b16 %v1124
        %v1381 = vpack.c.b16 %v1254, %v1253
        %v1382 = vpack.c.b16 %v1256, %v1255
        %v1383 = vpack.c.b16 %v1258, %v1257
        %v1384 = vpack.c.b16 %v1260, %v1259
        %v1385 = vpack.c.b16 %v1262, %v1261
        %v1386 = vpack.c.b16 %v1264, %v1263
        %v1387 = vpack.c.b16 %v1266, %v1265
        %v1388 = vpack.c.b16 %v1268, %v1267
        %v1389 = vpack.c.b16 %v1270, %v1269
        %v1390 = vpack.c.b16 %v1272, %v1271
        %v1391 = vpack.c.b16 %v1274, %v1273
        %v1392 = vpack.c.b16 %v1276, %v1275
        %v1393 = vpack.c.b16 %v1278, %v1277
        %v1394 = vpack.c.b16 %v1280, %v1279
        %v1395 = vpack.c.b16 %v1282, %v1281
        %v1396 = vpack.c.b16 %v1284, %v1283
        %v1397 = vpack.c.b16 %v1286, %v1285
        %v1398 = vpack.c.b16 %v1288, %v1287
        %v1399 = vpack.c.b16 %v1290, %v1289
        %v1400 = vpack.c.b16 %v1292, %v1291
        %v1401 = vpack.c.b16 %v1294, %v1293
        %v1402 = vpack.c.b16 %v1296, %v1295
        %v1403 = vpack.c.b16 %v1298, %v1297
        %v1404 = vpack.c.b16 %v1300, %v1299
        %v1405 = vpack.c.b16 %v1302, %v1301
        %v1406 = vpack.c.b16 %v1304, %v1303
        %v1407 = vpack.c.b16 %v1306, %v1305
        %v1408 = vpack.c.b16 %v1308, %v1307
        %v1409 = vpack.c.b16 %v1310, %v1309
        %v1410 = vpack.c.b16 %v1312, %v1311
        %v1411 = vpack.c.b16 %v1314, %v1313
        %v1412 = vpack.c.b16 %v1316, %v1315
        %v1413 = vpack.c.b16 %v1318, %v1317
        %v1414 = vpack.c.b16 %v1320, %v1319
        %v1415 = vpack.c.b16 %v1322, %v1321
        %v1416 = vpack.c.b16 %v1324, %v1323
        %v1417 = vpack.c.b16 %v1326, %v1325
        %v1418 = vpack.c.b16 %v1328, %v1327
        %v1419 = vpack.c.b16 %v1330, %v1329
        %v1420 = vpack.c.b16 %v1332, %v1331
        %v1421 = vpack.c.b16 %v1334, %v1333
        %v1422 = vpack.c.b16 %v1336, %v1335
        %v1423 = vpack.c.b16 %v1338, %v1337
        %v1424 = vpack.c.b16 %v1340, %v1339
        %v1425 = vpack.c.b16 %v1342, %v1341
        %v1426 = vpack.c.b16 %v1344, %v1343
        %v1427 = vpack.c.b16 %v1346, %v1345
        %v1428 = vpack.c.b16 %v1348, %v1347
        %v1429 = vpack.c.b16 %v1350, %v1349
        %v1430 = vpack.c.b16 %v1352, %v1351
        %v1431 = vpack.c.b16 %v1354, %v1353
        %v1432 = vpack.c.b16 %v1356, %v1355
        %v1433 = vpack.c.b16 %v1358, %v1357
        %v1434 = vpack.c.b16 %v1360, %v1359
        %v1435 = vpack.c.b16 %v1362, %v1361
        %v1436 = vpack.c.b16 %v1364, %v1363
        %v1437 = vpack.c.b16 %v1366, %v1365
        %v1438 = vpack.c.b16 %v1368, %v1367
        %v1439 = vpack.c.b16 %v1370, %v1369
        %v1440 = vpack.c.b16 %v1372, %v1371
        %v1441 = vpack.c.b16 %v1374, %v1373
        %v1442 = vpack.c.b16 %v1376, %v1375
        %v1443 = vpack.c.b16 %v1378, %v1377
        %v1444 = vpack.c.b16 %v1380, %v1379
        %1509 = vmatprep.subr.bf16.mxu0 0
        %1510 = vmatpush1.bf16.msra.mxu0 %v1388
        %1511 = vmatprep.subr.bf16.mxu0 0
        %1512 = vmatpush1.bf16.msra.mxu0 %v1387
        %1513 = vmatprep.subr.bf16.mxu0 0
        %1514 = vmatpush1.bf16.msra.mxu0 %v1386
        %1515 = vmatprep.subr.bf16.mxu0 0
        %1516 = vmatpush1.bf16.msra.mxu0 %v1385
        %1517 = vmatprep.subr.bf16.mxu0 0
        %1518 = vmatpush1.bf16.msra.mxu0 %v1384
        %1519 = vmatprep.subr.bf16.mxu0 0
        %1520 = vmatpush1.bf16.msra.mxu0 %v1383
        %1521 = vmatprep.subr.bf16.mxu0 0
        %1522 = vmatpush1.bf16.msra.mxu0 %v1382
        %1523 = vmatprep.subr.bf16.mxu0 0
        %1524 = vmatpush1.bf16.msra.mxu0 %v1381
        %1525 = vmatprep.subr.bf16.mxu0 0
        %1526 = vmatpush2.bf16.msra.mxu0 %v1396
        %1527 = vmatprep.subr.bf16.mxu0 0
        %1528 = vmatpush2.bf16.msra.mxu0 %v1395
        %1529 = vmatprep.subr.bf16.mxu0 0
        %1530 = vmatpush2.bf16.msra.mxu0 %v1394
        %1531 = vmatprep.subr.bf16.mxu0 0
        %1532 = vmatpush2.bf16.msra.mxu0 %v1393
        %1533 = vmatprep.subr.bf16.mxu0 0
        %1534 = vmatpush2.bf16.msra.mxu0 %v1392
        %1535 = vmatprep.subr.bf16.mxu0 0
        %1536 = vmatpush2.bf16.msra.mxu0 %v1391
        %1537 = vmatprep.subr.bf16.mxu0 0
        %1538 = vmatpush2.bf16.msra.mxu0 %v1390
        %1539 = vmatprep.subr.bf16.mxu0 0
        %1540 = vmatpush2.bf16.msra.mxu0 %v1389
        %1541 = vmatprep.mubr.bf16.mxu0 %v678
        %1542 = vmatmul.mubr.bf16.gmra.mxu0 %v677
        %v1543 = vpop.f32.mrf.mxu0
        %v1544 = vadd.f32 0.0, %v1543
        %v1545 = vpop.f32.mrf.mxu0
        %v1546 = vpop.f32.mrf.mxu0
        %v1547 = vadd.f32 0.0, %v1546
        %v1548 = vpop.f32.mrf.mxu0
        %1549 = vmatprep.mubr.bf16.mxu0 %v686
        %1550 = vmatmul.mubr.bf16.gmra.mxu0 %v685
        %v1551 = vpop.f32.mrf.mxu0
        %v1552 = vadd.f32 0.0, %v1551
        %v1553 = vpop.f32.mrf.mxu0
        %v1554 = vpop.f32.mrf.mxu0
        %v1555 = vadd.f32 0.0, %v1554
        %v1556 = vpop.f32.mrf.mxu0
        %1557 = vmatprep.mubr.bf16.mxu0 %v694
        %1558 = vmatmul.mubr.bf16.gmra.mxu0 %v693
        %v1559 = vpop.f32.mrf.mxu0
        %v1560 = vadd.f32 0.0, %v1559
        %v1561 = vpop.f32.mrf.mxu0
        %v1562 = vpop.f32.mrf.mxu0
        %v1563 = vadd.f32 0.0, %v1562
        %v1564 = vpop.f32.mrf.mxu0
        %1565 = vmatprep.mubr.bf16.mxu0 %v702
        %1566 = vmatmul.mubr.bf16.gmra.mxu0 %v701
        %v1567 = vpop.f32.mrf.mxu0
        %v1568 = vadd.f32 0.0, %v1567
        %v1569 = vpop.f32.mrf.mxu0
        %v1570 = vpop.f32.mrf.mxu0
        %v1571 = vadd.f32 0.0, %v1570
        %v1572 = vpop.f32.mrf.mxu0
        %1573 = vmatprep.mubr.bf16.mxu0 %v710
        %1574 = vmatmul.mubr.bf16.gmra.mxu0 %v709
        %v1575 = vpop.f32.mrf.mxu0
        %v1576 = vadd.f32 0.0, %v1575
        %v1577 = vpop.f32.mrf.mxu0
        %v1578 = vpop.f32.mrf.mxu0
        %v1579 = vadd.f32 0.0, %v1578
        %v1580 = vpop.f32.mrf.mxu0
        %1581 = vmatprep.mubr.bf16.mxu0 %v718
        %1582 = vmatmul.mubr.bf16.gmra.mxu0 %v717
        %v1583 = vpop.f32.mrf.mxu0
        %v1584 = vadd.f32 0.0, %v1583
        %v1585 = vpop.f32.mrf.mxu0
        %v1586 = vpop.f32.mrf.mxu0
        %v1587 = vadd.f32 0.0, %v1586
        %v1588 = vpop.f32.mrf.mxu0
        %1589 = vmatprep.mubr.bf16.mxu0 %v726
        %1590 = vmatmul.mubr.bf16.gmra.mxu0 %v725
        %v1591 = vpop.f32.mrf.mxu0
        %v1592 = vadd.f32 0.0, %v1591
        %v1593 = vpop.f32.mrf.mxu0
        %v1594 = vpop.f32.mrf.mxu0
        %v1595 = vadd.f32 0.0, %v1594
        %v1596 = vpop.f32.mrf.mxu0
        %1597 = vmatprep.mubr.bf16.mxu0 %v734
        %1598 = vmatmul.mubr.bf16.gmra.mxu0 %v733
        %v1599 = vpop.f32.mrf.mxu0
        %v1600 = vadd.f32 0.0, %v1599
        %v1601 = vpop.f32.mrf.mxu0
        %v1602 = vpop.f32.mrf.mxu0
        %v1603 = vadd.f32 0.0, %v1602
        %v1604 = vpop.f32.mrf.mxu0
        %1605 = vmatprep.mubr.bf16.mxu0 %v742
        %1606 = vmatmul.mubr.bf16.gmra.mxu0 %v741
        %v1607 = vpop.f32.mrf.mxu0
        %v1608 = vadd.f32 0.0, %v1607
        %v1609 = vpop.f32.mrf.mxu0
        %v1610 = vpop.f32.mrf.mxu0
        %v1611 = vadd.f32 0.0, %v1610
        %v1612 = vpop.f32.mrf.mxu0
        %1613 = vmatprep.mubr.bf16.mxu0 %v750
        %1614 = vmatmul.mubr.bf16.gmra.mxu0 %v749
        %v1615 = vpop.f32.mrf.mxu0
        %v1616 = vadd.f32 0.0, %v1615
        %v1617 = vpop.f32.mrf.mxu0
        %v1618 = vpop.f32.mrf.mxu0
        %v1619 = vadd.f32 0.0, %v1618
        %v1620 = vpop.f32.mrf.mxu0
        %1621 = vmatprep.mubr.bf16.mxu0 %v758
        %1622 = vmatmul.mubr.bf16.gmra.mxu0 %v757
        %v1623 = vpop.f32.mrf.mxu0
        %v1624 = vadd.f32 0.0, %v1623
        %v1625 = vpop.f32.mrf.mxu0
        %v1626 = vpop.f32.mrf.mxu0
        %v1627 = vadd.f32 0.0, %v1626
        %v1628 = vpop.f32.mrf.mxu0
        %1629 = vmatprep.mubr.bf16.mxu0 %v766
        %1630 = vmatmul.mubr.bf16.gmra.mxu0 %v765
        %v1631 = vpop.f32.mrf.mxu0
        %v1632 = vadd.f32 0.0, %v1631
        %v1633 = vpop.f32.mrf.mxu0
        %v1634 = vpop.f32.mrf.mxu0
        %v1635 = vadd.f32 0.0, %v1634
        %v1636 = vpop.f32.mrf.mxu0
        %1637 = vmatprep.mubr.bf16.mxu0 %v774
        %1638 = vmatmul.mubr.bf16.gmra.mxu0 %v773
        %v1639 = vpop.f32.mrf.mxu0
        %v1640 = vadd.f32 0.0, %v1639
        %v1641 = vpop.f32.mrf.mxu0
        %v1642 = vpop.f32.mrf.mxu0
        %v1643 = vadd.f32 0.0, %v1642
        %v1644 = vpop.f32.mrf.mxu0
        %1645 = vmatprep.mubr.bf16.mxu0 %v782
        %1646 = vmatmul.mubr.bf16.gmra.mxu0 %v781
        %v1647 = vpop.f32.mrf.mxu0
        %v1648 = vadd.f32 0.0, %v1647
        %v1649 = vpop.f32.mrf.mxu0
        %v1650 = vpop.f32.mrf.mxu0
        %v1651 = vadd.f32 0.0, %v1650
        %v1652 = vpop.f32.mrf.mxu0
        %1653 = vmatprep.mubr.bf16.mxu0 %v790
        %1654 = vmatmul.mubr.bf16.gmra.mxu0 %v789
        %v1655 = vpop.f32.mrf.mxu0
        %v1656 = vadd.f32 0.0, %v1655
        %v1657 = vpop.f32.mrf.mxu0
        %v1658 = vpop.f32.mrf.mxu0
        %v1659 = vadd.f32 0.0, %v1658
        %v1660 = vpop.f32.mrf.mxu0
        %1661 = vmatprep.mubr.bf16.mxu0 %v798
        %1662 = vmatmul.mubr.bf16.gmra.mxu0 %v797
        %v1663 = vpop.f32.mrf.mxu0
        %v1664 = vadd.f32 0.0, %v1663
        %v1665 = vpop.f32.mrf.mxu0
        %v1666 = vpop.f32.mrf.mxu0
        %v1667 = vadd.f32 0.0, %v1666
        %v1668 = vpop.f32.mrf.mxu0
        %1669 = vmatprep.mubr.bf16.mxu0 %v806
        %1670 = vmatmul.mubr.bf16.gmra.mxu0 %v805
        %v1671 = vpop.f32.mrf.mxu0
        %v1672 = vadd.f32 0.0, %v1671
        %v1673 = vpop.f32.mrf.mxu0
        %v1674 = vpop.f32.mrf.mxu0
        %v1675 = vadd.f32 0.0, %v1674
        %v1676 = vpop.f32.mrf.mxu0
        %1677 = vmatprep.mubr.bf16.mxu0 %v814
        %1678 = vmatmul.mubr.bf16.gmra.mxu0 %v813
        %v1679 = vpop.f32.mrf.mxu0
        %v1680 = vadd.f32 0.0, %v1679
        %v1681 = vpop.f32.mrf.mxu0
        %v1682 = vpop.f32.mrf.mxu0
        %v1683 = vadd.f32 0.0, %v1682
        %v1684 = vpop.f32.mrf.mxu0
        %1685 = vmatprep.mubr.bf16.mxu0 %v822
        %1686 = vmatmul.mubr.bf16.gmra.mxu0 %v821
        %v1687 = vpop.f32.mrf.mxu0
        %v1688 = vadd.f32 0.0, %v1687
        %v1689 = vpop.f32.mrf.mxu0
        %v1690 = vpop.f32.mrf.mxu0
        %v1691 = vadd.f32 0.0, %v1690
        %v1692 = vpop.f32.mrf.mxu0
        %1693 = vmatprep.mubr.bf16.mxu0 %v830
        %1694 = vmatmul.mubr.bf16.gmra.mxu0 %v829
        %v1695 = vpop.f32.mrf.mxu0
        %v1696 = vadd.f32 0.0, %v1695
        %v1697 = vpop.f32.mrf.mxu0
        %v1698 = vpop.f32.mrf.mxu0
        %v1699 = vadd.f32 0.0, %v1698
        %v1700 = vpop.f32.mrf.mxu0
        %1701 = vmatprep.mubr.bf16.mxu0 %v838
        %1702 = vmatmul.mubr.bf16.gmra.mxu0 %v837
        %v1703 = vpop.f32.mrf.mxu0
        %v1704 = vadd.f32 0.0, %v1703
        %v1705 = vpop.f32.mrf.mxu0
        %v1706 = vpop.f32.mrf.mxu0
        %v1707 = vadd.f32 0.0, %v1706
        %v1708 = vpop.f32.mrf.mxu0
        %1709 = vmatprep.mubr.bf16.mxu0 %v846
        %1710 = vmatmul.mubr.bf16.gmra.mxu0 %v845
        %v1711 = vpop.f32.mrf.mxu0
        %v1712 = vadd.f32 0.0, %v1711
        %v1713 = vpop.f32.mrf.mxu0
        %v1714 = vpop.f32.mrf.mxu0
        %v1715 = vadd.f32 0.0, %v1714
        %v1716 = vpop.f32.mrf.mxu0
        %1717 = vmatprep.mubr.bf16.mxu0 %v854
        %1718 = vmatmul.mubr.bf16.gmra.mxu0 %v853
        %v1719 = vpop.f32.mrf.mxu0
        %v1720 = vadd.f32 0.0, %v1719
        %v1721 = vpop.f32.mrf.mxu0
        %v1722 = vpop.f32.mrf.mxu0
        %v1723 = vadd.f32 0.0, %v1722
        %v1724 = vpop.f32.mrf.mxu0
        %1725 = vmatprep.mubr.bf16.mxu0 %v862
        %1726 = vmatmul.mubr.bf16.gmra.mxu0 %v861
        %v1727 = vpop.f32.mrf.mxu0
        %v1728 = vadd.f32 0.0, %v1727
        %v1729 = vpop.f32.mrf.mxu0
        %v1730 = vpop.f32.mrf.mxu0
        %v1731 = vadd.f32 0.0, %v1730
        %v1732 = vpop.f32.mrf.mxu0
        %1733 = vmatprep.mubr.bf16.mxu0 %v870
        %1734 = vmatmul.mubr.bf16.gmra.mxu0 %v869
        %v1735 = vpop.f32.mrf.mxu0
        %v1736 = vadd.f32 0.0, %v1735
        %v1737 = vpop.f32.mrf.mxu0
        %v1738 = vpop.f32.mrf.mxu0
        %v1739 = vadd.f32 0.0, %v1738
        %v1740 = vpop.f32.mrf.mxu0
        %1741 = vmatprep.mubr.bf16.mxu0 %v878
        %1742 = vmatmul.mubr.bf16.gmra.mxu0 %v877
        %v1743 = vpop.f32.mrf.mxu0
        %v1744 = vadd.f32 0.0, %v1743
        %v1745 = vpop.f32.mrf.mxu0
        %v1746 = vpop.f32.mrf.mxu0
        %v1747 = vadd.f32 0.0, %v1746
        %v1748 = vpop.f32.mrf.mxu0
        %1749 = vmatprep.mubr.bf16.mxu0 %v886
        %1750 = vmatmul.mubr.bf16.gmra.mxu0 %v885
        %v1751 = vpop.f32.mrf.mxu0
        %v1752 = vadd.f32 0.0, %v1751
        %v1753 = vpop.f32.mrf.mxu0
        %v1754 = vpop.f32.mrf.mxu0
        %v1755 = vadd.f32 0.0, %v1754
        %v1756 = vpop.f32.mrf.mxu0
        %1757 = vmatprep.mubr.bf16.mxu0 %v894
        %1758 = vmatmul.mubr.bf16.gmra.mxu0 %v893
        %v1759 = vpop.f32.mrf.mxu0
        %v1760 = vadd.f32 0.0, %v1759
        %v1761 = vpop.f32.mrf.mxu0
        %v1762 = vpop.f32.mrf.mxu0
        %v1763 = vadd.f32 0.0, %v1762
        %v1764 = vpop.f32.mrf.mxu0
        %1765 = vmatprep.mubr.bf16.mxu0 %v902
        %1766 = vmatmul.mubr.bf16.gmra.mxu0 %v901
        %v1767 = vpop.f32.mrf.mxu0
        %v1768 = vadd.f32 0.0, %v1767
        %v1769 = vpop.f32.mrf.mxu0
        %v1770 = vpop.f32.mrf.mxu0
        %v1771 = vadd.f32 0.0, %v1770
        %v1772 = vpop.f32.mrf.mxu0
        %1773 = vmatprep.mubr.bf16.mxu0 %v910
        %1774 = vmatmul.mubr.bf16.gmra.mxu0 %v909
        %v1775 = vpop.f32.mrf.mxu0
        %v1776 = vadd.f32 0.0, %v1775
        %v1777 = vpop.f32.mrf.mxu0
        %v1778 = vpop.f32.mrf.mxu0
        %v1779 = vadd.f32 0.0, %v1778
        %v1780 = vpop.f32.mrf.mxu0
        %1781 = vmatprep.mubr.bf16.mxu0 %v918
        %1782 = vmatmul.mubr.bf16.gmra.mxu0 %v917
        %v1783 = vpop.f32.mrf.mxu0
        %v1784 = vadd.f32 0.0, %v1783
        %v1785 = vpop.f32.mrf.mxu0
        %v1786 = vpop.f32.mrf.mxu0
        %v1787 = vadd.f32 0.0, %v1786
        %v1788 = vpop.f32.mrf.mxu0
        %1789 = vmatprep.mubr.bf16.mxu0 %v926
        %1790 = vmatmul.mubr.bf16.gmra.mxu0 %v925
        %v1791 = vpop.f32.mrf.mxu0
        %v1792 = vadd.f32 0.0, %v1791
        %v1793 = vpop.f32.mrf.mxu0
        %v1794 = vpop.f32.mrf.mxu0
        %v1795 = vadd.f32 0.0, %v1794
        %v1796 = vpop.f32.mrf.mxu0
        %1797 = vdwg.mxu0
        %1798 = vmatprep.subr.bf16.mxu0 0
        %1799 = vmatpush1.bf16.msra.mxu0 %v1404
        %1800 = vmatprep.subr.bf16.mxu0 0
        %1801 = vmatpush1.bf16.msra.mxu0 %v1403
        %1802 = vmatprep.subr.bf16.mxu0 0
        %1803 = vmatpush1.bf16.msra.mxu0 %v1402
        %1804 = vmatprep.subr.bf16.mxu0 0
        %1805 = vmatpush1.bf16.msra.mxu0 %v1401
        %1806 = vmatprep.subr.bf16.mxu0 0
        %1807 = vmatpush1.bf16.msra.mxu0 %v1400
        %1808 = vmatprep.subr.bf16.mxu0 0
        %1809 = vmatpush1.bf16.msra.mxu0 %v1399
        %1810 = vmatprep.subr.bf16.mxu0 0
        %1811 = vmatpush1.bf16.msra.mxu0 %v1398
        %1812 = vmatprep.subr.bf16.mxu0 0
        %1813 = vmatpush1.bf16.msra.mxu0 %v1397
        %1814 = vmatprep.subr.bf16.mxu0 0
        %1815 = vmatpush2.bf16.msra.mxu0 %v1412
        %1816 = vmatprep.subr.bf16.mxu0 0
        %1817 = vmatpush2.bf16.msra.mxu0 %v1411
        %1818 = vmatprep.subr.bf16.mxu0 0
        %1819 = vmatpush2.bf16.msra.mxu0 %v1410
        %1820 = vmatprep.subr.bf16.mxu0 0
        %1821 = vmatpush2.bf16.msra.mxu0 %v1409
        %1822 = vmatprep.subr.bf16.mxu0 0
        %1823 = vmatpush2.bf16.msra.mxu0 %v1408
        %1824 = vmatprep.subr.bf16.mxu0 0
        %1825 = vmatpush2.bf16.msra.mxu0 %v1407
        %1826 = vmatprep.subr.bf16.mxu0 0
        %1827 = vmatpush2.bf16.msra.mxu0 %v1406
        %1828 = vmatprep.subr.bf16.mxu0 0
        %1829 = vmatpush2.bf16.msra.mxu0 %v1405
        %1830 = vmatprep.mubr.bf16.mxu0 %v680
        %1831 = vmatmul.mubr.bf16.gmra.mxu0 %v679
        %v1832 = vpop.f32.mrf.mxu0
        %v1833 = vadd.f32 %v1544, %v1832
        %v1834 = vpop.f32.mrf.mxu0
        %v1835 = vpop.f32.mrf.mxu0
        %v1836 = vadd.f32 %v1547, %v1835
        %v1837 = vpop.f32.mrf.mxu0
        %1838 = vmatprep.mubr.bf16.mxu0 %v688
        %1839 = vmatmul.mubr.bf16.gmra.mxu0 %v687
        %v1840 = vpop.f32.mrf.mxu0
        %v1841 = vadd.f32 %v1552, %v1840
        %v1842 = vpop.f32.mrf.mxu0
        %v1843 = vpop.f32.mrf.mxu0
        %v1844 = vadd.f32 %v1555, %v1843
        %v1845 = vpop.f32.mrf.mxu0
        %1846 = vmatprep.mubr.bf16.mxu0 %v696
        %1847 = vmatmul.mubr.bf16.gmra.mxu0 %v695
        %v1848 = vpop.f32.mrf.mxu0
        %v1849 = vadd.f32 %v1560, %v1848
        %v1850 = vpop.f32.mrf.mxu0
        %v1851 = vpop.f32.mrf.mxu0
        %v1852 = vadd.f32 %v1563, %v1851
        %v1853 = vpop.f32.mrf.mxu0
        %1854 = vmatprep.mubr.bf16.mxu0 %v704
        %1855 = vmatmul.mubr.bf16.gmra.mxu0 %v703
        %v1856 = vpop.f32.mrf.mxu0
        %v1857 = vadd.f32 %v1568, %v1856
        %v1858 = vpop.f32.mrf.mxu0
        %v1859 = vpop.f32.mrf.mxu0
        %v1860 = vadd.f32 %v1571, %v1859
        %v1861 = vpop.f32.mrf.mxu0
        %1862 = vmatprep.mubr.bf16.mxu0 %v712
        %1863 = vmatmul.mubr.bf16.gmra.mxu0 %v711
        %v1864 = vpop.f32.mrf.mxu0
        %v1865 = vadd.f32 %v1576, %v1864
        %v1866 = vpop.f32.mrf.mxu0
        %v1867 = vpop.f32.mrf.mxu0
        %v1868 = vadd.f32 %v1579, %v1867
        %v1869 = vpop.f32.mrf.mxu0
        %1870 = vmatprep.mubr.bf16.mxu0 %v720
        %1871 = vmatmul.mubr.bf16.gmra.mxu0 %v719
        %v1872 = vpop.f32.mrf.mxu0
        %v1873 = vadd.f32 %v1584, %v1872
        %v1874 = vpop.f32.mrf.mxu0
        %v1875 = vpop.f32.mrf.mxu0
        %v1876 = vadd.f32 %v1587, %v1875
        %v1877 = vpop.f32.mrf.mxu0
        %1878 = vmatprep.mubr.bf16.mxu0 %v728
        %1879 = vmatmul.mubr.bf16.gmra.mxu0 %v727
        %v1880 = vpop.f32.mrf.mxu0
        %v1881 = vadd.f32 %v1592, %v1880
        %v1882 = vpop.f32.mrf.mxu0
        %v1883 = vpop.f32.mrf.mxu0
        %v1884 = vadd.f32 %v1595, %v1883
        %v1885 = vpop.f32.mrf.mxu0
        %1886 = vmatprep.mubr.bf16.mxu0 %v736
        %1887 = vmatmul.mubr.bf16.gmra.mxu0 %v735
        %v1888 = vpop.f32.mrf.mxu0
        %v1889 = vadd.f32 %v1600, %v1888
        %v1890 = vpop.f32.mrf.mxu0
        %v1891 = vpop.f32.mrf.mxu0
        %v1892 = vadd.f32 %v1603, %v1891
        %v1893 = vpop.f32.mrf.mxu0
        %1894 = vmatprep.mubr.bf16.mxu0 %v744
        %1895 = vmatmul.mubr.bf16.gmra.mxu0 %v743
        %v1896 = vpop.f32.mrf.mxu0
        %v1897 = vadd.f32 %v1608, %v1896
        %v1898 = vpop.f32.mrf.mxu0
        %v1899 = vpop.f32.mrf.mxu0
        %v1900 = vadd.f32 %v1611, %v1899
        %v1901 = vpop.f32.mrf.mxu0
        %1902 = vmatprep.mubr.bf16.mxu0 %v752
        %1903 = vmatmul.mubr.bf16.gmra.mxu0 %v751
        %v1904 = vpop.f32.mrf.mxu0
        %v1905 = vadd.f32 %v1616, %v1904
        %v1906 = vpop.f32.mrf.mxu0
        %v1907 = vpop.f32.mrf.mxu0
        %v1908 = vadd.f32 %v1619, %v1907
        %v1909 = vpop.f32.mrf.mxu0
        %1910 = vmatprep.mubr.bf16.mxu0 %v760
        %1911 = vmatmul.mubr.bf16.gmra.mxu0 %v759
        %v1912 = vpop.f32.mrf.mxu0
        %v1913 = vadd.f32 %v1624, %v1912
        %v1914 = vpop.f32.mrf.mxu0
        %v1915 = vpop.f32.mrf.mxu0
        %v1916 = vadd.f32 %v1627, %v1915
        %v1917 = vpop.f32.mrf.mxu0
        %1918 = vmatprep.mubr.bf16.mxu0 %v768
        %1919 = vmatmul.mubr.bf16.gmra.mxu0 %v767
        %v1920 = vpop.f32.mrf.mxu0
        %v1921 = vadd.f32 %v1632, %v1920
        %v1922 = vpop.f32.mrf.mxu0
        %v1923 = vpop.f32.mrf.mxu0
        %v1924 = vadd.f32 %v1635, %v1923
        %v1925 = vpop.f32.mrf.mxu0
        %1926 = vmatprep.mubr.bf16.mxu0 %v776
        %1927 = vmatmul.mubr.bf16.gmra.mxu0 %v775
        %v1928 = vpop.f32.mrf.mxu0
        %v1929 = vadd.f32 %v1640, %v1928
        %v1930 = vpop.f32.mrf.mxu0
        %v1931 = vpop.f32.mrf.mxu0
        %v1932 = vadd.f32 %v1643, %v1931
        %v1933 = vpop.f32.mrf.mxu0
        %1934 = vmatprep.mubr.bf16.mxu0 %v784
        %1935 = vmatmul.mubr.bf16.gmra.mxu0 %v783
        %v1936 = vpop.f32.mrf.mxu0
        %v1937 = vadd.f32 %v1648, %v1936
        %v1938 = vpop.f32.mrf.mxu0
        %v1939 = vpop.f32.mrf.mxu0
        %v1940 = vadd.f32 %v1651, %v1939
        %v1941 = vpop.f32.mrf.mxu0
        %1942 = vmatprep.mubr.bf16.mxu0 %v792
        %1943 = vmatmul.mubr.bf16.gmra.mxu0 %v791
        %v1944 = vpop.f32.mrf.mxu0
        %v1945 = vadd.f32 %v1656, %v1944
        %v1946 = vpop.f32.mrf.mxu0
        %v1947 = vpop.f32.mrf.mxu0
        %v1948 = vadd.f32 %v1659, %v1947
        %v1949 = vpop.f32.mrf.mxu0
        %1950 = vmatprep.mubr.bf16.mxu0 %v800
        %1951 = vmatmul.mubr.bf16.gmra.mxu0 %v799
        %v1952 = vpop.f32.mrf.mxu0
        %v1953 = vadd.f32 %v1664, %v1952
        %v1954 = vpop.f32.mrf.mxu0
        %v1955 = vpop.f32.mrf.mxu0
        %v1956 = vadd.f32 %v1667, %v1955
        %v1957 = vpop.f32.mrf.mxu0
        %1958 = vmatprep.mubr.bf16.mxu0 %v808
        %1959 = vmatmul.mubr.bf16.gmra.mxu0 %v807
        %v1960 = vpop.f32.mrf.mxu0
        %v1961 = vadd.f32 %v1672, %v1960
        %v1962 = vpop.f32.mrf.mxu0
        %v1963 = vpop.f32.mrf.mxu0
        %v1964 = vadd.f32 %v1675, %v1963
        %v1965 = vpop.f32.mrf.mxu0
        %1966 = vmatprep.mubr.bf16.mxu0 %v816
        %1967 = vmatmul.mubr.bf16.gmra.mxu0 %v815
        %v1968 = vpop.f32.mrf.mxu0
        %v1969 = vadd.f32 %v1680, %v1968
        %v1970 = vpop.f32.mrf.mxu0
        %v1971 = vpop.f32.mrf.mxu0
        %v1972 = vadd.f32 %v1683, %v1971
        %v1973 = vpop.f32.mrf.mxu0
        %1974 = vmatprep.mubr.bf16.mxu0 %v824
        %1975 = vmatmul.mubr.bf16.gmra.mxu0 %v823
        %v1976 = vpop.f32.mrf.mxu0
        %v1977 = vadd.f32 %v1688, %v1976
        %v1978 = vpop.f32.mrf.mxu0
        %v1979 = vpop.f32.mrf.mxu0
        %v1980 = vadd.f32 %v1691, %v1979
        %v1981 = vpop.f32.mrf.mxu0
        %1982 = vmatprep.mubr.bf16.mxu0 %v832
        %1983 = vmatmul.mubr.bf16.gmra.mxu0 %v831
        %v1984 = vpop.f32.mrf.mxu0
        %v1985 = vadd.f32 %v1696, %v1984
        %v1986 = vpop.f32.mrf.mxu0
        %v1987 = vpop.f32.mrf.mxu0
        %v1988 = vadd.f32 %v1699, %v1987
        %v1989 = vpop.f32.mrf.mxu0
        %1990 = vmatprep.mubr.bf16.mxu0 %v840
        %1991 = vmatmul.mubr.bf16.gmra.mxu0 %v839
        %v1992 = vpop.f32.mrf.mxu0
        %v1993 = vadd.f32 %v1704, %v1992
        %v1994 = vpop.f32.mrf.mxu0
        %v1995 = vpop.f32.mrf.mxu0
        %v1996 = vadd.f32 %v1707, %v1995
        %v1997 = vpop.f32.mrf.mxu0
        %1998 = vmatprep.mubr.bf16.mxu0 %v848
        %1999 = vmatmul.mubr.bf16.gmra.mxu0 %v847
        %v2000 = vpop.f32.mrf.mxu0
        %v2001 = vadd.f32 %v1712, %v2000
        %v2002 = vpop.f32.mrf.mxu0
        %v2003 = vpop.f32.mrf.mxu0
        %v2004 = vadd.f32 %v1715, %v2003
        %v2005 = vpop.f32.mrf.mxu0
        %2006 = vmatprep.mubr.bf16.mxu0 %v856
        %2007 = vmatmul.mubr.bf16.gmra.mxu0 %v855
        %v2008 = vpop.f32.mrf.mxu0
        %v2009 = vadd.f32 %v1720, %v2008
        %v2010 = vpop.f32.mrf.mxu0
        %v2011 = vpop.f32.mrf.mxu0
        %v2012 = vadd.f32 %v1723, %v2011
        %v2013 = vpop.f32.mrf.mxu0
        %2014 = vmatprep.mubr.bf16.mxu0 %v864
        %2015 = vmatmul.mubr.bf16.gmra.mxu0 %v863
        %v2016 = vpop.f32.mrf.mxu0
        %v2017 = vadd.f32 %v1728, %v2016
        %v2018 = vpop.f32.mrf.mxu0
        %v2019 = vpop.f32.mrf.mxu0
        %v2020 = vadd.f32 %v1731, %v2019
        %v2021 = vpop.f32.mrf.mxu0
        %2022 = vmatprep.mubr.bf16.mxu0 %v872
        %2023 = vmatmul.mubr.bf16.gmra.mxu0 %v871
        %v2024 = vpop.f32.mrf.mxu0
        %v2025 = vadd.f32 %v1736, %v2024
        %v2026 = vpop.f32.mrf.mxu0
        %v2027 = vpop.f32.mrf.mxu0
        %v2028 = vadd.f32 %v1739, %v2027
        %v2029 = vpop.f32.mrf.mxu0
        %2030 = vmatprep.mubr.bf16.mxu0 %v880
        %2031 = vmatmul.mubr.bf16.gmra.mxu0 %v879
        %v2032 = vpop.f32.mrf.mxu0
        %v2033 = vadd.f32 %v1744, %v2032
        %v2034 = vpop.f32.mrf.mxu0
        %v2035 = vpop.f32.mrf.mxu0
        %v2036 = vadd.f32 %v1747, %v2035
        %v2037 = vpop.f32.mrf.mxu0
        %2038 = vmatprep.mubr.bf16.mxu0 %v888
        %2039 = vmatmul.mubr.bf16.gmra.mxu0 %v887
        %v2040 = vpop.f32.mrf.mxu0
        %v2041 = vadd.f32 %v1752, %v2040
        %v2042 = vpop.f32.mrf.mxu0
        %v2043 = vpop.f32.mrf.mxu0
        %v2044 = vadd.f32 %v1755, %v2043
        %v2045 = vpop.f32.mrf.mxu0
        %2046 = vmatprep.mubr.bf16.mxu0 %v896
        %2047 = vmatmul.mubr.bf16.gmra.mxu0 %v895
        %v2048 = vpop.f32.mrf.mxu0
        %v2049 = vadd.f32 %v1760, %v2048
        %v2050 = vpop.f32.mrf.mxu0
        %v2051 = vpop.f32.mrf.mxu0
        %v2052 = vadd.f32 %v1763, %v2051
        %v2053 = vpop.f32.mrf.mxu0
        %2054 = vmatprep.mubr.bf16.mxu0 %v904
        %2055 = vmatmul.mubr.bf16.gmra.mxu0 %v903
        %v2056 = vpop.f32.mrf.mxu0
        %v2057 = vadd.f32 %v1768, %v2056
        %v2058 = vpop.f32.mrf.mxu0
        %v2059 = vpop.f32.mrf.mxu0
        %v2060 = vadd.f32 %v1771, %v2059
        %v2061 = vpop.f32.mrf.mxu0
        %2062 = vmatprep.mubr.bf16.mxu0 %v912
        %2063 = vmatmul.mubr.bf16.gmra.mxu0 %v911
        %v2064 = vpop.f32.mrf.mxu0
        %v2065 = vadd.f32 %v1776, %v2064
        %v2066 = vpop.f32.mrf.mxu0
        %v2067 = vpop.f32.mrf.mxu0
        %v2068 = vadd.f32 %v1779, %v2067
        %v2069 = vpop.f32.mrf.mxu0
        %2070 = vmatprep.mubr.bf16.mxu0 %v920
        %2071 = vmatmul.mubr.bf16.gmra.mxu0 %v919
        %v2072 = vpop.f32.mrf.mxu0
        %v2073 = vadd.f32 %v1784, %v2072
        %v2074 = vpop.f32.mrf.mxu0
        %v2075 = vpop.f32.mrf.mxu0
        %v2076 = vadd.f32 %v1787, %v2075
        %v2077 = vpop.f32.mrf.mxu0
        %2078 = vmatprep.mubr.bf16.mxu0 %v928
        %2079 = vmatmul.mubr.bf16.gmra.mxu0 %v927
        %v2080 = vpop.f32.mrf.mxu0
        %v2081 = vadd.f32 %v1792, %v2080
        %v2082 = vpop.f32.mrf.mxu0
        %v2083 = vpop.f32.mrf.mxu0
        %v2084 = vadd.f32 %v1795, %v2083
        %v2085 = vpop.f32.mrf.mxu0
        %2086 = vdwg.mxu0
        %2087 = vmatprep.subr.bf16.mxu0 0
        %2088 = vmatpush1.bf16.msra.mxu0 %v1420
        %2089 = vmatprep.subr.bf16.mxu0 0
        %2090 = vmatpush1.bf16.msra.mxu0 %v1419
        %2091 = vmatprep.subr.bf16.mxu0 0
        %2092 = vmatpush1.bf16.msra.mxu0 %v1418
        %2093 = vmatprep.subr.bf16.mxu0 0
        %2094 = vmatpush1.bf16.msra.mxu0 %v1417
        %2095 = vmatprep.subr.bf16.mxu0 0
        %2096 = vmatpush1.bf16.msra.mxu0 %v1416
        %2097 = vmatprep.subr.bf16.mxu0 0
        %2098 = vmatpush1.bf16.msra.mxu0 %v1415
        %2099 = vmatprep.subr.bf16.mxu0 0
        %2100 = vmatpush1.bf16.msra.mxu0 %v1414
        %2101 = vmatprep.subr.bf16.mxu0 0
        %2102 = vmatpush1.bf16.msra.mxu0 %v1413
        %2103 = vmatprep.subr.bf16.mxu0 0
        %2104 = vmatpush2.bf16.msra.mxu0 %v1428
        %2105 = vmatprep.subr.bf16.mxu0 0
        %2106 = vmatpush2.bf16.msra.mxu0 %v1427
        %2107 = vmatprep.subr.bf16.mxu0 0
        %2108 = vmatpush2.bf16.msra.mxu0 %v1426
        %2109 = vmatprep.subr.bf16.mxu0 0
        %2110 = vmatpush2.bf16.msra.mxu0 %v1425
        %2111 = vmatprep.subr.bf16.mxu0 0
        %2112 = vmatpush2.bf16.msra.mxu0 %v1424
        %2113 = vmatprep.subr.bf16.mxu0 0
        %2114 = vmatpush2.bf16.msra.mxu0 %v1423
        %2115 = vmatprep.subr.bf16.mxu0 0
        %2116 = vmatpush2.bf16.msra.mxu0 %v1422
        %2117 = vmatprep.subr.bf16.mxu0 0
        %2118 = vmatpush2.bf16.msra.mxu0 %v1421
        %2119 = vmatprep.mubr.bf16.mxu0 %v682
        %2120 = vmatmul.mubr.bf16.gmra.mxu0 %v681
        %v2121 = vpop.f32.mrf.mxu0
        %v2122 = vadd.f32 %v1833, %v2121
        %v2123 = vpop.f32.mrf.mxu0
        %v2124 = vpop.f32.mrf.mxu0
        %v2125 = vadd.f32 %v1836, %v2124
        %v2126 = vpop.f32.mrf.mxu0
        %2127 = vmatprep.mubr.bf16.mxu0 %v690
        %2128 = vmatmul.mubr.bf16.gmra.mxu0 %v689
        %v2129 = vpop.f32.mrf.mxu0
        %v2130 = vadd.f32 %v1841, %v2129
        %v2131 = vpop.f32.mrf.mxu0
        %v2132 = vpop.f32.mrf.mxu0
        %v2133 = vadd.f32 %v1844, %v2132
        %v2134 = vpop.f32.mrf.mxu0
        %2135 = vmatprep.mubr.bf16.mxu0 %v698
        %2136 = vmatmul.mubr.bf16.gmra.mxu0 %v697
        %v2137 = vpop.f32.mrf.mxu0
        %v2138 = vadd.f32 %v1849, %v2137
        %v2139 = vpop.f32.mrf.mxu0
        %v2140 = vpop.f32.mrf.mxu0
        %v2141 = vadd.f32 %v1852, %v2140
        %v2142 = vpop.f32.mrf.mxu0
        %2143 = vmatprep.mubr.bf16.mxu0 %v706
        %2144 = vmatmul.mubr.bf16.gmra.mxu0 %v705
        %v2145 = vpop.f32.mrf.mxu0
        %v2146 = vadd.f32 %v1857, %v2145
        %v2147 = vpop.f32.mrf.mxu0
        %v2148 = vpop.f32.mrf.mxu0
        %v2149 = vadd.f32 %v1860, %v2148
        %v2150 = vpop.f32.mrf.mxu0
        %2151 = vmatprep.mubr.bf16.mxu0 %v714
        %2152 = vmatmul.mubr.bf16.gmra.mxu0 %v713
        %v2153 = vpop.f32.mrf.mxu0
        %v2154 = vadd.f32 %v1865, %v2153
        %v2155 = vpop.f32.mrf.mxu0
        %v2156 = vpop.f32.mrf.mxu0
        %v2157 = vadd.f32 %v1868, %v2156
        %v2158 = vpop.f32.mrf.mxu0
        %2159 = vmatprep.mubr.bf16.mxu0 %v722
        %2160 = vmatmul.mubr.bf16.gmra.mxu0 %v721
        %v2161 = vpop.f32.mrf.mxu0
        %v2162 = vadd.f32 %v1873, %v2161
        %v2163 = vpop.f32.mrf.mxu0
        %v2164 = vpop.f32.mrf.mxu0
        %v2165 = vadd.f32 %v1876, %v2164
        %v2166 = vpop.f32.mrf.mxu0
        %2167 = vmatprep.mubr.bf16.mxu0 %v730
        %2168 = vmatmul.mubr.bf16.gmra.mxu0 %v729
        %v2169 = vpop.f32.mrf.mxu0
        %v2170 = vadd.f32 %v1881, %v2169
        %v2171 = vpop.f32.mrf.mxu0
        %v2172 = vpop.f32.mrf.mxu0
        %v2173 = vadd.f32 %v1884, %v2172
        %v2174 = vpop.f32.mrf.mxu0
        %2175 = vmatprep.mubr.bf16.mxu0 %v738
        %2176 = vmatmul.mubr.bf16.gmra.mxu0 %v737
        %v2177 = vpop.f32.mrf.mxu0
        %v2178 = vadd.f32 %v1889, %v2177
        %v2179 = vpop.f32.mrf.mxu0
        %v2180 = vpop.f32.mrf.mxu0
        %v2181 = vadd.f32 %v1892, %v2180
        %v2182 = vpop.f32.mrf.mxu0
        %2183 = vmatprep.mubr.bf16.mxu0 %v746
        %2184 = vmatmul.mubr.bf16.gmra.mxu0 %v745
        %v2185 = vpop.f32.mrf.mxu0
        %v2186 = vadd.f32 %v1897, %v2185
        %v2187 = vpop.f32.mrf.mxu0
        %v2188 = vpop.f32.mrf.mxu0
        %v2189 = vadd.f32 %v1900, %v2188
        %v2190 = vpop.f32.mrf.mxu0
        %2191 = vmatprep.mubr.bf16.mxu0 %v754
        %2192 = vmatmul.mubr.bf16.gmra.mxu0 %v753
        %v2193 = vpop.f32.mrf.mxu0
        %v2194 = vadd.f32 %v1905, %v2193
        %v2195 = vpop.f32.mrf.mxu0
        %v2196 = vpop.f32.mrf.mxu0
        %v2197 = vadd.f32 %v1908, %v2196
        %v2198 = vpop.f32.mrf.mxu0
        %2199 = vmatprep.mubr.bf16.mxu0 %v762
        %2200 = vmatmul.mubr.bf16.gmra.mxu0 %v761
        %v2201 = vpop.f32.mrf.mxu0
        %v2202 = vadd.f32 %v1913, %v2201
        %v2203 = vpop.f32.mrf.mxu0
        %v2204 = vpop.f32.mrf.mxu0
        %v2205 = vadd.f32 %v1916, %v2204
        %v2206 = vpop.f32.mrf.mxu0
        %2207 = vmatprep.mubr.bf16.mxu0 %v770
        %2208 = vmatmul.mubr.bf16.gmra.mxu0 %v769
        %v2209 = vpop.f32.mrf.mxu0
        %v2210 = vadd.f32 %v1921, %v2209
        %v2211 = vpop.f32.mrf.mxu0
        %v2212 = vpop.f32.mrf.mxu0
        %v2213 = vadd.f32 %v1924, %v2212
        %v2214 = vpop.f32.mrf.mxu0
        %2215 = vmatprep.mubr.bf16.mxu0 %v778
        %2216 = vmatmul.mubr.bf16.gmra.mxu0 %v777
        %v2217 = vpop.f32.mrf.mxu0
        %v2218 = vadd.f32 %v1929, %v2217
        %v2219 = vpop.f32.mrf.mxu0
        %v2220 = vpop.f32.mrf.mxu0
        %v2221 = vadd.f32 %v1932, %v2220
        %v2222 = vpop.f32.mrf.mxu0
        %2223 = vmatprep.mubr.bf16.mxu0 %v786
        %2224 = vmatmul.mubr.bf16.gmra.mxu0 %v785
        %v2225 = vpop.f32.mrf.mxu0
        %v2226 = vadd.f32 %v1937, %v2225
        %v2227 = vpop.f32.mrf.mxu0
        %v2228 = vpop.f32.mrf.mxu0
        %v2229 = vadd.f32 %v1940, %v2228
        %v2230 = vpop.f32.mrf.mxu0
        %2231 = vmatprep.mubr.bf16.mxu0 %v794
        %2232 = vmatmul.mubr.bf16.gmra.mxu0 %v793
        %v2233 = vpop.f32.mrf.mxu0
        %v2234 = vadd.f32 %v1945, %v2233
        %v2235 = vpop.f32.mrf.mxu0
        %v2236 = vpop.f32.mrf.mxu0
        %v2237 = vadd.f32 %v1948, %v2236
        %v2238 = vpop.f32.mrf.mxu0
        %2239 = vmatprep.mubr.bf16.mxu0 %v802
        %2240 = vmatmul.mubr.bf16.gmra.mxu0 %v801
        %v2241 = vpop.f32.mrf.mxu0
        %v2242 = vadd.f32 %v1953, %v2241
        %v2243 = vpop.f32.mrf.mxu0
        %v2244 = vpop.f32.mrf.mxu0
        %v2245 = vadd.f32 %v1956, %v2244
        %v2246 = vpop.f32.mrf.mxu0
        %2247 = vmatprep.mubr.bf16.mxu0 %v810
        %2248 = vmatmul.mubr.bf16.gmra.mxu0 %v809
        %v2249 = vpop.f32.mrf.mxu0
        %v2250 = vadd.f32 %v1961, %v2249
        %v2251 = vpop.f32.mrf.mxu0
        %v2252 = vpop.f32.mrf.mxu0
        %v2253 = vadd.f32 %v1964, %v2252
        %v2254 = vpop.f32.mrf.mxu0
        %2255 = vmatprep.mubr.bf16.mxu0 %v818
        %2256 = vmatmul.mubr.bf16.gmra.mxu0 %v817
        %v2257 = vpop.f32.mrf.mxu0
        %v2258 = vadd.f32 %v1969, %v2257
        %v2259 = vpop.f32.mrf.mxu0
        %v2260 = vpop.f32.mrf.mxu0
        %v2261 = vadd.f32 %v1972, %v2260
        %v2262 = vpop.f32.mrf.mxu0
        %2263 = vmatprep.mubr.bf16.mxu0 %v826
        %2264 = vmatmul.mubr.bf16.gmra.mxu0 %v825
        %v2265 = vpop.f32.mrf.mxu0
        %v2266 = vadd.f32 %v1977, %v2265
        %v2267 = vpop.f32.mrf.mxu0
        %v2268 = vpop.f32.mrf.mxu0
        %v2269 = vadd.f32 %v1980, %v2268
        %v2270 = vpop.f32.mrf.mxu0
        %2271 = vmatprep.mubr.bf16.mxu0 %v834
        %2272 = vmatmul.mubr.bf16.gmra.mxu0 %v833
        %v2273 = vpop.f32.mrf.mxu0
        %v2274 = vadd.f32 %v1985, %v2273
        %v2275 = vpop.f32.mrf.mxu0
        %v2276 = vpop.f32.mrf.mxu0
        %v2277 = vadd.f32 %v1988, %v2276
        %v2278 = vpop.f32.mrf.mxu0
        %2279 = vmatprep.mubr.bf16.mxu0 %v842
        %2280 = vmatmul.mubr.bf16.gmra.mxu0 %v841
        %v2281 = vpop.f32.mrf.mxu0
        %v2282 = vadd.f32 %v1993, %v2281
        %v2283 = vpop.f32.mrf.mxu0
        %v2284 = vpop.f32.mrf.mxu0
        %v2285 = vadd.f32 %v1996, %v2284
        %v2286 = vpop.f32.mrf.mxu0
        %2287 = vmatprep.mubr.bf16.mxu0 %v850
        %2288 = vmatmul.mubr.bf16.gmra.mxu0 %v849
        %v2289 = vpop.f32.mrf.mxu0
        %v2290 = vadd.f32 %v2001, %v2289
        %v2291 = vpop.f32.mrf.mxu0
        %v2292 = vpop.f32.mrf.mxu0
        %v2293 = vadd.f32 %v2004, %v2292
        %v2294 = vpop.f32.mrf.mxu0
        %2295 = vmatprep.mubr.bf16.mxu0 %v858
        %2296 = vmatmul.mubr.bf16.gmra.mxu0 %v857
        %v2297 = vpop.f32.mrf.mxu0
        %v2298 = vadd.f32 %v2009, %v2297
        %v2299 = vpop.f32.mrf.mxu0
        %v2300 = vpop.f32.mrf.mxu0
        %v2301 = vadd.f32 %v2012, %v2300
        %v2302 = vpop.f32.mrf.mxu0
        %2303 = vmatprep.mubr.bf16.mxu0 %v866
        %2304 = vmatmul.mubr.bf16.gmra.mxu0 %v865
        %v2305 = vpop.f32.mrf.mxu0
        %v2306 = vadd.f32 %v2017, %v2305
        %v2307 = vpop.f32.mrf.mxu0
        %v2308 = vpop.f32.mrf.mxu0
        %v2309 = vadd.f32 %v2020, %v2308
        %v2310 = vpop.f32.mrf.mxu0
        %2311 = vmatprep.mubr.bf16.mxu0 %v874
        %2312 = vmatmul.mubr.bf16.gmra.mxu0 %v873
        %v2313 = vpop.f32.mrf.mxu0
        %v2314 = vadd.f32 %v2025, %v2313
        %v2315 = vpop.f32.mrf.mxu0
        %v2316 = vpop.f32.mrf.mxu0
        %v2317 = vadd.f32 %v2028, %v2316
        %v2318 = vpop.f32.mrf.mxu0
        %2319 = vmatprep.mubr.bf16.mxu0 %v882
        %2320 = vmatmul.mubr.bf16.gmra.mxu0 %v881
        %v2321 = vpop.f32.mrf.mxu0
        %v2322 = vadd.f32 %v2033, %v2321
        %v2323 = vpop.f32.mrf.mxu0
        %v2324 = vpop.f32.mrf.mxu0
        %v2325 = vadd.f32 %v2036, %v2324
        %v2326 = vpop.f32.mrf.mxu0
        %2327 = vmatprep.mubr.bf16.mxu0 %v890
        %2328 = vmatmul.mubr.bf16.gmra.mxu0 %v889
        %v2329 = vpop.f32.mrf.mxu0
        %v2330 = vadd.f32 %v2041, %v2329
        %v2331 = vpop.f32.mrf.mxu0
        %v2332 = vpop.f32.mrf.mxu0
        %v2333 = vadd.f32 %v2044, %v2332
        %v2334 = vpop.f32.mrf.mxu0
        %2335 = vmatprep.mubr.bf16.mxu0 %v898
        %2336 = vmatmul.mubr.bf16.gmra.mxu0 %v897
        %v2337 = vpop.f32.mrf.mxu0
        %v2338 = vadd.f32 %v2049, %v2337
        %v2339 = vpop.f32.mrf.mxu0
        %v2340 = vpop.f32.mrf.mxu0
        %v2341 = vadd.f32 %v2052, %v2340
        %v2342 = vpop.f32.mrf.mxu0
        %2343 = vmatprep.mubr.bf16.mxu0 %v906
        %2344 = vmatmul.mubr.bf16.gmra.mxu0 %v905
        %v2345 = vpop.f32.mrf.mxu0
        %v2346 = vadd.f32 %v2057, %v2345
        %v2347 = vpop.f32.mrf.mxu0
        %v2348 = vpop.f32.mrf.mxu0
        %v2349 = vadd.f32 %v2060, %v2348
        %v2350 = vpop.f32.mrf.mxu0
        %2351 = vmatprep.mubr.bf16.mxu0 %v914
        %2352 = vmatmul.mubr.bf16.gmra.mxu0 %v913
        %v2353 = vpop.f32.mrf.mxu0
        %v2354 = vadd.f32 %v2065, %v2353
        %v2355 = vpop.f32.mrf.mxu0
        %v2356 = vpop.f32.mrf.mxu0
        %v2357 = vadd.f32 %v2068, %v2356
        %v2358 = vpop.f32.mrf.mxu0
        %2359 = vmatprep.mubr.bf16.mxu0 %v922
        %2360 = vmatmul.mubr.bf16.gmra.mxu0 %v921
        %v2361 = vpop.f32.mrf.mxu0
        %v2362 = vadd.f32 %v2073, %v2361
        %v2363 = vpop.f32.mrf.mxu0
        %v2364 = vpop.f32.mrf.mxu0
        %v2365 = vadd.f32 %v2076, %v2364
        %v2366 = vpop.f32.mrf.mxu0
        %2367 = vmatprep.mubr.bf16.mxu0 %v930
        %2368 = vmatmul.mubr.bf16.gmra.mxu0 %v929
        %v2369 = vpop.f32.mrf.mxu0
        %v2370 = vadd.f32 %v2081, %v2369
        %v2371 = vpop.f32.mrf.mxu0
        %v2372 = vpop.f32.mrf.mxu0
        %v2373 = vadd.f32 %v2084, %v2372
        %v2374 = vpop.f32.mrf.mxu0
        %2375 = vdwg.mxu0
        %2376 = vmatprep.subr.bf16.mxu0 0
        %2377 = vmatpush1.bf16.msra.mxu0 %v1436
        %2378 = vmatprep.subr.bf16.mxu0 0
        %2379 = vmatpush1.bf16.msra.mxu0 %v1435
        %2380 = vmatprep.subr.bf16.mxu0 0
        %2381 = vmatpush1.bf16.msra.mxu0 %v1434
        %2382 = vmatprep.subr.bf16.mxu0 0
        %2383 = vmatpush1.bf16.msra.mxu0 %v1433
        %2384 = vmatprep.subr.bf16.mxu0 0
        %2385 = vmatpush1.bf16.msra.mxu0 %v1432
        %2386 = vmatprep.subr.bf16.mxu0 0
        %2387 = vmatpush1.bf16.msra.mxu0 %v1431
        %2388 = vmatprep.subr.bf16.mxu0 0
        %2389 = vmatpush1.bf16.msra.mxu0 %v1430
        %2390 = vmatprep.subr.bf16.mxu0 0
        %2391 = vmatpush1.bf16.msra.mxu0 %v1429
        %2392 = vmatprep.subr.bf16.mxu0 0
        %2393 = vmatpush2.bf16.msra.mxu0 %v1444
        %2394 = vmatprep.subr.bf16.mxu0 0
        %2395 = vmatpush2.bf16.msra.mxu0 %v1443
        %2396 = vmatprep.subr.bf16.mxu0 0
        %2397 = vmatpush2.bf16.msra.mxu0 %v1442
        %2398 = vmatprep.subr.bf16.mxu0 0
        %2399 = vmatpush2.bf16.msra.mxu0 %v1441
        %2400 = vmatprep.subr.bf16.mxu0 0
        %2401 = vmatpush2.bf16.msra.mxu0 %v1440
        %2402 = vmatprep.subr.bf16.mxu0 0
        %2403 = vmatpush2.bf16.msra.mxu0 %v1439
        %2404 = vmatprep.subr.bf16.mxu0 0
        %2405 = vmatpush2.bf16.msra.mxu0 %v1438
        %2406 = vmatprep.subr.bf16.mxu0 0
        %2407 = vmatpush2.bf16.msra.mxu0 %v1437
        %2408 = vmatprep.mubr.bf16.mxu0 %v684
        %2409 = vmatmul.mubr.bf16.gmra.mxu0 %v683
        %v2410 = vpop.f32.mrf.mxu0
        %v2411 = vadd.f32 %v2122, %v2410
        %v2412 = vpop.f32.mrf.mxu0
        %v2413 = vpop.f32.mrf.mxu0
        %v2414 = vadd.f32 %v2125, %v2413
        %v2415 = vpop.f32.mrf.mxu0
        %2416 = vmatprep.mubr.bf16.mxu0 %v692
        %2417 = vmatmul.mubr.bf16.gmra.mxu0 %v691
        %v2418 = vpop.f32.mrf.mxu0
        %v2419 = vadd.f32 %v2130, %v2418
        %v2420 = vpop.f32.mrf.mxu0
        %v2421 = vpop.f32.mrf.mxu0
        %v2422 = vadd.f32 %v2133, %v2421
        %v2423 = vpop.f32.mrf.mxu0
        %2424 = vmatprep.mubr.bf16.mxu0 %v700
        %2425 = vmatmul.mubr.bf16.gmra.mxu0 %v699
        %v2426 = vpop.f32.mrf.mxu0
        %v2427 = vadd.f32 %v2138, %v2426
        %v2428 = vpop.f32.mrf.mxu0
        %v2429 = vpop.f32.mrf.mxu0
        %v2430 = vadd.f32 %v2141, %v2429
        %v2431 = vpop.f32.mrf.mxu0
        %2432 = vmatprep.mubr.bf16.mxu0 %v708
        %2433 = vmatmul.mubr.bf16.gmra.mxu0 %v707
        %v2434 = vpop.f32.mrf.mxu0
        %v2435 = vadd.f32 %v2146, %v2434
        %v2436 = vpop.f32.mrf.mxu0
        %v2437 = vpop.f32.mrf.mxu0
        %v2438 = vadd.f32 %v2149, %v2437
        %v2439 = vpop.f32.mrf.mxu0
        %2440 = vmatprep.mubr.bf16.mxu0 %v716
        %2441 = vmatmul.mubr.bf16.gmra.mxu0 %v715
        %v2442 = vpop.f32.mrf.mxu0
        %v2443 = vadd.f32 %v2154, %v2442
        %v2444 = vpop.f32.mrf.mxu0
        %v2445 = vpop.f32.mrf.mxu0
        %v2446 = vadd.f32 %v2157, %v2445
        %v2447 = vpop.f32.mrf.mxu0
        %2448 = vmatprep.mubr.bf16.mxu0 %v724
        %2449 = vmatmul.mubr.bf16.gmra.mxu0 %v723
        %v2450 = vpop.f32.mrf.mxu0
        %v2451 = vadd.f32 %v2162, %v2450
        %v2452 = vpop.f32.mrf.mxu0
        %v2453 = vpop.f32.mrf.mxu0
        %v2454 = vadd.f32 %v2165, %v2453
        %v2455 = vpop.f32.mrf.mxu0
        %2456 = vmatprep.mubr.bf16.mxu0 %v732
        %2457 = vmatmul.mubr.bf16.gmra.mxu0 %v731
        %v2458 = vpop.f32.mrf.mxu0
        %v2459 = vadd.f32 %v2170, %v2458
        %v2460 = vpop.f32.mrf.mxu0
        %v2461 = vpop.f32.mrf.mxu0
        %v2462 = vadd.f32 %v2173, %v2461
        %v2463 = vpop.f32.mrf.mxu0
        %2464 = vmatprep.mubr.bf16.mxu0 %v740
        %2465 = vmatmul.mubr.bf16.gmra.mxu0 %v739
        %v2466 = vpop.f32.mrf.mxu0
        %v2467 = vadd.f32 %v2178, %v2466
        %v2468 = vpop.f32.mrf.mxu0
        %v2469 = vpop.f32.mrf.mxu0
        %v2470 = vadd.f32 %v2181, %v2469
        %v2471 = vpop.f32.mrf.mxu0
        %2472 = vmatprep.mubr.bf16.mxu0 %v748
        %2473 = vmatmul.mubr.bf16.gmra.mxu0 %v747
        %v2474 = vpop.f32.mrf.mxu0
        %v2475 = vadd.f32 %v2186, %v2474
        %v2476 = vpop.f32.mrf.mxu0
        %v2477 = vpop.f32.mrf.mxu0
        %v2478 = vadd.f32 %v2189, %v2477
        %v2479 = vpop.f32.mrf.mxu0
        %2480 = vmatprep.mubr.bf16.mxu0 %v756
        %2481 = vmatmul.mubr.bf16.gmra.mxu0 %v755
        %v2482 = vpop.f32.mrf.mxu0
        %v2483 = vadd.f32 %v2194, %v2482
        %v2484 = vpop.f32.mrf.mxu0
        %v2485 = vpop.f32.mrf.mxu0
        %v2486 = vadd.f32 %v2197, %v2485
        %v2487 = vpop.f32.mrf.mxu0
        %2488 = vmatprep.mubr.bf16.mxu0 %v764
        %2489 = vmatmul.mubr.bf16.gmra.mxu0 %v763
        %v2490 = vpop.f32.mrf.mxu0
        %v2491 = vadd.f32 %v2202, %v2490
        %v2492 = vpop.f32.mrf.mxu0
        %v2493 = vpop.f32.mrf.mxu0
        %v2494 = vadd.f32 %v2205, %v2493
        %v2495 = vpop.f32.mrf.mxu0
        %2496 = vmatprep.mubr.bf16.mxu0 %v772
        %2497 = vmatmul.mubr.bf16.gmra.mxu0 %v771
        %v2498 = vpop.f32.mrf.mxu0
        %v2499 = vadd.f32 %v2210, %v2498
        %v2500 = vpop.f32.mrf.mxu0
        %v2501 = vpop.f32.mrf.mxu0
        %v2502 = vadd.f32 %v2213, %v2501
        %v2503 = vpop.f32.mrf.mxu0
        %2504 = vmatprep.mubr.bf16.mxu0 %v780
        %2505 = vmatmul.mubr.bf16.gmra.mxu0 %v779
        %v2506 = vpop.f32.mrf.mxu0
        %v2507 = vadd.f32 %v2218, %v2506
        %v2508 = vpop.f32.mrf.mxu0
        %v2509 = vpop.f32.mrf.mxu0
        %v2510 = vadd.f32 %v2221, %v2509
        %v2511 = vpop.f32.mrf.mxu0
        %2512 = vmatprep.mubr.bf16.mxu0 %v788
        %2513 = vmatmul.mubr.bf16.gmra.mxu0 %v787
        %v2514 = vpop.f32.mrf.mxu0
        %v2515 = vadd.f32 %v2226, %v2514
        %v2516 = vpop.f32.mrf.mxu0
        %v2517 = vpop.f32.mrf.mxu0
        %v2518 = vadd.f32 %v2229, %v2517
        %v2519 = vpop.f32.mrf.mxu0
        %2520 = vmatprep.mubr.bf16.mxu0 %v796
        %2521 = vmatmul.mubr.bf16.gmra.mxu0 %v795
        %v2522 = vpop.f32.mrf.mxu0
        %v2523 = vadd.f32 %v2234, %v2522
        %v2524 = vpop.f32.mrf.mxu0
        %v2525 = vpop.f32.mrf.mxu0
        %v2526 = vadd.f32 %v2237, %v2525
        %v2527 = vpop.f32.mrf.mxu0
        %2528 = vmatprep.mubr.bf16.mxu0 %v804
        %2529 = vmatmul.mubr.bf16.gmra.mxu0 %v803
        %v2530 = vpop.f32.mrf.mxu0
        %v2531 = vadd.f32 %v2242, %v2530
        %v2532 = vpop.f32.mrf.mxu0
        %v2533 = vpop.f32.mrf.mxu0
        %v2534 = vadd.f32 %v2245, %v2533
        %v2535 = vpop.f32.mrf.mxu0
        %2536 = vmatprep.mubr.bf16.mxu0 %v812
        %2537 = vmatmul.mubr.bf16.gmra.mxu0 %v811
        %v2538 = vpop.f32.mrf.mxu0
        %v2539 = vadd.f32 %v2250, %v2538
        %v2540 = vpop.f32.mrf.mxu0
        %v2541 = vpop.f32.mrf.mxu0
        %v2542 = vadd.f32 %v2253, %v2541
        %v2543 = vpop.f32.mrf.mxu0
        %2544 = vmatprep.mubr.bf16.mxu0 %v820
        %2545 = vmatmul.mubr.bf16.gmra.mxu0 %v819
        %v2546 = vpop.f32.mrf.mxu0
        %v2547 = vadd.f32 %v2258, %v2546
        %v2548 = vpop.f32.mrf.mxu0
        %v2549 = vpop.f32.mrf.mxu0
        %v2550 = vadd.f32 %v2261, %v2549
        %v2551 = vpop.f32.mrf.mxu0
        %2552 = vmatprep.mubr.bf16.mxu0 %v828
        %2553 = vmatmul.mubr.bf16.gmra.mxu0 %v827
        %v2554 = vpop.f32.mrf.mxu0
        %v2555 = vadd.f32 %v2266, %v2554
        %v2556 = vpop.f32.mrf.mxu0
        %v2557 = vpop.f32.mrf.mxu0
        %v2558 = vadd.f32 %v2269, %v2557
        %v2559 = vpop.f32.mrf.mxu0
        %2560 = vmatprep.mubr.bf16.mxu0 %v836
        %2561 = vmatmul.mubr.bf16.gmra.mxu0 %v835
        %v2562 = vpop.f32.mrf.mxu0
        %v2563 = vadd.f32 %v2274, %v2562
        %v2564 = vpop.f32.mrf.mxu0
        %v2565 = vpop.f32.mrf.mxu0
        %v2566 = vadd.f32 %v2277, %v2565
        %v2567 = vpop.f32.mrf.mxu0
        %2568 = vmatprep.mubr.bf16.mxu0 %v844
        %2569 = vmatmul.mubr.bf16.gmra.mxu0 %v843
        %v2570 = vpop.f32.mrf.mxu0
        %v2571 = vadd.f32 %v2282, %v2570
        %v2572 = vpop.f32.mrf.mxu0
        %v2573 = vpop.f32.mrf.mxu0
        %v2574 = vadd.f32 %v2285, %v2573
        %v2575 = vpop.f32.mrf.mxu0
        %2576 = vmatprep.mubr.bf16.mxu0 %v852
        %2577 = vmatmul.mubr.bf16.gmra.mxu0 %v851
        %v2578 = vpop.f32.mrf.mxu0
        %v2579 = vadd.f32 %v2290, %v2578
        %v2580 = vpop.f32.mrf.mxu0
        %v2581 = vpop.f32.mrf.mxu0
        %v2582 = vadd.f32 %v2293, %v2581
        %v2583 = vpop.f32.mrf.mxu0
        %2584 = vmatprep.mubr.bf16.mxu0 %v860
        %2585 = vmatmul.mubr.bf16.gmra.mxu0 %v859
        %v2586 = vpop.f32.mrf.mxu0
        %v2587 = vadd.f32 %v2298, %v2586
        %v2588 = vpop.f32.mrf.mxu0
        %v2589 = vpop.f32.mrf.mxu0
        %v2590 = vadd.f32 %v2301, %v2589
        %v2591 = vpop.f32.mrf.mxu0
        %2592 = vmatprep.mubr.bf16.mxu0 %v868
        %2593 = vmatmul.mubr.bf16.gmra.mxu0 %v867
        %v2594 = vpop.f32.mrf.mxu0
        %v2595 = vadd.f32 %v2306, %v2594
        %v2596 = vpop.f32.mrf.mxu0
        %v2597 = vpop.f32.mrf.mxu0
        %v2598 = vadd.f32 %v2309, %v2597
        %v2599 = vpop.f32.mrf.mxu0
        %2600 = vmatprep.mubr.bf16.mxu0 %v876
        %2601 = vmatmul.mubr.bf16.gmra.mxu0 %v875
        %v2602 = vpop.f32.mrf.mxu0
        %v2603 = vadd.f32 %v2314, %v2602
        %v2604 = vpop.f32.mrf.mxu0
        %v2605 = vpop.f32.mrf.mxu0
        %v2606 = vadd.f32 %v2317, %v2605
        %v2607 = vpop.f32.mrf.mxu0
        %2608 = vmatprep.mubr.bf16.mxu0 %v884
        %2609 = vmatmul.mubr.bf16.gmra.mxu0 %v883
        %v2610 = vpop.f32.mrf.mxu0
        %v2611 = vadd.f32 %v2322, %v2610
        %v2612 = vpop.f32.mrf.mxu0
        %v2613 = vpop.f32.mrf.mxu0
        %v2614 = vadd.f32 %v2325, %v2613
        %v2615 = vpop.f32.mrf.mxu0
        %2616 = vmatprep.mubr.bf16.mxu0 %v892
        %2617 = vmatmul.mubr.bf16.gmra.mxu0 %v891
        %v2618 = vpop.f32.mrf.mxu0
        %v2619 = vadd.f32 %v2330, %v2618
        %v2620 = vpop.f32.mrf.mxu0
        %v2621 = vpop.f32.mrf.mxu0
        %v2622 = vadd.f32 %v2333, %v2621
        %v2623 = vpop.f32.mrf.mxu0
        %2624 = vmatprep.mubr.bf16.mxu0 %v900
        %2625 = vmatmul.mubr.bf16.gmra.mxu0 %v899
        %v2626 = vpop.f32.mrf.mxu0
        %v2627 = vadd.f32 %v2338, %v2626
        %v2628 = vpop.f32.mrf.mxu0
        %v2629 = vpop.f32.mrf.mxu0
        %v2630 = vadd.f32 %v2341, %v2629
        %v2631 = vpop.f32.mrf.mxu0
        %2632 = vmatprep.mubr.bf16.mxu0 %v908
        %2633 = vmatmul.mubr.bf16.gmra.mxu0 %v907
        %v2634 = vpop.f32.mrf.mxu0
        %v2635 = vadd.f32 %v2346, %v2634
        %v2636 = vpop.f32.mrf.mxu0
        %v2637 = vpop.f32.mrf.mxu0
        %v2638 = vadd.f32 %v2349, %v2637
        %v2639 = vpop.f32.mrf.mxu0
        %2640 = vmatprep.mubr.bf16.mxu0 %v916
        %2641 = vmatmul.mubr.bf16.gmra.mxu0 %v915
        %v2642 = vpop.f32.mrf.mxu0
        %v2643 = vadd.f32 %v2354, %v2642
        %v2644 = vpop.f32.mrf.mxu0
        %v2645 = vpop.f32.mrf.mxu0
        %v2646 = vadd.f32 %v2357, %v2645
        %v2647 = vpop.f32.mrf.mxu0
        %2648 = vmatprep.mubr.bf16.mxu0 %v924
        %2649 = vmatmul.mubr.bf16.gmra.mxu0 %v923
        %v2650 = vpop.f32.mrf.mxu0
        %v2651 = vadd.f32 %v2362, %v2650
        %v2652 = vpop.f32.mrf.mxu0
        %v2653 = vpop.f32.mrf.mxu0
        %v2654 = vadd.f32 %v2365, %v2653
        %v2655 = vpop.f32.mrf.mxu0
        %2656 = vmatprep.mubr.bf16.mxu0 %v932
        %2657 = vmatmul.mubr.bf16.gmra.mxu0 %v931
        %v2658 = vpop.f32.mrf.mxu0
        %v2659 = vadd.f32 %v2370, %v2658
        %v2660 = vpop.f32.mrf.mxu0
        %v2661 = vpop.f32.mrf.mxu0
        %v2662 = vadd.f32 %v2373, %v2661
        %v2663 = vpop.f32.mrf.mxu0
        %2664 = vdwg.mxu0
        %v2665 = vadd.f32 %v933, %v2411
        %v2666 = vadd.f32 %v934, %v2414
        %v2667 = vadd.f32 %v935, %v2419
        %v2668 = vadd.f32 %v936, %v2422
        %v2669 = vadd.f32 %v937, %v2427
        %v2670 = vadd.f32 %v938, %v2430
        %v2671 = vadd.f32 %v939, %v2435
        %v2672 = vadd.f32 %v940, %v2438
        %v2673 = vadd.f32 %v941, %v2443
        %v2674 = vadd.f32 %v942, %v2446
        %v2675 = vadd.f32 %v943, %v2451
        %v2676 = vadd.f32 %v944, %v2454
        %v2677 = vadd.f32 %v945, %v2459
        %v2678 = vadd.f32 %v946, %v2462
        %v2679 = vadd.f32 %v947, %v2467
        %v2680 = vadd.f32 %v948, %v2470
        %v2681 = vadd.f32 %v949, %v2475
        %v2682 = vadd.f32 %v950, %v2478
        %v2683 = vadd.f32 %v951, %v2483
        %v2684 = vadd.f32 %v952, %v2486
        %v2685 = vadd.f32 %v953, %v2491
        %v2686 = vadd.f32 %v954, %v2494
        %v2687 = vadd.f32 %v955, %v2499
        %v2688 = vadd.f32 %v956, %v2502
        %v2689 = vadd.f32 %v957, %v2507
        %v2690 = vadd.f32 %v958, %v2510
        %v2691 = vadd.f32 %v959, %v2515
        %v2692 = vadd.f32 %v960, %v2518
        %v2693 = vadd.f32 %v961, %v2523
        %v2694 = vadd.f32 %v962, %v2526
        %v2695 = vadd.f32 %v963, %v2531
        %v2696 = vadd.f32 %v964, %v2534
        %v2697 = vadd.f32 %v965, %v2539
        %v2698 = vadd.f32 %v966, %v2542
        %v2699 = vadd.f32 %v967, %v2547
        %v2700 = vadd.f32 %v968, %v2550
        %v2701 = vadd.f32 %v969, %v2555
        %v2702 = vadd.f32 %v970, %v2558
        %v2703 = vadd.f32 %v971, %v2563
        %v2704 = vadd.f32 %v972, %v2566
        %v2705 = vadd.f32 %v973, %v2571
        %v2706 = vadd.f32 %v974, %v2574
        %v2707 = vadd.f32 %v975, %v2579
        %v2708 = vadd.f32 %v976, %v2582
        %v2709 = vadd.f32 %v977, %v2587
        %v2710 = vadd.f32 %v978, %v2590
        %v2711 = vadd.f32 %v979, %v2595
        %v2712 = vadd.f32 %v980, %v2598
        %v2713 = vadd.f32 %v981, %v2603
        %v2714 = vadd.f32 %v982, %v2606
        %v2715 = vadd.f32 %v983, %v2611
        %v2716 = vadd.f32 %v984, %v2614
        %v2717 = vadd.f32 %v985, %v2619
        %v2718 = vadd.f32 %v986, %v2622
        %v2719 = vadd.f32 %v987, %v2627
        %v2720 = vadd.f32 %v988, %v2630
        %v2721 = vadd.f32 %v989, %v2635
        %v2722 = vadd.f32 %v990, %v2638
        %v2723 = vadd.f32 %v991, %v2643
        %v2724 = vadd.f32 %v992, %v2646
        %v2725 = vadd.f32 %v993, %v2651
        %v2726 = vadd.f32 %v994, %v2654
        %v2727 = vadd.f32 %v995, %v2659
        %v2728 = vadd.f32 %v996, %v2662
        %2729 = vst [vmem:[#allocation2] sm:$0xff] %v2665
        %2730 = vst [vmem:[#allocation2 + $0x8] sm:$0xff] %v2666
        %2731 = vst [vmem:[#allocation2 + $0x10] sm:$0xff] %v2667
        %2732 = vst [vmem:[#allocation2 + $0x18] sm:$0xff] %v2668
        %2733 = vst [vmem:[#allocation2 + $0x20] sm:$0xff] %v2669
        %2734 = vst [vmem:[#allocation2 + $0x28] sm:$0xff] %v2670
        %2735 = vst [vmem:[#allocation2 + $0x30] sm:$0xff] %v2671
        %2736 = vst [vmem:[#allocation2 + $0x38] sm:$0xff] %v2672
        %2737 = vst [vmem:[#allocation2 + $0x40] sm:$0xff] %v2673
        %2738 = vst [vmem:[#allocation2 + $0x48] sm:$0xff] %v2674
        %2739 = vst [vmem:[#allocation2 + $0x50] sm:$0xff] %v2675
        %2740 = vst [vmem:[#allocation2 + $0x58] sm:$0xff] %v2676
        %2741 = vst [vmem:[#allocation2 + $0x60] sm:$0xff] %v2677
        %2742 = vst [vmem:[#allocation2 + $0x68] sm:$0xff] %v2678
        %2743 = vst [vmem:[#allocation2 + $0x70] sm:$0xff] %v2679
        %2744 = vst [vmem:[#allocation2 + $0x78] sm:$0xff] %v2680
        %2745 = vst [vmem:[#allocation2 + $0x80] sm:$0xff] %v2681
        %2746 = vst [vmem:[#allocation2 + $0x88] sm:$0xff] %v2682
        %2747 = vst [vmem:[#allocation2 + $0x90] sm:$0xff] %v2683
        %2748 = vst [vmem:[#allocation2 + $0x98] sm:$0xff] %v2684
        %2749 = vst [vmem:[#allocation2 + $0xa0] sm:$0xff] %v2685
        %2750 = vst [vmem:[#allocation2 + $0xa8] sm:$0xff] %v2686
        %2751 = vst [vmem:[#allocation2 + $0xb0] sm:$0xff] %v2687
        %2752 = vst [vmem:[#allocation2 + $0xb8] sm:$0xff] %v2688
        %2753 = vst [vmem:[#allocation2 + $0xc0] sm:$0xff] %v2689
        %2754 = vst [vmem:[#allocation2 + $0xc8] sm:$0xff] %v2690
        %2755 = vst [vmem:[#allocation2 + $0xd0] sm:$0xff] %v2691
        %2756 = vst [vmem:[#allocation2 + $0xd8] sm:$0xff] %v2692
        %2757 = vst [vmem:[#allocation2 + $0xe0] sm:$0xff] %v2693
        %2758 = vst [vmem:[#allocation2 + $0xe8] sm:$0xff] %v2694
        %2759 = vst [vmem:[#allocation2 + $0xf0] sm:$0xff] %v2695
        %2760 = vst [vmem:[#allocation2 + $0xf8] sm:$0xff] %v2696
        %2761 = vst [vmem:[#allocation2 + $0x100] sm:$0xff] %v2697
        %2762 = vst [vmem:[#allocation2 + $0x108] sm:$0xff] %v2698
        %2763 = vst [vmem:[#allocation2 + $0x110] sm:$0xff] %v2699
        %2764 = vst [vmem:[#allocation2 + $0x118] sm:$0xff] %v2700
        %2765 = vst [vmem:[#allocation2 + $0x120] sm:$0xff] %v2701
        %2766 = vst [vmem:[#allocation2 + $0x128] sm:$0xff] %v2702
        %2767 = vst [vmem:[#allocation2 + $0x130] sm:$0xff] %v2703
        %2768 = vst [vmem:[#allocation2 + $0x138] sm:$0xff] %v2704
        %2769 = vst [vmem:[#allocation2 + $0x140] sm:$0xff] %v2705
        %2770 = vst [vmem:[#allocation2 + $0x148] sm:$0xff] %v2706
        %2771 = vst [vmem:[#allocation2 + $0x150] sm:$0xff] %v2707
        %2772 = vst [vmem:[#allocation2 + $0x158] sm:$0xff] %v2708
        %2773 = vst [vmem:[#allocation2 + $0x160] sm:$0xff] %v2709
        %2774 = vst [vmem:[#allocation2 + $0x168] sm:$0xff] %v2710
        %2775 = vst [vmem:[#allocation2 + $0x170] sm:$0xff] %v2711
        %2776 = vst [vmem:[#allocation2 + $0x178] sm:$0xff] %v2712
        %2777 = vst [vmem:[#allocation2 + $0x180] sm:$0xff] %v2713
        %2778 = vst [vmem:[#allocation2 + $0x188] sm:$0xff] %v2714
        %2779 = vst [vmem:[#allocation2 + $0x190] sm:$0xff] %v2715
        %2780 = vst [vmem:[#allocation2 + $0x198] sm:$0xff] %v2716
        %2781 = vst [vmem:[#allocation2 + $0x1a0] sm:$0xff] %v2717
        %2782 = vst [vmem:[#allocation2 + $0x1a8] sm:$0xff] %v2718
        %2783 = vst [vmem:[#allocation2 + $0x1b0] sm:$0xff] %v2719
        %2784 = vst [vmem:[#allocation2 + $0x1b8] sm:$0xff] %v2720
        %2785 = vst [vmem:[#allocation2 + $0x1c0] sm:$0xff] %v2721
        %2786 = vst [vmem:[#allocation2 + $0x1c8] sm:$0xff] %v2722
        %2787 = vst [vmem:[#allocation2 + $0x1d0] sm:$0xff] %v2723
        %2788 = vst [vmem:[#allocation2 + $0x1d8] sm:$0xff] %v2724
        %2789 = vst [vmem:[#allocation2 + $0x1e0] sm:$0xff] %v2725
        %2790 = vst [vmem:[#allocation2 + $0x1e8] sm:$0xff] %v2726
        %2791 = vst [vmem:[#allocation2 + $0x1f0] sm:$0xff] %v2727
        %2792 = vst [vmem:[#allocation2 + $0x1f8] sm:$0xff] %v2728
        // Predicated region
        $region73: #{tpu_custom_call.1} parent=51 // pred_check
          %p2793 = pneg %p481
        $region74: #{tpu_custom_call.1} parent=51 // pred_check_branch
          %2795 = sbr.rel (%p2793) target = $region76
        $region75: #{tpu_custom_call.1} parent=51 // pred_region
          %v2796 = vld [vmem:[#allocation2] sm:$0xff]
          %v2797 = vld [vmem:[#allocation2 + $0x8] sm:$0xff]
          %v2798 = vld [vmem:[#allocation2 + $0x10] sm:$0xff]
          %v2799 = vld [vmem:[#allocation2 + $0x18] sm:$0xff]
          %v2800 = vld [vmem:[#allocation2 + $0x20] sm:$0xff]
          %v2801 = vld [vmem:[#allocation2 + $0x28] sm:$0xff]
          %v2802 = vld [vmem:[#allocation2 + $0x30] sm:$0xff]
          %v2803 = vld [vmem:[#allocation2 + $0x38] sm:$0xff]
          %v2804 = vld [vmem:[#allocation2 + $0x40] sm:$0xff]
          %v2805 = vld [vmem:[#allocation2 + $0x48] sm:$0xff]
          %v2806 = vld [vmem:[#allocation2 + $0x50] sm:$0xff]
          %v2807 = vld [vmem:[#allocation2 + $0x58] sm:$0xff]
          %v2808 = vld [vmem:[#allocation2 + $0x60] sm:$0xff]
          %v2809 = vld [vmem:[#allocation2 + $0x68] sm:$0xff]
          %v2810 = vld [vmem:[#allocation2 + $0x70] sm:$0xff]
          %v2811 = vld [vmem:[#allocation2 + $0x78] sm:$0xff]
          %v2812 = vld [vmem:[#allocation2 + $0x80] sm:$0xff]
          %v2813 = vld [vmem:[#allocation2 + $0x88] sm:$0xff]
          %v2814 = vld [vmem:[#allocation2 + $0x90] sm:$0xff]
          %v2815 = vld [vmem:[#allocation2 + $0x98] sm:$0xff]
          %v2816 = vld [vmem:[#allocation2 + $0xa0] sm:$0xff]
          %v2817 = vld [vmem:[#allocation2 + $0xa8] sm:$0xff]
          %v2818 = vld [vmem:[#allocation2 + $0xb0] sm:$0xff]
          %v2819 = vld [vmem:[#allocation2 + $0xb8] sm:$0xff]
          %v2820 = vld [vmem:[#allocation2 + $0xc0] sm:$0xff]
          %v2821 = vld [vmem:[#allocation2 + $0xc8] sm:$0xff]
          %v2822 = vld [vmem:[#allocation2 + $0xd0] sm:$0xff]
          %v2823 = vld [vmem:[#allocation2 + $0xd8] sm:$0xff]
          %v2824 = vld [vmem:[#allocation2 + $0xe0] sm:$0xff]
          %v2825 = vld [vmem:[#allocation2 + $0xe8] sm:$0xff]
          %v2826 = vld [vmem:[#allocation2 + $0xf0] sm:$0xff]
          %v2827 = vld [vmem:[#allocation2 + $0xf8] sm:$0xff]
          %v2828 = vld [vmem:[#allocation2 + $0x100] sm:$0xff]
          %v2829 = vld [vmem:[#allocation2 + $0x108] sm:$0xff]
          %v2830 = vld [vmem:[#allocation2 + $0x110] sm:$0xff]
          %v2831 = vld [vmem:[#allocation2 + $0x118] sm:$0xff]
          %v2832 = vld [vmem:[#allocation2 + $0x120] sm:$0xff]
          %v2833 = vld [vmem:[#allocation2 + $0x128] sm:$0xff]
          %v2834 = vld [vmem:[#allocation2 + $0x130] sm:$0xff]
          %v2835 = vld [vmem:[#allocation2 + $0x138] sm:$0xff]
          %v2836 = vld [vmem:[#allocation2 + $0x140] sm:$0xff]
          %v2837 = vld [vmem:[#allocation2 + $0x148] sm:$0xff]
          %v2838 = vld [vmem:[#allocation2 + $0x150] sm:$0xff]
          %v2839 = vld [vmem:[#allocation2 + $0x158] sm:$0xff]
          %v2840 = vld [vmem:[#allocation2 + $0x160] sm:$0xff]
          %v2841 = vld [vmem:[#allocation2 + $0x168] sm:$0xff]
          %v2842 = vld [vmem:[#allocation2 + $0x170] sm:$0xff]
          %v2843 = vld [vmem:[#allocation2 + $0x178] sm:$0xff]
          %v2844 = vld [vmem:[#allocation2 + $0x180] sm:$0xff]
          %v2845 = vld [vmem:[#allocation2 + $0x188] sm:$0xff]
          %v2846 = vld [vmem:[#allocation2 + $0x190] sm:$0xff]
          %v2847 = vld [vmem:[#allocation2 + $0x198] sm:$0xff]
          %v2848 = vld [vmem:[#allocation2 + $0x1a0] sm:$0xff]
          %v2849 = vld [vmem:[#allocation2 + $0x1a8] sm:$0xff]
          %v2850 = vld [vmem:[#allocation2 + $0x1b0] sm:$0xff]
          %v2851 = vld [vmem:[#allocation2 + $0x1b8] sm:$0xff]
          %v2852 = vld [vmem:[#allocation2 + $0x1c0] sm:$0xff]
          %v2853 = vld [vmem:[#allocation2 + $0x1c8] sm:$0xff]
          %v2854 = vld [vmem:[#allocation2 + $0x1d0] sm:$0xff]
          %v2855 = vld [vmem:[#allocation2 + $0x1d8] sm:$0xff]
          %v2856 = vld [vmem:[#allocation2 + $0x1e0] sm:$0xff]
          %v2857 = vld [vmem:[#allocation2 + $0x1e8] sm:$0xff]
          %v2858 = vld [vmem:[#allocation2 + $0x1f0] sm:$0xff]
          %v2859 = vld [vmem:[#allocation2 + $0x1f8] sm:$0xff]
          %v2860 = vld [vmem:[%s476] sm:$0xff]
          %v2861 = vld [vmem:[%s476 + $0x8] sm:$0xff]
          %v2862 = vld [vmem:[%s476 + $0x10] sm:$0xff]
          %v2863 = vld [vmem:[%s476 + $0x18] sm:$0xff]
          %v2864 = vld [vmem:[%s476 + $0x20] sm:$0xff]
          %v2865 = vld [vmem:[%s476 + $0x28] sm:$0xff]
          %v2866 = vld [vmem:[%s476 + $0x30] sm:$0xff]
          %v2867 = vld [vmem:[%s476 + $0x38] sm:$0xff]
          %v2868 = vld [vmem:[%s476 + $0x40] sm:$0xff]
          %v2869 = vld [vmem:[%s476 + $0x48] sm:$0xff]
          %v2870 = vld [vmem:[%s476 + $0x50] sm:$0xff]
          %v2871 = vld [vmem:[%s476 + $0x58] sm:$0xff]
          %v2872 = vld [vmem:[%s476 + $0x60] sm:$0xff]
          %v2873 = vld [vmem:[%s476 + $0x68] sm:$0xff]
          %v2874 = vld [vmem:[%s476 + $0x70] sm:$0xff]
          %v2875 = vld [vmem:[%s476 + $0x78] sm:$0xff]
          %v2876 = vld [vmem:[%s476 + $0x80] sm:$0xff]
          %v2877 = vld [vmem:[%s476 + $0x88] sm:$0xff]
          %v2878 = vld [vmem:[%s476 + $0x90] sm:$0xff]
          %v2879 = vld [vmem:[%s476 + $0x98] sm:$0xff]
          %v2880 = vld [vmem:[%s476 + $0xa0] sm:$0xff]
          %v2881 = vld [vmem:[%s476 + $0xa8] sm:$0xff]
          %v2882 = vld [vmem:[%s476 + $0xb0] sm:$0xff]
          %v2883 = vld [vmem:[%s476 + $0xb8] sm:$0xff]
          %v2884 = vld [vmem:[%s476 + $0xc0] sm:$0xff]
          %v2885 = vld [vmem:[%s476 + $0xc8] sm:$0xff]
          %v2886 = vld [vmem:[%s476 + $0xd0] sm:$0xff]
          %v2887 = vld [vmem:[%s476 + $0xd8] sm:$0xff]
          %v2888 = vld [vmem:[%s476 + $0xe0] sm:$0xff]
          %v2889 = vld [vmem:[%s476 + $0xe8] sm:$0xff]
          %v2890 = vld [vmem:[%s476 + $0xf0] sm:$0xff]
          %v2891 = vld [vmem:[%s476 + $0xf8] sm:$0xff]
          %v2892 = vld [vmem:[%s476 + $0x100] sm:$0xff]
          %v2893 = vld [vmem:[%s476 + $0x108] sm:$0xff]
          %v2894 = vld [vmem:[%s476 + $0x110] sm:$0xff]
          %v2895 = vld [vmem:[%s476 + $0x118] sm:$0xff]
          %v2896 = vld [vmem:[%s476 + $0x120] sm:$0xff]
          %v2897 = vld [vmem:[%s476 + $0x128] sm:$0xff]
          %v2898 = vld [vmem:[%s476 + $0x130] sm:$0xff]
          %v2899 = vld [vmem:[%s476 + $0x138] sm:$0xff]
          %v2900 = vld [vmem:[%s476 + $0x140] sm:$0xff]
          %v2901 = vld [vmem:[%s476 + $0x148] sm:$0xff]
          %v2902 = vld [vmem:[%s476 + $0x150] sm:$0xff]
          %v2903 = vld [vmem:[%s476 + $0x158] sm:$0xff]
          %v2904 = vld [vmem:[%s476 + $0x160] sm:$0xff]
          %v2905 = vld [vmem:[%s476 + $0x168] sm:$0xff]
          %v2906 = vld [vmem:[%s476 + $0x170] sm:$0xff]
          %v2907 = vld [vmem:[%s476 + $0x178] sm:$0xff]
          %v2908 = vld [vmem:[%s476 + $0x180] sm:$0xff]
          %v2909 = vld [vmem:[%s476 + $0x188] sm:$0xff]
          %v2910 = vld [vmem:[%s476 + $0x190] sm:$0xff]
          %v2911 = vld [vmem:[%s476 + $0x198] sm:$0xff]
          %v2912 = vld [vmem:[%s476 + $0x1a0] sm:$0xff]
          %v2913 = vld [vmem:[%s476 + $0x1a8] sm:$0xff]
          %v2914 = vld [vmem:[%s476 + $0x1b0] sm:$0xff]
          %v2915 = vld [vmem:[%s476 + $0x1b8] sm:$0xff]
          %v2916 = vld [vmem:[%s476 + $0x1c0] sm:$0xff]
          %v2917 = vld [vmem:[%s476 + $0x1c8] sm:$0xff]
          %v2918 = vld [vmem:[%s476 + $0x1d0] sm:$0xff]
          %v2919 = vld [vmem:[%s476 + $0x1d8] sm:$0xff]
          %v2920 = vld [vmem:[%s476 + $0x1e0] sm:$0xff]
          %v2921 = vld [vmem:[%s476 + $0x1e8] sm:$0xff]
          %v2922 = vld [vmem:[%s476 + $0x1f0] sm:$0xff]
          %v2923 = vld [vmem:[%s476 + $0x1f8] sm:$0xff]
          %2925 = vset.pattern.permute.xlu0 0
          %2926 = vperm.xlu0 %2925, %v2860
          %v2927 = vpop.permute.xlu0 %2926
          %2930 = vset.pattern.permute.xlu0 0
          %2931 = vperm.xlu0 %2930, %v2861
          %v2932 = vpop.permute.xlu0 %2931
          %2935 = vset.pattern.permute.xlu0 0
          %2936 = vperm.xlu0 %2935, %v2862
          %v2937 = vpop.permute.xlu0 %2936
          %2940 = vset.pattern.permute.xlu0 0
          %2941 = vperm.xlu0 %2940, %v2863
          %v2942 = vpop.permute.xlu0 %2941
          %2945 = vset.pattern.permute.xlu0 0
          %2946 = vperm.xlu0 %2945, %v2864
          %v2947 = vpop.permute.xlu0 %2946
          %2950 = vset.pattern.permute.xlu0 0
          %2951 = vperm.xlu0 %2950, %v2865
          %v2952 = vpop.permute.xlu0 %2951
          %2955 = vset.pattern.permute.xlu0 0
          %2956 = vperm.xlu0 %2955, %v2866
          %v2957 = vpop.permute.xlu0 %2956
          %2960 = vset.pattern.permute.xlu0 0
          %2961 = vperm.xlu0 %2960, %v2867
          %v2962 = vpop.permute.xlu0 %2961
          %2965 = vset.pattern.permute.xlu0 0
          %2966 = vperm.xlu0 %2965, %v2868
          %v2967 = vpop.permute.xlu0 %2966
          %2970 = vset.pattern.permute.xlu0 0
          %2971 = vperm.xlu0 %2970, %v2869
          %v2972 = vpop.permute.xlu0 %2971
          %2975 = vset.pattern.permute.xlu0 0
          %2976 = vperm.xlu0 %2975, %v2870
          %v2977 = vpop.permute.xlu0 %2976
          %2980 = vset.pattern.permute.xlu0 0
          %2981 = vperm.xlu0 %2980, %v2871
          %v2982 = vpop.permute.xlu0 %2981
          %2985 = vset.pattern.permute.xlu0 0
          %2986 = vperm.xlu0 %2985, %v2872
          %v2987 = vpop.permute.xlu0 %2986
          %2990 = vset.pattern.permute.xlu0 0
          %2991 = vperm.xlu0 %2990, %v2873
          %v2992 = vpop.permute.xlu0 %2991
          %2995 = vset.pattern.permute.xlu0 0
          %2996 = vperm.xlu0 %2995, %v2874
          %v2997 = vpop.permute.xlu0 %2996
          %3000 = vset.pattern.permute.xlu0 0
          %3001 = vperm.xlu0 %3000, %v2875
          %v3002 = vpop.permute.xlu0 %3001
          %3005 = vset.pattern.permute.xlu0 0
          %3006 = vperm.xlu0 %3005, %v2876
          %v3007 = vpop.permute.xlu0 %3006
          %3010 = vset.pattern.permute.xlu0 0
          %3011 = vperm.xlu0 %3010, %v2877
          %v3012 = vpop.permute.xlu0 %3011
          %3015 = vset.pattern.permute.xlu0 0
          %3016 = vperm.xlu0 %3015, %v2878
          %v3017 = vpop.permute.xlu0 %3016
          %3020 = vset.pattern.permute.xlu0 0
          %3021 = vperm.xlu0 %3020, %v2879
          %v3022 = vpop.permute.xlu0 %3021
          %3025 = vset.pattern.permute.xlu0 0
          %3026 = vperm.xlu0 %3025, %v2880
          %v3027 = vpop.permute.xlu0 %3026
          %3030 = vset.pattern.permute.xlu0 0
          %3031 = vperm.xlu0 %3030, %v2881
          %v3032 = vpop.permute.xlu0 %3031
          %3035 = vset.pattern.permute.xlu0 0
          %3036 = vperm.xlu0 %3035, %v2882
          %v3037 = vpop.permute.xlu0 %3036
          %3040 = vset.pattern.permute.xlu0 0
          %3041 = vperm.xlu0 %3040, %v2883
          %v3042 = vpop.permute.xlu0 %3041
          %3045 = vset.pattern.permute.xlu0 0
          %3046 = vperm.xlu0 %3045, %v2884
          %v3047 = vpop.permute.xlu0 %3046
          %3050 = vset.pattern.permute.xlu0 0
          %3051 = vperm.xlu0 %3050, %v2885
          %v3052 = vpop.permute.xlu0 %3051
          %3055 = vset.pattern.permute.xlu0 0
          %3056 = vperm.xlu0 %3055, %v2886
          %v3057 = vpop.permute.xlu0 %3056
          %3060 = vset.pattern.permute.xlu0 0
          %3061 = vperm.xlu0 %3060, %v2887
          %v3062 = vpop.permute.xlu0 %3061
          %3065 = vset.pattern.permute.xlu0 0
          %3066 = vperm.xlu0 %3065, %v2888
          %v3067 = vpop.permute.xlu0 %3066
          %3070 = vset.pattern.permute.xlu0 0
          %3071 = vperm.xlu0 %3070, %v2889
          %v3072 = vpop.permute.xlu0 %3071
          %3075 = vset.pattern.permute.xlu0 0
          %3076 = vperm.xlu0 %3075, %v2890
          %v3077 = vpop.permute.xlu0 %3076
          %3080 = vset.pattern.permute.xlu0 0
          %3081 = vperm.xlu0 %3080, %v2891
          %v3082 = vpop.permute.xlu0 %3081
          %3085 = vset.pattern.permute.xlu0 0
          %3086 = vperm.xlu0 %3085, %v2892
          %v3087 = vpop.permute.xlu0 %3086
          %3090 = vset.pattern.permute.xlu0 0
          %3091 = vperm.xlu0 %3090, %v2893
          %v3092 = vpop.permute.xlu0 %3091
          %3095 = vset.pattern.permute.xlu0 0
          %3096 = vperm.xlu0 %3095, %v2894
          %v3097 = vpop.permute.xlu0 %3096
          %3100 = vset.pattern.permute.xlu0 0
          %3101 = vperm.xlu0 %3100, %v2895
          %v3102 = vpop.permute.xlu0 %3101
          %3105 = vset.pattern.permute.xlu0 0
          %3106 = vperm.xlu0 %3105, %v2896
          %v3107 = vpop.permute.xlu0 %3106
          %3110 = vset.pattern.permute.xlu0 0
          %3111 = vperm.xlu0 %3110, %v2897
          %v3112 = vpop.permute.xlu0 %3111
          %3115 = vset.pattern.permute.xlu0 0
          %3116 = vperm.xlu0 %3115, %v2898
          %v3117 = vpop.permute.xlu0 %3116
          %3120 = vset.pattern.permute.xlu0 0
          %3121 = vperm.xlu0 %3120, %v2899
          %v3122 = vpop.permute.xlu0 %3121
          %3125 = vset.pattern.permute.xlu0 0
          %3126 = vperm.xlu0 %3125, %v2900
          %v3127 = vpop.permute.xlu0 %3126
          %3130 = vset.pattern.permute.xlu0 0
          %3131 = vperm.xlu0 %3130, %v2901
          %v3132 = vpop.permute.xlu0 %3131
          %3135 = vset.pattern.permute.xlu0 0
          %3136 = vperm.xlu0 %3135, %v2902
          %v3137 = vpop.permute.xlu0 %3136
          %3140 = vset.pattern.permute.xlu0 0
          %3141 = vperm.xlu0 %3140, %v2903
          %v3142 = vpop.permute.xlu0 %3141
          %3145 = vset.pattern.permute.xlu0 0
          %3146 = vperm.xlu0 %3145, %v2904
          %v3147 = vpop.permute.xlu0 %3146
          %3150 = vset.pattern.permute.xlu0 0
          %3151 = vperm.xlu0 %3150, %v2905
          %v3152 = vpop.permute.xlu0 %3151
          %3155 = vset.pattern.permute.xlu0 0
          %3156 = vperm.xlu0 %3155, %v2906
          %v3157 = vpop.permute.xlu0 %3156
          %3160 = vset.pattern.permute.xlu0 0
          %3161 = vperm.xlu0 %3160, %v2907
          %v3162 = vpop.permute.xlu0 %3161
          %3165 = vset.pattern.permute.xlu0 0
          %3166 = vperm.xlu0 %3165, %v2908
          %v3167 = vpop.permute.xlu0 %3166
          %3170 = vset.pattern.permute.xlu0 0
          %3171 = vperm.xlu0 %3170, %v2909
          %v3172 = vpop.permute.xlu0 %3171
          %3175 = vset.pattern.permute.xlu0 0
          %3176 = vperm.xlu0 %3175, %v2910
          %v3177 = vpop.permute.xlu0 %3176
          %3180 = vset.pattern.permute.xlu0 0
          %3181 = vperm.xlu0 %3180, %v2911
          %v3182 = vpop.permute.xlu0 %3181
          %3185 = vset.pattern.permute.xlu0 0
          %3186 = vperm.xlu0 %3185, %v2912
          %v3187 = vpop.permute.xlu0 %3186
          %3190 = vset.pattern.permute.xlu0 0
          %3191 = vperm.xlu0 %3190, %v2913
          %v3192 = vpop.permute.xlu0 %3191
          %3195 = vset.pattern.permute.xlu0 0
          %3196 = vperm.xlu0 %3195, %v2914
          %v3197 = vpop.permute.xlu0 %3196
          %3200 = vset.pattern.permute.xlu0 0
          %3201 = vperm.xlu0 %3200, %v2915
          %v3202 = vpop.permute.xlu0 %3201
          %3205 = vset.pattern.permute.xlu0 0
          %3206 = vperm.xlu0 %3205, %v2916
          %v3207 = vpop.permute.xlu0 %3206
          %3210 = vset.pattern.permute.xlu0 0
          %3211 = vperm.xlu0 %3210, %v2917
          %v3212 = vpop.permute.xlu0 %3211
          %3215 = vset.pattern.permute.xlu0 0
          %3216 = vperm.xlu0 %3215, %v2918
          %v3217 = vpop.permute.xlu0 %3216
          %3220 = vset.pattern.permute.xlu0 0
          %3221 = vperm.xlu0 %3220, %v2919
          %v3222 = vpop.permute.xlu0 %3221
          %3225 = vset.pattern.permute.xlu0 0
          %3226 = vperm.xlu0 %3225, %v2920
          %v3227 = vpop.permute.xlu0 %3226
          %3230 = vset.pattern.permute.xlu0 0
          %3231 = vperm.xlu0 %3230, %v2921
          %v3232 = vpop.permute.xlu0 %3231
          %3235 = vset.pattern.permute.xlu0 0
          %3236 = vperm.xlu0 %3235, %v2922
          %v3237 = vpop.permute.xlu0 %3236
          %3240 = vset.pattern.permute.xlu0 0
          %3241 = vperm.xlu0 %3240, %v2923
          %v3242 = vpop.permute.xlu0 %3241
          %v3244 = vmul.f32 %v2796, %v2927
          %v3245 = vmul.f32 %v2797, %v2932
          %v3246 = vmul.f32 %v2798, %v2937
          %v3247 = vmul.f32 %v2799, %v2942
          %v3248 = vmul.f32 %v2800, %v2947
          %v3249 = vmul.f32 %v2801, %v2952
          %v3250 = vmul.f32 %v2802, %v2957
          %v3251 = vmul.f32 %v2803, %v2962
          %v3252 = vmul.f32 %v2804, %v2967
          %v3253 = vmul.f32 %v2805, %v2972
          %v3254 = vmul.f32 %v2806, %v2977
          %v3255 = vmul.f32 %v2807, %v2982
          %v3256 = vmul.f32 %v2808, %v2987
          %v3257 = vmul.f32 %v2809, %v2992
          %v3258 = vmul.f32 %v2810, %v2997
          %v3259 = vmul.f32 %v2811, %v3002
          %v3260 = vmul.f32 %v2812, %v3007
          %v3261 = vmul.f32 %v2813, %v3012
          %v3262 = vmul.f32 %v2814, %v3017
          %v3263 = vmul.f32 %v2815, %v3022
          %v3264 = vmul.f32 %v2816, %v3027
          %v3265 = vmul.f32 %v2817, %v3032
          %v3266 = vmul.f32 %v2818, %v3037
          %v3267 = vmul.f32 %v2819, %v3042
          %v3268 = vmul.f32 %v2820, %v3047
          %v3269 = vmul.f32 %v2821, %v3052
          %v3270 = vmul.f32 %v2822, %v3057
          %v3271 = vmul.f32 %v2823, %v3062
          %v3272 = vmul.f32 %v2824, %v3067
          %v3273 = vmul.f32 %v2825, %v3072
          %v3274 = vmul.f32 %v2826, %v3077
          %v3275 = vmul.f32 %v2827, %v3082
          %v3276 = vmul.f32 %v2828, %v3087
          %v3277 = vmul.f32 %v2829, %v3092
          %v3278 = vmul.f32 %v2830, %v3097
          %v3279 = vmul.f32 %v2831, %v3102
          %v3280 = vmul.f32 %v2832, %v3107
          %v3281 = vmul.f32 %v2833, %v3112
          %v3282 = vmul.f32 %v2834, %v3117
          %v3283 = vmul.f32 %v2835, %v3122
          %v3284 = vmul.f32 %v2836, %v3127
          %v3285 = vmul.f32 %v2837, %v3132
          %v3286 = vmul.f32 %v2838, %v3137
          %v3287 = vmul.f32 %v2839, %v3142
          %v3288 = vmul.f32 %v2840, %v3147
          %v3289 = vmul.f32 %v2841, %v3152
          %v3290 = vmul.f32 %v2842, %v3157
          %v3291 = vmul.f32 %v2843, %v3162
          %v3292 = vmul.f32 %v2844, %v3167
          %v3293 = vmul.f32 %v2845, %v3172
          %v3294 = vmul.f32 %v2846, %v3177
          %v3295 = vmul.f32 %v2847, %v3182
          %v3296 = vmul.f32 %v2848, %v3187
          %v3297 = vmul.f32 %v2849, %v3192
          %v3298 = vmul.f32 %v2850, %v3197
          %v3299 = vmul.f32 %v2851, %v3202
          %v3300 = vmul.f32 %v2852, %v3207
          %v3301 = vmul.f32 %v2853, %v3212
          %v3302 = vmul.f32 %v2854, %v3217
          %v3303 = vmul.f32 %v2855, %v3222
          %v3304 = vmul.f32 %v2856, %v3227
          %v3305 = vmul.f32 %v2857, %v3232
          %v3306 = vmul.f32 %v2858, %v3237
          %v3307 = vmul.f32 %v2859, %v3242
          %v3308 = vpack.c.bf16 %v3245, %v3244
          %v3309 = vpack.c.bf16 %v3247, %v3246
          %v3310 = vpack.c.bf16 %v3249, %v3248
          %v3311 = vpack.c.bf16 %v3251, %v3250
          %v3312 = vpack.c.bf16 %v3253, %v3252
          %v3313 = vpack.c.bf16 %v3255, %v3254
          %v3314 = vpack.c.bf16 %v3257, %v3256
          %v3315 = vpack.c.bf16 %v3259, %v3258
          %v3316 = vpack.c.bf16 %v3261, %v3260
          %v3317 = vpack.c.bf16 %v3263, %v3262
          %v3318 = vpack.c.bf16 %v3265, %v3264
          %v3319 = vpack.c.bf16 %v3267, %v3266
          %v3320 = vpack.c.bf16 %v3269, %v3268
          %v3321 = vpack.c.bf16 %v3271, %v3270
          %v3322 = vpack.c.bf16 %v3273, %v3272
          %v3323 = vpack.c.bf16 %v3275, %v3274
          %v3324 = vpack.c.bf16 %v3277, %v3276
          %v3325 = vpack.c.bf16 %v3279, %v3278
          %v3326 = vpack.c.bf16 %v3281, %v3280
          %v3327 = vpack.c.bf16 %v3283, %v3282
          %v3328 = vpack.c.bf16 %v3285, %v3284
          %v3329 = vpack.c.bf16 %v3287, %v3286
          %v3330 = vpack.c.bf16 %v3289, %v3288
          %v3331 = vpack.c.bf16 %v3291, %v3290
          %v3332 = vpack.c.bf16 %v3293, %v3292
          %v3333 = vpack.c.bf16 %v3295, %v3294
          %v3334 = vpack.c.bf16 %v3297, %v3296
          %v3335 = vpack.c.bf16 %v3299, %v3298
          %v3336 = vpack.c.bf16 %v3301, %v3300
          %v3337 = vpack.c.bf16 %v3303, %v3302
          %v3338 = vpack.c.bf16 %v3305, %v3304
          %v3339 = vpack.c.bf16 %v3307, %v3306
          %v3340 = vld [vmem:[#allocation6] sm:$0xf]
          %v3341 = vld [vmem:[#allocation6 + $0x4] sm:$0xf]
          %v3342 = vld [vmem:[#allocation6 + $0x8] sm:$0xf]
          %v3343 = vld [vmem:[#allocation6 + $0xc] sm:$0xf]
          %v3344 = vld [vmem:[#allocation6 + $0x10] sm:$0xf]
          %v3345 = vld [vmem:[#allocation6 + $0x14] sm:$0xf]
          %v3346 = vld [vmem:[#allocation6 + $0x18] sm:$0xf]
          %v3347 = vld [vmem:[#allocation6 + $0x1c] sm:$0xf]
          %v3348 = vld [vmem:[#allocation6 + $0x20] sm:$0xf]
          %v3349 = vld [vmem:[#allocation6 + $0x24] sm:$0xf]
          %v3350 = vld [vmem:[#allocation6 + $0x28] sm:$0xf]
          %v3351 = vld [vmem:[#allocation6 + $0x2c] sm:$0xf]
          %v3352 = vld [vmem:[#allocation6 + $0x30] sm:$0xf]
          %v3353 = vld [vmem:[#allocation6 + $0x34] sm:$0xf]
          %v3354 = vld [vmem:[#allocation6 + $0x38] sm:$0xf]
          %v3355 = vld [vmem:[#allocation6 + $0x3c] sm:$0xf]
          %v3356 = vld [vmem:[%s470] sm:$0xf]
          %v3357 = vld [vmem:[%s470 + $0x4] sm:$0xf]
          %v3358 = vld [vmem:[%s470 + $0x8] sm:$0xf]
          %v3359 = vld [vmem:[%s470 + $0xc] sm:$0xf]
          %v3360 = vld [vmem:[%s470 + $0x10] sm:$0xf]
          %v3361 = vld [vmem:[%s470 + $0x14] sm:$0xf]
          %v3362 = vld [vmem:[%s470 + $0x18] sm:$0xf]
          %v3363 = vld [vmem:[%s470 + $0x1c] sm:$0xf]
          %v3364 = vld [vmem:[%s470 + $0x20] sm:$0xf]
          %v3365 = vld [vmem:[%s470 + $0x24] sm:$0xf]
          %v3366 = vld [vmem:[%s470 + $0x28] sm:$0xf]
          %v3367 = vld [vmem:[%s470 + $0x2c] sm:$0xf]
          %v3368 = vld [vmem:[%s470 + $0x30] sm:$0xf]
          %v3369 = vld [vmem:[%s470 + $0x34] sm:$0xf]
          %v3370 = vld [vmem:[%s470 + $0x38] sm:$0xf]
          %v3371 = vld [vmem:[%s470 + $0x3c] sm:$0xf]
          %v3372 = vld [vmem:[%s470 + $0x40] sm:$0xf]
          %v3373 = vld [vmem:[%s470 + $0x44] sm:$0xf]
          %v3374 = vld [vmem:[%s470 + $0x48] sm:$0xf]
          %v3375 = vld [vmem:[%s470 + $0x4c] sm:$0xf]
          %v3376 = vld [vmem:[%s470 + $0x50] sm:$0xf]
          %v3377 = vld [vmem:[%s470 + $0x54] sm:$0xf]
          %v3378 = vld [vmem:[%s470 + $0x58] sm:$0xf]
          %v3379 = vld [vmem:[%s470 + $0x5c] sm:$0xf]
          %v3380 = vld [vmem:[%s470 + $0x60] sm:$0xf]
          %v3381 = vld [vmem:[%s470 + $0x64] sm:$0xf]
          %v3382 = vld [vmem:[%s470 + $0x68] sm:$0xf]
          %v3383 = vld [vmem:[%s470 + $0x6c] sm:$0xf]
          %v3384 = vld [vmem:[%s470 + $0x70] sm:$0xf]
          %v3385 = vld [vmem:[%s470 + $0x74] sm:$0xf]
          %v3386 = vld [vmem:[%s470 + $0x78] sm:$0xf]
          %v3387 = vld [vmem:[%s470 + $0x7c] sm:$0xf]
          %v3388 = vld [vmem:[%s470 + $0x80] sm:$0xf]
          %v3389 = vld [vmem:[%s470 + $0x84] sm:$0xf]
          %v3390 = vld [vmem:[%s470 + $0x88] sm:$0xf]
          %v3391 = vld [vmem:[%s470 + $0x8c] sm:$0xf]
          %v3392 = vld [vmem:[%s470 + $0x90] sm:$0xf]
          %v3393 = vld [vmem:[%s470 + $0x94] sm:$0xf]
          %v3394 = vld [vmem:[%s470 + $0x98] sm:$0xf]
          %v3395 = vld [vmem:[%s470 + $0x9c] sm:$0xf]
          %v3396 = vld [vmem:[%s470 + $0xa0] sm:$0xf]
          %v3397 = vld [vmem:[%s470 + $0xa4] sm:$0xf]
          %v3398 = vld [vmem:[%s470 + $0xa8] sm:$0xf]
          %v3399 = vld [vmem:[%s470 + $0xac] sm:$0xf]
          %v3400 = vld [vmem:[%s470 + $0xb0] sm:$0xf]
          %v3401 = vld [vmem:[%s470 + $0xb4] sm:$0xf]
          %v3402 = vld [vmem:[%s470 + $0xb8] sm:$0xf]
          %v3403 = vld [vmem:[%s470 + $0xbc] sm:$0xf]
          %v3404 = vld [vmem:[%s470 + $0xc0] sm:$0xf]
          %v3405 = vld [vmem:[%s470 + $0xc4] sm:$0xf]
          %v3406 = vld [vmem:[%s470 + $0xc8] sm:$0xf]
          %v3407 = vld [vmem:[%s470 + $0xcc] sm:$0xf]
          %v3408 = vld [vmem:[%s470 + $0xd0] sm:$0xf]
          %v3409 = vld [vmem:[%s470 + $0xd4] sm:$0xf]
          %v3410 = vld [vmem:[%s470 + $0xd8] sm:$0xf]
          %v3411 = vld [vmem:[%s470 + $0xdc] sm:$0xf]
          %v3412 = vld [vmem:[%s470 + $0xe0] sm:$0xf]
          %v3413 = vld [vmem:[%s470 + $0xe4] sm:$0xf]
          %v3414 = vld [vmem:[%s470 + $0xe8] sm:$0xf]
          %v3415 = vld [vmem:[%s470 + $0xec] sm:$0xf]
          %v3416 = vld [vmem:[%s470 + $0xf0] sm:$0xf]
          %v3417 = vld [vmem:[%s470 + $0xf4] sm:$0xf]
          %v3418 = vld [vmem:[%s470 + $0xf8] sm:$0xf]
          %v3419 = vld [vmem:[%s470 + $0xfc] sm:$0xf]
          %v3420 = vld [vmem:[#allocation8] sm:$0xf]
          %v3421 = vld [vmem:[#allocation8 + $0x4] sm:$0xf]
          %v3422 = vld [vmem:[#allocation8 + $0x8] sm:$0xf]
          %v3423 = vld [vmem:[#allocation8 + $0xc] sm:$0xf]
          %v3424 = vld [vmem:[#allocation8 + $0x10] sm:$0xf]
          %v3425 = vld [vmem:[#allocation8 + $0x14] sm:$0xf]
          %v3426 = vld [vmem:[#allocation8 + $0x18] sm:$0xf]
          %v3427 = vld [vmem:[#allocation8 + $0x1c] sm:$0xf]
          %v3428 = vld [vmem:[#allocation8 + $0x20] sm:$0xf]
          %v3429 = vld [vmem:[#allocation8 + $0x24] sm:$0xf]
          %v3430 = vld [vmem:[#allocation8 + $0x28] sm:$0xf]
          %v3431 = vld [vmem:[#allocation8 + $0x2c] sm:$0xf]
          %v3432 = vld [vmem:[#allocation8 + $0x30] sm:$0xf]
          %v3433 = vld [vmem:[#allocation8 + $0x34] sm:$0xf]
          %v3434 = vld [vmem:[#allocation8 + $0x38] sm:$0xf]
          %v3435 = vld [vmem:[#allocation8 + $0x3c] sm:$0xf]
          %v3500 = vunpack.c.l.b16 %v3356
          %v3501 = vunpack.c.l.b16 %v3357
          %v3502 = vunpack.c.l.b16 %v3358
          %v3503 = vunpack.c.l.b16 %v3359
          %v3504 = vunpack.c.l.b16 %v3360
          %v3505 = vunpack.c.l.b16 %v3361
          %v3506 = vunpack.c.l.b16 %v3362
          %v3507 = vunpack.c.l.b16 %v3363
          %v3508 = vunpack.c.l.b16 %v3364
          %v3509 = vunpack.c.l.b16 %v3365
          %v3510 = vunpack.c.l.b16 %v3366
          %v3511 = vunpack.c.l.b16 %v3367
          %v3512 = vunpack.c.l.b16 %v3368
          %v3513 = vunpack.c.l.b16 %v3369
          %v3514 = vunpack.c.l.b16 %v3370
          %v3515 = vunpack.c.l.b16 %v3371
          %v3516 = vunpack.c.l.b16 %v3372
          %v3517 = vunpack.c.l.b16 %v3373
          %v3518 = vunpack.c.l.b16 %v3374
          %v3519 = vunpack.c.l.b16 %v3375
          %v3520 = vunpack.c.l.b16 %v3376
          %v3521 = vunpack.c.l.b16 %v3377
          %v3522 = vunpack.c.l.b16 %v3378
          %v3523 = vunpack.c.l.b16 %v3379
          %v3524 = vunpack.c.l.b16 %v3380
          %v3525 = vunpack.c.l.b16 %v3381
          %v3526 = vunpack.c.l.b16 %v3382
          %v3527 = vunpack.c.l.b16 %v3383
          %v3528 = vunpack.c.l.b16 %v3384
          %v3529 = vunpack.c.l.b16 %v3385
          %v3530 = vunpack.c.l.b16 %v3386
          %v3531 = vunpack.c.l.b16 %v3387
          %v3532 = vunpack.c.l.b16 %v3388
          %v3533 = vunpack.c.l.b16 %v3389
          %v3534 = vunpack.c.l.b16 %v3390
          %v3535 = vunpack.c.l.b16 %v3391
          %v3536 = vunpack.c.l.b16 %v3392
          %v3537 = vunpack.c.l.b16 %v3393
          %v3538 = vunpack.c.l.b16 %v3394
          %v3539 = vunpack.c.l.b16 %v3395
          %v3540 = vunpack.c.l.b16 %v3396
          %v3541 = vunpack.c.l.b16 %v3397
          %v3542 = vunpack.c.l.b16 %v3398
          %v3543 = vunpack.c.l.b16 %v3399
          %v3544 = vunpack.c.l.b16 %v3400
          %v3545 = vunpack.c.l.b16 %v3401
          %v3546 = vunpack.c.l.b16 %v3402
          %v3547 = vunpack.c.l.b16 %v3403
          %v3548 = vunpack.c.l.b16 %v3404
          %v3549 = vunpack.c.l.b16 %v3405
          %v3550 = vunpack.c.l.b16 %v3406
          %v3551 = vunpack.c.l.b16 %v3407
          %v3552 = vunpack.c.l.b16 %v3408
          %v3553 = vunpack.c.l.b16 %v3409
          %v3554 = vunpack.c.l.b16 %v3410
          %v3555 = vunpack.c.l.b16 %v3411
          %v3556 = vunpack.c.l.b16 %v3412
          %v3557 = vunpack.c.l.b16 %v3413
          %v3558 = vunpack.c.l.b16 %v3414
          %v3559 = vunpack.c.l.b16 %v3415
          %v3560 = vunpack.c.l.b16 %v3416
          %v3561 = vunpack.c.l.b16 %v3417
          %v3562 = vunpack.c.l.b16 %v3418
          %v3563 = vunpack.c.l.b16 %v3419
          %v3564 = vpack.c.b16 %v3501, %v3500
          %v3565 = vpack.c.b16 %v3503, %v3502
          %v3566 = vpack.c.b16 %v3505, %v3504
          %v3567 = vpack.c.b16 %v3507, %v3506
          %v3568 = vpack.c.b16 %v3509, %v3508
          %v3569 = vpack.c.b16 %v3511, %v3510
          %v3570 = vpack.c.b16 %v3513, %v3512
          %v3571 = vpack.c.b16 %v3515, %v3514
          %v3572 = vpack.c.b16 %v3517, %v3516
          %v3573 = vpack.c.b16 %v3519, %v3518
          %v3574 = vpack.c.b16 %v3521, %v3520
          %v3575 = vpack.c.b16 %v3523, %v3522
          %v3576 = vpack.c.b16 %v3525, %v3524
          %v3577 = vpack.c.b16 %v3527, %v3526
          %v3578 = vpack.c.b16 %v3529, %v3528
          %v3579 = vpack.c.b16 %v3531, %v3530
          %v3580 = vpack.c.b16 %v3533, %v3532
          %v3581 = vpack.c.b16 %v3535, %v3534
          %v3582 = vpack.c.b16 %v3537, %v3536
          %v3583 = vpack.c.b16 %v3539, %v3538
          %v3584 = vpack.c.b16 %v3541, %v3540
          %v3585 = vpack.c.b16 %v3543, %v3542
          %v3586 = vpack.c.b16 %v3545, %v3544
          %v3587 = vpack.c.b16 %v3547, %v3546
          %v3588 = vpack.c.b16 %v3549, %v3548
          %v3589 = vpack.c.b16 %v3551, %v3550
          %v3590 = vpack.c.b16 %v3553, %v3552
          %v3591 = vpack.c.b16 %v3555, %v3554
          %v3592 = vpack.c.b16 %v3557, %v3556
          %v3593 = vpack.c.b16 %v3559, %v3558
          %v3594 = vpack.c.b16 %v3561, %v3560
          %v3595 = vpack.c.b16 %v3563, %v3562
          %v3644 = vunpack.c.l.b16 %v3420
          %v3645 = vunpack.c.l.b16 %v3421
          %v3646 = vunpack.c.l.b16 %v3422
          %v3647 = vunpack.c.l.b16 %v3423
          %v3648 = vunpack.c.l.b16 %v3424
          %v3649 = vunpack.c.l.b16 %v3425
          %v3650 = vunpack.c.l.b16 %v3426
          %v3651 = vunpack.c.l.b16 %v3427
          %v3652 = vunpack.c.l.b16 %v3428
          %v3653 = vunpack.c.l.b16 %v3429
          %v3654 = vunpack.c.l.b16 %v3430
          %v3655 = vunpack.c.l.b16 %v3431
          %v3656 = vunpack.c.l.b16 %v3432
          %v3657 = vunpack.c.l.b16 %v3433
          %v3658 = vunpack.c.l.b16 %v3434
          %v3659 = vunpack.c.l.b16 %v3435
          %v3660 = vpack.c.b16 %v3645, %v3644
          %v3661 = vpack.c.b16 %v3647, %v3646
          %v3662 = vpack.c.b16 %v3649, %v3648
          %v3663 = vpack.c.b16 %v3651, %v3650
          %v3664 = vpack.c.b16 %v3653, %v3652
          %v3665 = vpack.c.b16 %v3655, %v3654
          %v3666 = vpack.c.b16 %v3657, %v3656
          %v3667 = vpack.c.b16 %v3659, %v3658
          %3676 = vmatprep.subr.bf16.mxu0 0
          %3677 = vmatpush1.bf16.msra.mxu0 %v3667
          %3678 = vmatprep.subr.bf16.mxu0 0
          %3679 = vmatpush1.bf16.msra.mxu0 %v3666
          %3680 = vmatprep.subr.bf16.mxu0 0
          %3681 = vmatpush1.bf16.msra.mxu0 %v3665
          %3682 = vmatprep.subr.bf16.mxu0 0
          %3683 = vmatpush1.bf16.msra.mxu0 %v3664
          %3684 = vmatprep.subr.bf16.mxu0 0
          %3685 = vmatpush1.bf16.msra.mxu0 %v3663
          %3686 = vmatprep.subr.bf16.mxu0 0
          %3687 = vmatpush1.bf16.msra.mxu0 %v3662
          %3688 = vmatprep.subr.bf16.mxu0 0
          %3689 = vmatpush1.bf16.msra.mxu0 %v3661
          %3690 = vmatprep.subr.bf16.mxu0 0
          %3691 = vmatpush1.bf16.msra.mxu0 %v3660
          %3692 = vmatprep.subr.bf16.mxu0 0
          %3693 = vmatpush2.bf16.msra.mxu0 0
          %3694 = vmatprep.subr.bf16.mxu0 0
          %3695 = vmatpush2.bf16.msra.mxu0 0
          %3696 = vmatprep.subr.bf16.mxu0 0
          %3697 = vmatpush2.bf16.msra.mxu0 0
          %3698 = vmatprep.subr.bf16.mxu0 0
          %3699 = vmatpush2.bf16.msra.mxu0 0
          %3700 = vmatprep.subr.bf16.mxu0 0
          %3701 = vmatpush2.bf16.msra.mxu0 0
          %3702 = vmatprep.subr.bf16.mxu0 0
          %3703 = vmatpush2.bf16.msra.mxu0 0
          %3704 = vmatprep.subr.bf16.mxu0 0
          %3705 = vmatpush2.bf16.msra.mxu0 0
          %3706 = vmatprep.subr.bf16.mxu0 0
          %3707 = vmatpush2.bf16.msra.mxu0 0
          %3708 = vmatprep.mubr.bf16.mxu0 0
          %3709 = vmatmul.mubr.bf16.gmra.mxu0 %v3564
          %v3710 = vpop.f32.mrf.mxu0
          %v3711 = vadd.f32 0.0, %v3710
          %v3712 = vpop.f32.mrf.mxu0
          %v3713 = vpop.f32.mrf.mxu0
          %v3714 = vadd.f32 0.0, %v3713
          %v3715 = vpop.f32.mrf.mxu0
          %3716 = vmatprep.mubr.bf16.mxu0 0
          %3717 = vmatmul.mubr.bf16.gmra.mxu0 %v3565
          %v3718 = vpop.f32.mrf.mxu0
          %v3719 = vadd.f32 0.0, %v3718
          %v3720 = vpop.f32.mrf.mxu0
          %v3721 = vpop.f32.mrf.mxu0
          %v3722 = vadd.f32 0.0, %v3721
          %v3723 = vpop.f32.mrf.mxu0
          %3724 = vmatprep.mubr.bf16.mxu0 0
          %3725 = vmatmul.mubr.bf16.gmra.mxu0 %v3566
          %v3726 = vpop.f32.mrf.mxu0
          %v3727 = vadd.f32 0.0, %v3726
          %v3728 = vpop.f32.mrf.mxu0
          %v3729 = vpop.f32.mrf.mxu0
          %v3730 = vadd.f32 0.0, %v3729
          %v3731 = vpop.f32.mrf.mxu0
          %3732 = vmatprep.mubr.bf16.mxu0 0
          %3733 = vmatmul.mubr.bf16.gmra.mxu0 %v3567
          %v3734 = vpop.f32.mrf.mxu0
          %v3735 = vadd.f32 0.0, %v3734
          %v3736 = vpop.f32.mrf.mxu0
          %v3737 = vpop.f32.mrf.mxu0
          %v3738 = vadd.f32 0.0, %v3737
          %v3739 = vpop.f32.mrf.mxu0
          %3740 = vmatprep.mubr.bf16.mxu0 0
          %3741 = vmatmul.mubr.bf16.gmra.mxu0 %v3568
          %v3742 = vpop.f32.mrf.mxu0
          %v3743 = vadd.f32 0.0, %v3742
          %v3744 = vpop.f32.mrf.mxu0
          %v3745 = vpop.f32.mrf.mxu0
          %v3746 = vadd.f32 0.0, %v3745
          %v3747 = vpop.f32.mrf.mxu0
          %3748 = vmatprep.mubr.bf16.mxu0 0
          %3749 = vmatmul.mubr.bf16.gmra.mxu0 %v3569
          %v3750 = vpop.f32.mrf.mxu0
          %v3751 = vadd.f32 0.0, %v3750
          %v3752 = vpop.f32.mrf.mxu0
          %v3753 = vpop.f32.mrf.mxu0
          %v3754 = vadd.f32 0.0, %v3753
          %v3755 = vpop.f32.mrf.mxu0
          %3756 = vmatprep.mubr.bf16.mxu0 0
          %3757 = vmatmul.mubr.bf16.gmra.mxu0 %v3570
          %v3758 = vpop.f32.mrf.mxu0
          %v3759 = vadd.f32 0.0, %v3758
          %v3760 = vpop.f32.mrf.mxu0
          %v3761 = vpop.f32.mrf.mxu0
          %v3762 = vadd.f32 0.0, %v3761
          %v3763 = vpop.f32.mrf.mxu0
          %3764 = vmatprep.mubr.bf16.mxu0 0
          %3765 = vmatmul.mubr.bf16.gmra.mxu0 %v3571
          %v3766 = vpop.f32.mrf.mxu0
          %v3767 = vadd.f32 0.0, %v3766
          %v3768 = vpop.f32.mrf.mxu0
          %v3769 = vpop.f32.mrf.mxu0
          %v3770 = vadd.f32 0.0, %v3769
          %v3771 = vpop.f32.mrf.mxu0
          %3772 = vmatprep.mubr.bf16.mxu0 0
          %3773 = vmatmul.mubr.bf16.gmra.mxu0 %v3572
          %v3774 = vpop.f32.mrf.mxu0
          %v3775 = vadd.f32 0.0, %v3774
          %v3776 = vpop.f32.mrf.mxu0
          %v3777 = vpop.f32.mrf.mxu0
          %v3778 = vadd.f32 0.0, %v3777
          %v3779 = vpop.f32.mrf.mxu0
          %3780 = vmatprep.mubr.bf16.mxu0 0
          %3781 = vmatmul.mubr.bf16.gmra.mxu0 %v3573
          %v3782 = vpop.f32.mrf.mxu0
          %v3783 = vadd.f32 0.0, %v3782
          %v3784 = vpop.f32.mrf.mxu0
          %v3785 = vpop.f32.mrf.mxu0
          %v3786 = vadd.f32 0.0, %v3785
          %v3787 = vpop.f32.mrf.mxu0
          %3788 = vmatprep.mubr.bf16.mxu0 0
          %3789 = vmatmul.mubr.bf16.gmra.mxu0 %v3574
          %v3790 = vpop.f32.mrf.mxu0
          %v3791 = vadd.f32 0.0, %v3790
          %v3792 = vpop.f32.mrf.mxu0
          %v3793 = vpop.f32.mrf.mxu0
          %v3794 = vadd.f32 0.0, %v3793
          %v3795 = vpop.f32.mrf.mxu0
          %3796 = vmatprep.mubr.bf16.mxu0 0
          %3797 = vmatmul.mubr.bf16.gmra.mxu0 %v3575
          %v3798 = vpop.f32.mrf.mxu0
          %v3799 = vadd.f32 0.0, %v3798
          %v3800 = vpop.f32.mrf.mxu0
          %v3801 = vpop.f32.mrf.mxu0
          %v3802 = vadd.f32 0.0, %v3801
          %v3803 = vpop.f32.mrf.mxu0
          %3804 = vmatprep.mubr.bf16.mxu0 0
          %3805 = vmatmul.mubr.bf16.gmra.mxu0 %v3576
          %v3806 = vpop.f32.mrf.mxu0
          %v3807 = vadd.f32 0.0, %v3806
          %v3808 = vpop.f32.mrf.mxu0
          %v3809 = vpop.f32.mrf.mxu0
          %v3810 = vadd.f32 0.0, %v3809
          %v3811 = vpop.f32.mrf.mxu0
          %3812 = vmatprep.mubr.bf16.mxu0 0
          %3813 = vmatmul.mubr.bf16.gmra.mxu0 %v3577
          %v3814 = vpop.f32.mrf.mxu0
          %v3815 = vadd.f32 0.0, %v3814
          %v3816 = vpop.f32.mrf.mxu0
          %v3817 = vpop.f32.mrf.mxu0
          %v3818 = vadd.f32 0.0, %v3817
          %v3819 = vpop.f32.mrf.mxu0
          %3820 = vmatprep.mubr.bf16.mxu0 0
          %3821 = vmatmul.mubr.bf16.gmra.mxu0 %v3578
          %v3822 = vpop.f32.mrf.mxu0
          %v3823 = vadd.f32 0.0, %v3822
          %v3824 = vpop.f32.mrf.mxu0
          %v3825 = vpop.f32.mrf.mxu0
          %v3826 = vadd.f32 0.0, %v3825
          %v3827 = vpop.f32.mrf.mxu0
          %3828 = vmatprep.mubr.bf16.mxu0 0
          %3829 = vmatmul.mubr.bf16.gmra.mxu0 %v3579
          %v3830 = vpop.f32.mrf.mxu0
          %v3831 = vadd.f32 0.0, %v3830
          %v3832 = vpop.f32.mrf.mxu0
          %v3833 = vpop.f32.mrf.mxu0
          %v3834 = vadd.f32 0.0, %v3833
          %v3835 = vpop.f32.mrf.mxu0
          %3836 = vmatprep.mubr.bf16.mxu0 0
          %3837 = vmatmul.mubr.bf16.gmra.mxu0 %v3580
          %v3838 = vpop.f32.mrf.mxu0
          %v3839 = vadd.f32 0.0, %v3838
          %v3840 = vpop.f32.mrf.mxu0
          %v3841 = vpop.f32.mrf.mxu0
          %v3842 = vadd.f32 0.0, %v3841
          %v3843 = vpop.f32.mrf.mxu0
          %3844 = vmatprep.mubr.bf16.mxu0 0
          %3845 = vmatmul.mubr.bf16.gmra.mxu0 %v3581
          %v3846 = vpop.f32.mrf.mxu0
          %v3847 = vadd.f32 0.0, %v3846
          %v3848 = vpop.f32.mrf.mxu0
          %v3849 = vpop.f32.mrf.mxu0
          %v3850 = vadd.f32 0.0, %v3849
          %v3851 = vpop.f32.mrf.mxu0
          %3852 = vmatprep.mubr.bf16.mxu0 0
          %3853 = vmatmul.mubr.bf16.gmra.mxu0 %v3582
          %v3854 = vpop.f32.mrf.mxu0
          %v3855 = vadd.f32 0.0, %v3854
          %v3856 = vpop.f32.mrf.mxu0
          %v3857 = vpop.f32.mrf.mxu0
          %v3858 = vadd.f32 0.0, %v3857
          %v3859 = vpop.f32.mrf.mxu0
          %3860 = vmatprep.mubr.bf16.mxu0 0
          %3861 = vmatmul.mubr.bf16.gmra.mxu0 %v3583
          %v3862 = vpop.f32.mrf.mxu0
          %v3863 = vadd.f32 0.0, %v3862
          %v3864 = vpop.f32.mrf.mxu0
          %v3865 = vpop.f32.mrf.mxu0
          %v3866 = vadd.f32 0.0, %v3865
          %v3867 = vpop.f32.mrf.mxu0
          %3868 = vmatprep.mubr.bf16.mxu0 0
          %3869 = vmatmul.mubr.bf16.gmra.mxu0 %v3584
          %v3870 = vpop.f32.mrf.mxu0
          %v3871 = vadd.f32 0.0, %v3870
          %v3872 = vpop.f32.mrf.mxu0
          %v3873 = vpop.f32.mrf.mxu0
          %v3874 = vadd.f32 0.0, %v3873
          %v3875 = vpop.f32.mrf.mxu0
          %3876 = vmatprep.mubr.bf16.mxu0 0
          %3877 = vmatmul.mubr.bf16.gmra.mxu0 %v3585
          %v3878 = vpop.f32.mrf.mxu0
          %v3879 = vadd.f32 0.0, %v3878
          %v3880 = vpop.f32.mrf.mxu0
          %v3881 = vpop.f32.mrf.mxu0
          %v3882 = vadd.f32 0.0, %v3881
          %v3883 = vpop.f32.mrf.mxu0
          %3884 = vmatprep.mubr.bf16.mxu0 0
          %3885 = vmatmul.mubr.bf16.gmra.mxu0 %v3586
          %v3886 = vpop.f32.mrf.mxu0
          %v3887 = vadd.f32 0.0, %v3886
          %v3888 = vpop.f32.mrf.mxu0
          %v3889 = vpop.f32.mrf.mxu0
          %v3890 = vadd.f32 0.0, %v3889
          %v3891 = vpop.f32.mrf.mxu0
          %3892 = vmatprep.mubr.bf16.mxu0 0
          %3893 = vmatmul.mubr.bf16.gmra.mxu0 %v3587
          %v3894 = vpop.f32.mrf.mxu0
          %v3895 = vadd.f32 0.0, %v3894
          %v3896 = vpop.f32.mrf.mxu0
          %v3897 = vpop.f32.mrf.mxu0
          %v3898 = vadd.f32 0.0, %v3897
          %v3899 = vpop.f32.mrf.mxu0
          %3900 = vmatprep.mubr.bf16.mxu0 0
          %3901 = vmatmul.mubr.bf16.gmra.mxu0 %v3588
          %v3902 = vpop.f32.mrf.mxu0
          %v3903 = vadd.f32 0.0, %v3902
          %v3904 = vpop.f32.mrf.mxu0
          %v3905 = vpop.f32.mrf.mxu0
          %v3906 = vadd.f32 0.0, %v3905
          %v3907 = vpop.f32.mrf.mxu0
          %3908 = vmatprep.mubr.bf16.mxu0 0
          %3909 = vmatmul.mubr.bf16.gmra.mxu0 %v3589
          %v3910 = vpop.f32.mrf.mxu0
          %v3911 = vadd.f32 0.0, %v3910
          %v3912 = vpop.f32.mrf.mxu0
          %v3913 = vpop.f32.mrf.mxu0
          %v3914 = vadd.f32 0.0, %v3913
          %v3915 = vpop.f32.mrf.mxu0
          %3916 = vmatprep.mubr.bf16.mxu0 0
          %3917 = vmatmul.mubr.bf16.gmra.mxu0 %v3590
          %v3918 = vpop.f32.mrf.mxu0
          %v3919 = vadd.f32 0.0, %v3918
          %v3920 = vpop.f32.mrf.mxu0
          %v3921 = vpop.f32.mrf.mxu0
          %v3922 = vadd.f32 0.0, %v3921
          %v3923 = vpop.f32.mrf.mxu0
          %3924 = vmatprep.mubr.bf16.mxu0 0
          %3925 = vmatmul.mubr.bf16.gmra.mxu0 %v3591
          %v3926 = vpop.f32.mrf.mxu0
          %v3927 = vadd.f32 0.0, %v3926
          %v3928 = vpop.f32.mrf.mxu0
          %v3929 = vpop.f32.mrf.mxu0
          %v3930 = vadd.f32 0.0, %v3929
          %v3931 = vpop.f32.mrf.mxu0
          %3932 = vmatprep.mubr.bf16.mxu0 0
          %3933 = vmatmul.mubr.bf16.gmra.mxu0 %v3592
          %v3934 = vpop.f32.mrf.mxu0
          %v3935 = vadd.f32 0.0, %v3934
          %v3936 = vpop.f32.mrf.mxu0
          %v3937 = vpop.f32.mrf.mxu0
          %v3938 = vadd.f32 0.0, %v3937
          %v3939 = vpop.f32.mrf.mxu0
          %3940 = vmatprep.mubr.bf16.mxu0 0
          %3941 = vmatmul.mubr.bf16.gmra.mxu0 %v3593
          %v3942 = vpop.f32.mrf.mxu0
          %v3943 = vadd.f32 0.0, %v3942
          %v3944 = vpop.f32.mrf.mxu0
          %v3945 = vpop.f32.mrf.mxu0
          %v3946 = vadd.f32 0.0, %v3945
          %v3947 = vpop.f32.mrf.mxu0
          %3948 = vmatprep.mubr.bf16.mxu0 0
          %3949 = vmatmul.mubr.bf16.gmra.mxu0 %v3594
          %v3950 = vpop.f32.mrf.mxu0
          %v3951 = vadd.f32 0.0, %v3950
          %v3952 = vpop.f32.mrf.mxu0
          %v3953 = vpop.f32.mrf.mxu0
          %v3954 = vadd.f32 0.0, %v3953
          %v3955 = vpop.f32.mrf.mxu0
          %3956 = vmatprep.mubr.bf16.mxu0 0
          %3957 = vmatmul.mubr.bf16.gmra.mxu0 %v3595
          %v3958 = vpop.f32.mrf.mxu0
          %v3959 = vadd.f32 0.0, %v3958
          %v3960 = vpop.f32.mrf.mxu0
          %v3961 = vpop.f32.mrf.mxu0
          %v3962 = vadd.f32 0.0, %v3961
          %v3963 = vpop.f32.mrf.mxu0
          %3964 = vdwg.mxu0
          %v3981 = vunpack.c.l.b16 %v3340
          %v3982 = vunpack.c.l.b16 %v3341
          %v3983 = vunpack.c.l.b16 %v3342
          %v3984 = vunpack.c.l.b16 %v3343
          %v3985 = vunpack.c.l.b16 %v3344
          %v3986 = vunpack.c.l.b16 %v3345
          %v3987 = vunpack.c.l.b16 %v3346
          %v3988 = vunpack.c.l.b16 %v3347
          %v3989 = vunpack.c.l.b16 %v3348
          %v3990 = vunpack.c.l.b16 %v3349
          %v3991 = vunpack.c.l.b16 %v3350
          %v3992 = vunpack.c.l.b16 %v3351
          %v3993 = vunpack.c.l.b16 %v3352
          %v3994 = vunpack.c.l.b16 %v3353
          %v3995 = vunpack.c.l.b16 %v3354
          %v3996 = vunpack.c.l.b16 %v3355
          %v3997 = vpack.c.b16 %v3982, %v3981
          %v3998 = vpack.c.b16 %v3984, %v3983
          %v3999 = vpack.c.b16 %v3986, %v3985
          %v4000 = vpack.c.b16 %v3988, %v3987
          %v4001 = vpack.c.b16 %v3990, %v3989
          %v4002 = vpack.c.b16 %v3992, %v3991
          %v4003 = vpack.c.b16 %v3994, %v3993
          %v4004 = vpack.c.b16 %v3996, %v3995
          %4013 = vmatprep.subr.bf16.mxu0 0
          %4014 = vmatpush1.bf16.msra.mxu0 %v4004
          %4015 = vmatprep.subr.bf16.mxu0 0
          %4016 = vmatpush1.bf16.msra.mxu0 %v4003
          %4017 = vmatprep.subr.bf16.mxu0 0
          %4018 = vmatpush1.bf16.msra.mxu0 %v4002
          %4019 = vmatprep.subr.bf16.mxu0 0
          %4020 = vmatpush1.bf16.msra.mxu0 %v4001
          %4021 = vmatprep.subr.bf16.mxu0 0
          %4022 = vmatpush1.bf16.msra.mxu0 %v4000
          %4023 = vmatprep.subr.bf16.mxu0 0
          %4024 = vmatpush1.bf16.msra.mxu0 %v3999
          %4025 = vmatprep.subr.bf16.mxu0 0
          %4026 = vmatpush1.bf16.msra.mxu0 %v3998
          %4027 = vmatprep.subr.bf16.mxu0 0
          %4028 = vmatpush1.bf16.msra.mxu0 %v3997
          %4029 = vmatprep.subr.bf16.mxu0 0
          %4030 = vmatpush2.bf16.msra.mxu0 0
          %4031 = vmatprep.subr.bf16.mxu0 0
          %4032 = vmatpush2.bf16.msra.mxu0 0
          %4033 = vmatprep.subr.bf16.mxu0 0
          %4034 = vmatpush2.bf16.msra.mxu0 0
          %4035 = vmatprep.subr.bf16.mxu0 0
          %4036 = vmatpush2.bf16.msra.mxu0 0
          %4037 = vmatprep.subr.bf16.mxu0 0
          %4038 = vmatpush2.bf16.msra.mxu0 0
          %4039 = vmatprep.subr.bf16.mxu0 0
          %4040 = vmatpush2.bf16.msra.mxu0 0
          %4041 = vmatprep.subr.bf16.mxu0 0
          %4042 = vmatpush2.bf16.msra.mxu0 0
          %4043 = vmatprep.subr.bf16.mxu0 0
          %4044 = vmatpush2.bf16.msra.mxu0 0
          %4045 = vmatprep.mubr.bf16.mxu0 0
          %4046 = vmatmul.mubr.bf16.gmra.mxu0 %v3308
          %v4047 = vpop.f32.mrf.mxu0
          %v4048 = vadd.f32 %v3711, %v4047
          %v4049 = vpop.f32.mrf.mxu0
          %v4050 = vpop.f32.mrf.mxu0
          %v4051 = vadd.f32 %v3714, %v4050
          %v4052 = vpop.f32.mrf.mxu0
          %4053 = vmatprep.mubr.bf16.mxu0 0
          %4054 = vmatmul.mubr.bf16.gmra.mxu0 %v3309
          %v4055 = vpop.f32.mrf.mxu0
          %v4056 = vadd.f32 %v3719, %v4055
          %v4057 = vpop.f32.mrf.mxu0
          %v4058 = vpop.f32.mrf.mxu0
          %v4059 = vadd.f32 %v3722, %v4058
          %v4060 = vpop.f32.mrf.mxu0
          %4061 = vmatprep.mubr.bf16.mxu0 0
          %4062 = vmatmul.mubr.bf16.gmra.mxu0 %v3310
          %v4063 = vpop.f32.mrf.mxu0
          %v4064 = vadd.f32 %v3727, %v4063
          %v4065 = vpop.f32.mrf.mxu0
          %v4066 = vpop.f32.mrf.mxu0
          %v4067 = vadd.f32 %v3730, %v4066
          %v4068 = vpop.f32.mrf.mxu0
          %4069 = vmatprep.mubr.bf16.mxu0 0
          %4070 = vmatmul.mubr.bf16.gmra.mxu0 %v3311
          %v4071 = vpop.f32.mrf.mxu0
          %v4072 = vadd.f32 %v3735, %v4071
          %v4073 = vpop.f32.mrf.mxu0
          %v4074 = vpop.f32.mrf.mxu0
          %v4075 = vadd.f32 %v3738, %v4074
          %v4076 = vpop.f32.mrf.mxu0
          %4077 = vmatprep.mubr.bf16.mxu0 0
          %4078 = vmatmul.mubr.bf16.gmra.mxu0 %v3312
          %v4079 = vpop.f32.mrf.mxu0
          %v4080 = vadd.f32 %v3743, %v4079
          %v4081 = vpop.f32.mrf.mxu0
          %v4082 = vpop.f32.mrf.mxu0
          %v4083 = vadd.f32 %v3746, %v4082
          %v4084 = vpop.f32.mrf.mxu0
          %4085 = vmatprep.mubr.bf16.mxu0 0
          %4086 = vmatmul.mubr.bf16.gmra.mxu0 %v3313
          %v4087 = vpop.f32.mrf.mxu0
          %v4088 = vadd.f32 %v3751, %v4087
          %v4089 = vpop.f32.mrf.mxu0
          %v4090 = vpop.f32.mrf.mxu0
          %v4091 = vadd.f32 %v3754, %v4090
          %v4092 = vpop.f32.mrf.mxu0
          %4093 = vmatprep.mubr.bf16.mxu0 0
          %4094 = vmatmul.mubr.bf16.gmra.mxu0 %v3314
          %v4095 = vpop.f32.mrf.mxu0
          %v4096 = vadd.f32 %v3759, %v4095
          %v4097 = vpop.f32.mrf.mxu0
          %v4098 = vpop.f32.mrf.mxu0
          %v4099 = vadd.f32 %v3762, %v4098
          %v4100 = vpop.f32.mrf.mxu0
          %4101 = vmatprep.mubr.bf16.mxu0 0
          %4102 = vmatmul.mubr.bf16.gmra.mxu0 %v3315
          %v4103 = vpop.f32.mrf.mxu0
          %v4104 = vadd.f32 %v3767, %v4103
          %v4105 = vpop.f32.mrf.mxu0
          %v4106 = vpop.f32.mrf.mxu0
          %v4107 = vadd.f32 %v3770, %v4106
          %v4108 = vpop.f32.mrf.mxu0
          %4109 = vmatprep.mubr.bf16.mxu0 0
          %4110 = vmatmul.mubr.bf16.gmra.mxu0 %v3316
          %v4111 = vpop.f32.mrf.mxu0
          %v4112 = vadd.f32 %v3775, %v4111
          %v4113 = vpop.f32.mrf.mxu0
          %v4114 = vpop.f32.mrf.mxu0
          %v4115 = vadd.f32 %v3778, %v4114
          %v4116 = vpop.f32.mrf.mxu0
          %4117 = vmatprep.mubr.bf16.mxu0 0
          %4118 = vmatmul.mubr.bf16.gmra.mxu0 %v3317
          %v4119 = vpop.f32.mrf.mxu0
          %v4120 = vadd.f32 %v3783, %v4119
          %v4121 = vpop.f32.mrf.mxu0
          %v4122 = vpop.f32.mrf.mxu0
          %v4123 = vadd.f32 %v3786, %v4122
          %v4124 = vpop.f32.mrf.mxu0
          %4125 = vmatprep.mubr.bf16.mxu0 0
          %4126 = vmatmul.mubr.bf16.gmra.mxu0 %v3318
          %v4127 = vpop.f32.mrf.mxu0
          %v4128 = vadd.f32 %v3791, %v4127
          %v4129 = vpop.f32.mrf.mxu0
          %v4130 = vpop.f32.mrf.mxu0
          %v4131 = vadd.f32 %v3794, %v4130
          %v4132 = vpop.f32.mrf.mxu0
          %4133 = vmatprep.mubr.bf16.mxu0 0
          %4134 = vmatmul.mubr.bf16.gmra.mxu0 %v3319
          %v4135 = vpop.f32.mrf.mxu0
          %v4136 = vadd.f32 %v3799, %v4135
          %v4137 = vpop.f32.mrf.mxu0
          %v4138 = vpop.f32.mrf.mxu0
          %v4139 = vadd.f32 %v3802, %v4138
          %v4140 = vpop.f32.mrf.mxu0
          %4141 = vmatprep.mubr.bf16.mxu0 0
          %4142 = vmatmul.mubr.bf16.gmra.mxu0 %v3320
          %v4143 = vpop.f32.mrf.mxu0
          %v4144 = vadd.f32 %v3807, %v4143
          %v4145 = vpop.f32.mrf.mxu0
          %v4146 = vpop.f32.mrf.mxu0
          %v4147 = vadd.f32 %v3810, %v4146
          %v4148 = vpop.f32.mrf.mxu0
          %4149 = vmatprep.mubr.bf16.mxu0 0
          %4150 = vmatmul.mubr.bf16.gmra.mxu0 %v3321
          %v4151 = vpop.f32.mrf.mxu0
          %v4152 = vadd.f32 %v3815, %v4151
          %v4153 = vpop.f32.mrf.mxu0
          %v4154 = vpop.f32.mrf.mxu0
          %v4155 = vadd.f32 %v3818, %v4154
          %v4156 = vpop.f32.mrf.mxu0
          %4157 = vmatprep.mubr.bf16.mxu0 0
          %4158 = vmatmul.mubr.bf16.gmra.mxu0 %v3322
          %v4159 = vpop.f32.mrf.mxu0
          %v4160 = vadd.f32 %v3823, %v4159
          %v4161 = vpop.f32.mrf.mxu0
          %v4162 = vpop.f32.mrf.mxu0
          %v4163 = vadd.f32 %v3826, %v4162
          %v4164 = vpop.f32.mrf.mxu0
          %4165 = vmatprep.mubr.bf16.mxu0 0
          %4166 = vmatmul.mubr.bf16.gmra.mxu0 %v3323
          %v4167 = vpop.f32.mrf.mxu0
          %v4168 = vadd.f32 %v3831, %v4167
          %v4169 = vpop.f32.mrf.mxu0
          %v4170 = vpop.f32.mrf.mxu0
          %v4171 = vadd.f32 %v3834, %v4170
          %v4172 = vpop.f32.mrf.mxu0
          %4173 = vmatprep.mubr.bf16.mxu0 0
          %4174 = vmatmul.mubr.bf16.gmra.mxu0 %v3324
          %v4175 = vpop.f32.mrf.mxu0
          %v4176 = vadd.f32 %v3839, %v4175
          %v4177 = vpop.f32.mrf.mxu0
          %v4178 = vpop.f32.mrf.mxu0
          %v4179 = vadd.f32 %v3842, %v4178
          %v4180 = vpop.f32.mrf.mxu0
          %4181 = vmatprep.mubr.bf16.mxu0 0
          %4182 = vmatmul.mubr.bf16.gmra.mxu0 %v3325
          %v4183 = vpop.f32.mrf.mxu0
          %v4184 = vadd.f32 %v3847, %v4183
          %v4185 = vpop.f32.mrf.mxu0
          %v4186 = vpop.f32.mrf.mxu0
          %v4187 = vadd.f32 %v3850, %v4186
          %v4188 = vpop.f32.mrf.mxu0
          %4189 = vmatprep.mubr.bf16.mxu0 0
          %4190 = vmatmul.mubr.bf16.gmra.mxu0 %v3326
          %v4191 = vpop.f32.mrf.mxu0
          %v4192 = vadd.f32 %v3855, %v4191
          %v4193 = vpop.f32.mrf.mxu0
          %v4194 = vpop.f32.mrf.mxu0
          %v4195 = vadd.f32 %v3858, %v4194
          %v4196 = vpop.f32.mrf.mxu0
          %4197 = vmatprep.mubr.bf16.mxu0 0
          %4198 = vmatmul.mubr.bf16.gmra.mxu0 %v3327
          %v4199 = vpop.f32.mrf.mxu0
          %v4200 = vadd.f32 %v3863, %v4199
          %v4201 = vpop.f32.mrf.mxu0
          %v4202 = vpop.f32.mrf.mxu0
          %v4203 = vadd.f32 %v3866, %v4202
          %v4204 = vpop.f32.mrf.mxu0
          %4205 = vmatprep.mubr.bf16.mxu0 0
          %4206 = vmatmul.mubr.bf16.gmra.mxu0 %v3328
          %v4207 = vpop.f32.mrf.mxu0
          %v4208 = vadd.f32 %v3871, %v4207
          %v4209 = vpop.f32.mrf.mxu0
          %v4210 = vpop.f32.mrf.mxu0
          %v4211 = vadd.f32 %v3874, %v4210
          %v4212 = vpop.f32.mrf.mxu0
          %4213 = vmatprep.mubr.bf16.mxu0 0
          %4214 = vmatmul.mubr.bf16.gmra.mxu0 %v3329
          %v4215 = vpop.f32.mrf.mxu0
          %v4216 = vadd.f32 %v3879, %v4215
          %v4217 = vpop.f32.mrf.mxu0
          %v4218 = vpop.f32.mrf.mxu0
          %v4219 = vadd.f32 %v3882, %v4218
          %v4220 = vpop.f32.mrf.mxu0
          %4221 = vmatprep.mubr.bf16.mxu0 0
          %4222 = vmatmul.mubr.bf16.gmra.mxu0 %v3330
          %v4223 = vpop.f32.mrf.mxu0
          %v4224 = vadd.f32 %v3887, %v4223
          %v4225 = vpop.f32.mrf.mxu0
          %v4226 = vpop.f32.mrf.mxu0
          %v4227 = vadd.f32 %v3890, %v4226
          %v4228 = vpop.f32.mrf.mxu0
          %4229 = vmatprep.mubr.bf16.mxu0 0
          %4230 = vmatmul.mubr.bf16.gmra.mxu0 %v3331
          %v4231 = vpop.f32.mrf.mxu0
          %v4232 = vadd.f32 %v3895, %v4231
          %v4233 = vpop.f32.mrf.mxu0
          %v4234 = vpop.f32.mrf.mxu0
          %v4235 = vadd.f32 %v3898, %v4234
          %v4236 = vpop.f32.mrf.mxu0
          %4237 = vmatprep.mubr.bf16.mxu0 0
          %4238 = vmatmul.mubr.bf16.gmra.mxu0 %v3332
          %v4239 = vpop.f32.mrf.mxu0
          %v4240 = vadd.f32 %v3903, %v4239
          %v4241 = vpop.f32.mrf.mxu0
          %v4242 = vpop.f32.mrf.mxu0
          %v4243 = vadd.f32 %v3906, %v4242
          %v4244 = vpop.f32.mrf.mxu0
          %4245 = vmatprep.mubr.bf16.mxu0 0
          %4246 = vmatmul.mubr.bf16.gmra.mxu0 %v3333
          %v4247 = vpop.f32.mrf.mxu0
          %v4248 = vadd.f32 %v3911, %v4247
          %v4249 = vpop.f32.mrf.mxu0
          %v4250 = vpop.f32.mrf.mxu0
          %v4251 = vadd.f32 %v3914, %v4250
          %v4252 = vpop.f32.mrf.mxu0
          %4253 = vmatprep.mubr.bf16.mxu0 0
          %4254 = vmatmul.mubr.bf16.gmra.mxu0 %v3334
          %v4255 = vpop.f32.mrf.mxu0
          %v4256 = vadd.f32 %v3919, %v4255
          %v4257 = vpop.f32.mrf.mxu0
          %v4258 = vpop.f32.mrf.mxu0
          %v4259 = vadd.f32 %v3922, %v4258
          %v4260 = vpop.f32.mrf.mxu0
          %4261 = vmatprep.mubr.bf16.mxu0 0
          %4262 = vmatmul.mubr.bf16.gmra.mxu0 %v3335
          %v4263 = vpop.f32.mrf.mxu0
          %v4264 = vadd.f32 %v3927, %v4263
          %v4265 = vpop.f32.mrf.mxu0
          %v4266 = vpop.f32.mrf.mxu0
          %v4267 = vadd.f32 %v3930, %v4266
          %v4268 = vpop.f32.mrf.mxu0
          %4269 = vmatprep.mubr.bf16.mxu0 0
          %4270 = vmatmul.mubr.bf16.gmra.mxu0 %v3336
          %v4271 = vpop.f32.mrf.mxu0
          %v4272 = vadd.f32 %v3935, %v4271
          %v4273 = vpop.f32.mrf.mxu0
          %v4274 = vpop.f32.mrf.mxu0
          %v4275 = vadd.f32 %v3938, %v4274
          %v4276 = vpop.f32.mrf.mxu0
          %4277 = vmatprep.mubr.bf16.mxu0 0
          %4278 = vmatmul.mubr.bf16.gmra.mxu0 %v3337
          %v4279 = vpop.f32.mrf.mxu0
          %v4280 = vadd.f32 %v3943, %v4279
          %v4281 = vpop.f32.mrf.mxu0
          %v4282 = vpop.f32.mrf.mxu0
          %v4283 = vadd.f32 %v3946, %v4282
          %v4284 = vpop.f32.mrf.mxu0
          %4285 = vmatprep.mubr.bf16.mxu0 0
          %4286 = vmatmul.mubr.bf16.gmra.mxu0 %v3338
          %v4287 = vpop.f32.mrf.mxu0
          %v4288 = vadd.f32 %v3951, %v4287
          %v4289 = vpop.f32.mrf.mxu0
          %v4290 = vpop.f32.mrf.mxu0
          %v4291 = vadd.f32 %v3954, %v4290
          %v4292 = vpop.f32.mrf.mxu0
          %4293 = vmatprep.mubr.bf16.mxu0 0
          %4294 = vmatmul.mubr.bf16.gmra.mxu0 %v3339
          %v4295 = vpop.f32.mrf.mxu0
          %v4296 = vadd.f32 %v3959, %v4295
          %v4297 = vpop.f32.mrf.mxu0
          %v4298 = vpop.f32.mrf.mxu0
          %v4299 = vadd.f32 %v3962, %v4298
          %v4300 = vpop.f32.mrf.mxu0
          %4301 = vdwg.mxu0
          %v4302 = vld [vmem:[%s6] sm:$0x1]
          %v4304 = vlaneseq
          %v4305 = vshrl.u32 %v4304, 7
          %v4306 = vsub.s32 0, %v4305
          %v4307 = vrot.slane %v4302, %v4306
          %v4309 = vadd.f32 %v4048, %v4307
          %v4310 = vadd.f32 %v4051, %v4307
          %v4311 = vadd.f32 %v4056, %v4307
          %v4312 = vadd.f32 %v4059, %v4307
          %v4313 = vadd.f32 %v4064, %v4307
          %v4314 = vadd.f32 %v4067, %v4307
          %v4315 = vadd.f32 %v4072, %v4307
          %v4316 = vadd.f32 %v4075, %v4307
          %v4317 = vadd.f32 %v4080, %v4307
          %v4318 = vadd.f32 %v4083, %v4307
          %v4319 = vadd.f32 %v4088, %v4307
          %v4320 = vadd.f32 %v4091, %v4307
          %v4321 = vadd.f32 %v4096, %v4307
          %v4322 = vadd.f32 %v4099, %v4307
          %v4323 = vadd.f32 %v4104, %v4307
          %v4324 = vadd.f32 %v4107, %v4307
          %v4325 = vadd.f32 %v4112, %v4307
          %v4326 = vadd.f32 %v4115, %v4307
          %v4327 = vadd.f32 %v4120, %v4307
          %v4328 = vadd.f32 %v4123, %v4307
          %v4329 = vadd.f32 %v4128, %v4307
          %v4330 = vadd.f32 %v4131, %v4307
          %v4331 = vadd.f32 %v4136, %v4307
          %v4332 = vadd.f32 %v4139, %v4307
          %v4333 = vadd.f32 %v4144, %v4307
          %v4334 = vadd.f32 %v4147, %v4307
          %v4335 = vadd.f32 %v4152, %v4307
          %v4336 = vadd.f32 %v4155, %v4307
          %v4337 = vadd.f32 %v4160, %v4307
          %v4338 = vadd.f32 %v4163, %v4307
          %v4339 = vadd.f32 %v4168, %v4307
          %v4340 = vadd.f32 %v4171, %v4307
          %v4341 = vadd.f32 %v4176, %v4307
          %v4342 = vadd.f32 %v4179, %v4307
          %v4343 = vadd.f32 %v4184, %v4307
          %v4344 = vadd.f32 %v4187, %v4307
          %v4345 = vadd.f32 %v4192, %v4307
          %v4346 = vadd.f32 %v4195, %v4307
          %v4347 = vadd.f32 %v4200, %v4307
          %v4348 = vadd.f32 %v4203, %v4307
          %v4349 = vadd.f32 %v4208, %v4307
          %v4350 = vadd.f32 %v4211, %v4307
          %v4351 = vadd.f32 %v4216, %v4307
          %v4352 = vadd.f32 %v4219, %v4307
          %v4353 = vadd.f32 %v4224, %v4307
          %v4354 = vadd.f32 %v4227, %v4307
          %v4355 = vadd.f32 %v4232, %v4307
          %v4356 = vadd.f32 %v4235, %v4307
          %v4357 = vadd.f32 %v4240, %v4307
          %v4358 = vadd.f32 %v4243, %v4307
          %v4359 = vadd.f32 %v4248, %v4307
          %v4360 = vadd.f32 %v4251, %v4307
          %v4361 = vadd.f32 %v4256, %v4307
          %v4362 = vadd.f32 %v4259, %v4307
          %v4363 = vadd.f32 %v4264, %v4307
          %v4364 = vadd.f32 %v4267, %v4307
          %v4365 = vadd.f32 %v4272, %v4307
          %v4366 = vadd.f32 %v4275, %v4307
          %v4367 = vadd.f32 %v4280, %v4307
          %v4368 = vadd.f32 %v4283, %v4307
          %v4369 = vadd.f32 %v4288, %v4307
          %v4370 = vadd.f32 %v4291, %v4307
          %v4371 = vadd.f32 %v4296, %v4307
          %v4372 = vadd.f32 %v4299, %v4307
          %v4373 = vmax.f32 %v4309, 0.0
          %v4374 = vmax.f32 %v4310, 0.0
          %v4375 = vmax.f32 %v4311, 0.0
          %v4376 = vmax.f32 %v4312, 0.0
          %v4377 = vmax.f32 %v4313, 0.0
          %v4378 = vmax.f32 %v4314, 0.0
          %v4379 = vmax.f32 %v4315, 0.0
          %v4380 = vmax.f32 %v4316, 0.0
          %v4381 = vmax.f32 %v4317, 0.0
          %v4382 = vmax.f32 %v4318, 0.0
          %v4383 = vmax.f32 %v4319, 0.0
          %v4384 = vmax.f32 %v4320, 0.0
          %v4385 = vmax.f32 %v4321, 0.0
          %v4386 = vmax.f32 %v4322, 0.0
          %v4387 = vmax.f32 %v4323, 0.0
          %v4388 = vmax.f32 %v4324, 0.0
          %v4389 = vmax.f32 %v4325, 0.0
          %v4390 = vmax.f32 %v4326, 0.0
          %v4391 = vmax.f32 %v4327, 0.0
          %v4392 = vmax.f32 %v4328, 0.0
          %v4393 = vmax.f32 %v4329, 0.0
          %v4394 = vmax.f32 %v4330, 0.0
          %v4395 = vmax.f32 %v4331, 0.0
          %v4396 = vmax.f32 %v4332, 0.0
          %v4397 = vmax.f32 %v4333, 0.0
          %v4398 = vmax.f32 %v4334, 0.0
          %v4399 = vmax.f32 %v4335, 0.0
          %v4400 = vmax.f32 %v4336, 0.0
          %v4401 = vmax.f32 %v4337, 0.0
          %v4402 = vmax.f32 %v4338, 0.0
          %v4403 = vmax.f32 %v4339, 0.0
          %v4404 = vmax.f32 %v4340, 0.0
          %v4405 = vmax.f32 %v4341, 0.0
          %v4406 = vmax.f32 %v4342, 0.0
          %v4407 = vmax.f32 %v4343, 0.0
          %v4408 = vmax.f32 %v4344, 0.0
          %v4409 = vmax.f32 %v4345, 0.0
          %v4410 = vmax.f32 %v4346, 0.0
          %v4411 = vmax.f32 %v4347, 0.0
          %v4412 = vmax.f32 %v4348, 0.0
          %v4413 = vmax.f32 %v4349, 0.0
          %v4414 = vmax.f32 %v4350, 0.0
          %v4415 = vmax.f32 %v4351, 0.0
          %v4416 = vmax.f32 %v4352, 0.0
          %v4417 = vmax.f32 %v4353, 0.0
          %v4418 = vmax.f32 %v4354, 0.0
          %v4419 = vmax.f32 %v4355, 0.0
          %v4420 = vmax.f32 %v4356, 0.0
          %v4421 = vmax.f32 %v4357, 0.0
          %v4422 = vmax.f32 %v4358, 0.0
          %v4423 = vmax.f32 %v4359, 0.0
          %v4424 = vmax.f32 %v4360, 0.0
          %v4425 = vmax.f32 %v4361, 0.0
          %v4426 = vmax.f32 %v4362, 0.0
          %v4427 = vmax.f32 %v4363, 0.0
          %v4428 = vmax.f32 %v4364, 0.0
          %v4429 = vmax.f32 %v4365, 0.0
          %v4430 = vmax.f32 %v4366, 0.0
          %v4431 = vmax.f32 %v4367, 0.0
          %v4432 = vmax.f32 %v4368, 0.0
          %v4433 = vmax.f32 %v4369, 0.0
          %v4434 = vmax.f32 %v4370, 0.0
          %v4435 = vmax.f32 %v4371, 0.0
          %v4436 = vmax.f32 %v4372, 0.0
          %v4437 = vld [vmem:[%s405] sm:$0xf]
          %v4438 = vld [vmem:[%s405 + $0x4] sm:$0xf]
          %v4439 = vld [vmem:[%s405 + $0x8] sm:$0xf]
          %v4440 = vld [vmem:[%s405 + $0xc] sm:$0xf]
          %v4441 = vld [vmem:[%s405 + $0x10] sm:$0xf]
          %v4442 = vld [vmem:[%s405 + $0x14] sm:$0xf]
          %v4443 = vld [vmem:[%s405 + $0x18] sm:$0xf]
          %v4444 = vld [vmem:[%s405 + $0x1c] sm:$0xf]
          %v4445 = vld [vmem:[%s405 + $0x20] sm:$0xf]
          %v4446 = vld [vmem:[%s405 + $0x24] sm:$0xf]
          %v4447 = vld [vmem:[%s405 + $0x28] sm:$0xf]
          %v4448 = vld [vmem:[%s405 + $0x2c] sm:$0xf]
          %v4449 = vld [vmem:[%s405 + $0x30] sm:$0xf]
          %v4450 = vld [vmem:[%s405 + $0x34] sm:$0xf]
          %v4451 = vld [vmem:[%s405 + $0x38] sm:$0xf]
          %v4452 = vld [vmem:[%s405 + $0x3c] sm:$0xf]
          %v4453 = vld [vmem:[%s405 + $0x40] sm:$0xf]
          %v4454 = vld [vmem:[%s405 + $0x44] sm:$0xf]
          %v4455 = vld [vmem:[%s405 + $0x48] sm:$0xf]
          %v4456 = vld [vmem:[%s405 + $0x4c] sm:$0xf]
          %v4457 = vld [vmem:[%s405 + $0x50] sm:$0xf]
          %v4458 = vld [vmem:[%s405 + $0x54] sm:$0xf]
          %v4459 = vld [vmem:[%s405 + $0x58] sm:$0xf]
          %v4460 = vld [vmem:[%s405 + $0x5c] sm:$0xf]
          %v4461 = vld [vmem:[%s405 + $0x60] sm:$0xf]
          %v4462 = vld [vmem:[%s405 + $0x64] sm:$0xf]
          %v4463 = vld [vmem:[%s405 + $0x68] sm:$0xf]
          %v4464 = vld [vmem:[%s405 + $0x6c] sm:$0xf]
          %v4465 = vld [vmem:[%s405 + $0x70] sm:$0xf]
          %v4466 = vld [vmem:[%s405 + $0x74] sm:$0xf]
          %v4467 = vld [vmem:[%s405 + $0x78] sm:$0xf]
          %v4468 = vld [vmem:[%s405 + $0x7c] sm:$0xf]
          %v4469 = vld [vmem:[%s405 + $0x80] sm:$0xf]
          %v4470 = vld [vmem:[%s405 + $0x84] sm:$0xf]
          %v4471 = vld [vmem:[%s405 + $0x88] sm:$0xf]
          %v4472 = vld [vmem:[%s405 + $0x8c] sm:$0xf]
          %v4473 = vld [vmem:[%s405 + $0x90] sm:$0xf]
          %v4474 = vld [vmem:[%s405 + $0x94] sm:$0xf]
          %v4475 = vld [vmem:[%s405 + $0x98] sm:$0xf]
          %v4476 = vld [vmem:[%s405 + $0x9c] sm:$0xf]
          %v4477 = vld [vmem:[%s405 + $0xa0] sm:$0xf]
          %v4478 = vld [vmem:[%s405 + $0xa4] sm:$0xf]
          %v4479 = vld [vmem:[%s405 + $0xa8] sm:$0xf]
          %v4480 = vld [vmem:[%s405 + $0xac] sm:$0xf]
          %v4481 = vld [vmem:[%s405 + $0xb0] sm:$0xf]
          %v4482 = vld [vmem:[%s405 + $0xb4] sm:$0xf]
          %v4483 = vld [vmem:[%s405 + $0xb8] sm:$0xf]
          %v4484 = vld [vmem:[%s405 + $0xbc] sm:$0xf]
          %v4485 = vld [vmem:[%s405 + $0xc0] sm:$0xf]
          %v4486 = vld [vmem:[%s405 + $0xc4] sm:$0xf]
          %v4487 = vld [vmem:[%s405 + $0xc8] sm:$0xf]
          %v4488 = vld [vmem:[%s405 + $0xcc] sm:$0xf]
          %v4489 = vld [vmem:[%s405 + $0xd0] sm:$0xf]
          %v4490 = vld [vmem:[%s405 + $0xd4] sm:$0xf]
          %v4491 = vld [vmem:[%s405 + $0xd8] sm:$0xf]
          %v4492 = vld [vmem:[%s405 + $0xdc] sm:$0xf]
          %v4493 = vld [vmem:[%s405 + $0xe0] sm:$0xf]
          %v4494 = vld [vmem:[%s405 + $0xe4] sm:$0xf]
          %v4495 = vld [vmem:[%s405 + $0xe8] sm:$0xf]
          %v4496 = vld [vmem:[%s405 + $0xec] sm:$0xf]
          %v4497 = vld [vmem:[%s405 + $0xf0] sm:$0xf]
          %v4498 = vld [vmem:[%s405 + $0xf4] sm:$0xf]
          %v4499 = vld [vmem:[%s405 + $0xf8] sm:$0xf]
          %v4500 = vld [vmem:[%s405 + $0xfc] sm:$0xf]
          %v4501 = vunpack.c.l.bf16 %v4437
          %v4502 = vunpack.c.l.bf16 %v4438
          %v4503 = vunpack.c.l.bf16 %v4439
          %v4504 = vunpack.c.l.bf16 %v4440
          %v4505 = vunpack.c.l.bf16 %v4441
          %v4506 = vunpack.c.l.bf16 %v4442
          %v4507 = vunpack.c.l.bf16 %v4443
          %v4508 = vunpack.c.l.bf16 %v4444
          %v4509 = vunpack.c.l.bf16 %v4445
          %v4510 = vunpack.c.l.bf16 %v4446
          %v4511 = vunpack.c.l.bf16 %v4447
          %v4512 = vunpack.c.l.bf16 %v4448
          %v4513 = vunpack.c.l.bf16 %v4449
          %v4514 = vunpack.c.l.bf16 %v4450
          %v4515 = vunpack.c.l.bf16 %v4451
          %v4516 = vunpack.c.l.bf16 %v4452
          %v4517 = vunpack.c.l.bf16 %v4453
          %v4518 = vunpack.c.l.bf16 %v4454
          %v4519 = vunpack.c.l.bf16 %v4455
          %v4520 = vunpack.c.l.bf16 %v4456
          %v4521 = vunpack.c.l.bf16 %v4457
          %v4522 = vunpack.c.l.bf16 %v4458
          %v4523 = vunpack.c.l.bf16 %v4459
          %v4524 = vunpack.c.l.bf16 %v4460
          %v4525 = vunpack.c.l.bf16 %v4461
          %v4526 = vunpack.c.l.bf16 %v4462
          %v4527 = vunpack.c.l.bf16 %v4463
          %v4528 = vunpack.c.l.bf16 %v4464
          %v4529 = vunpack.c.l.bf16 %v4465
          %v4530 = vunpack.c.l.bf16 %v4466
          %v4531 = vunpack.c.l.bf16 %v4467
          %v4532 = vunpack.c.l.bf16 %v4468
          %v4533 = vunpack.c.l.bf16 %v4469
          %v4534 = vunpack.c.l.bf16 %v4470
          %v4535 = vunpack.c.l.bf16 %v4471
          %v4536 = vunpack.c.l.bf16 %v4472
          %v4537 = vunpack.c.l.bf16 %v4473
          %v4538 = vunpack.c.l.bf16 %v4474
          %v4539 = vunpack.c.l.bf16 %v4475
          %v4540 = vunpack.c.l.bf16 %v4476
          %v4541 = vunpack.c.l.bf16 %v4477
          %v4542 = vunpack.c.l.bf16 %v4478
          %v4543 = vunpack.c.l.bf16 %v4479
          %v4544 = vunpack.c.l.bf16 %v4480
          %v4545 = vunpack.c.l.bf16 %v4481
          %v4546 = vunpack.c.l.bf16 %v4482
          %v4547 = vunpack.c.l.bf16 %v4483
          %v4548 = vunpack.c.l.bf16 %v4484
          %v4549 = vunpack.c.l.bf16 %v4485
          %v4550 = vunpack.c.l.bf16 %v4486
          %v4551 = vunpack.c.l.bf16 %v4487
          %v4552 = vunpack.c.l.bf16 %v4488
          %v4553 = vunpack.c.l.bf16 %v4489
          %v4554 = vunpack.c.l.bf16 %v4490
          %v4555 = vunpack.c.l.bf16 %v4491
          %v4556 = vunpack.c.l.bf16 %v4492
          %v4557 = vunpack.c.l.bf16 %v4493
          %v4558 = vunpack.c.l.bf16 %v4494
          %v4559 = vunpack.c.l.bf16 %v4495
          %v4560 = vunpack.c.l.bf16 %v4496
          %v4561 = vunpack.c.l.bf16 %v4497
          %v4562 = vunpack.c.l.bf16 %v4498
          %v4563 = vunpack.c.l.bf16 %v4499
          %v4564 = vunpack.c.l.bf16 %v4500
          %v4565 = vmul.f32 %v4373, %v4501
          %v4566 = vmul.f32 %v4374, %v4502
          %v4567 = vmul.f32 %v4375, %v4503
          %v4568 = vmul.f32 %v4376, %v4504
          %v4569 = vmul.f32 %v4377, %v4505
          %v4570 = vmul.f32 %v4378, %v4506
          %v4571 = vmul.f32 %v4379, %v4507
          %v4572 = vmul.f32 %v4380, %v4508
          %v4573 = vmul.f32 %v4381, %v4509
          %v4574 = vmul.f32 %v4382, %v4510
          %v4575 = vmul.f32 %v4383, %v4511
          %v4576 = vmul.f32 %v4384, %v4512
          %v4577 = vmul.f32 %v4385, %v4513
          %v4578 = vmul.f32 %v4386, %v4514
          %v4579 = vmul.f32 %v4387, %v4515
          %v4580 = vmul.f32 %v4388, %v4516
          %v4581 = vmul.f32 %v4389, %v4517
          %v4582 = vmul.f32 %v4390, %v4518
          %v4583 = vmul.f32 %v4391, %v4519
          %v4584 = vmul.f32 %v4392, %v4520
          %v4585 = vmul.f32 %v4393, %v4521
          %v4586 = vmul.f32 %v4394, %v4522
          %v4587 = vmul.f32 %v4395, %v4523
          %v4588 = vmul.f32 %v4396, %v4524
          %v4589 = vmul.f32 %v4397, %v4525
          %v4590 = vmul.f32 %v4398, %v4526
          %v4591 = vmul.f32 %v4399, %v4527
          %v4592 = vmul.f32 %v4400, %v4528
          %v4593 = vmul.f32 %v4401, %v4529
          %v4594 = vmul.f32 %v4402, %v4530
          %v4595 = vmul.f32 %v4403, %v4531
          %v4596 = vmul.f32 %v4404, %v4532
          %v4597 = vmul.f32 %v4405, %v4533
          %v4598 = vmul.f32 %v4406, %v4534
          %v4599 = vmul.f32 %v4407, %v4535
          %v4600 = vmul.f32 %v4408, %v4536
          %v4601 = vmul.f32 %v4409, %v4537
          %v4602 = vmul.f32 %v4410, %v4538
          %v4603 = vmul.f32 %v4411, %v4539
          %v4604 = vmul.f32 %v4412, %v4540
          %v4605 = vmul.f32 %v4413, %v4541
          %v4606 = vmul.f32 %v4414, %v4542
          %v4607 = vmul.f32 %v4415, %v4543
          %v4608 = vmul.f32 %v4416, %v4544
          %v4609 = vmul.f32 %v4417, %v4545
          %v4610 = vmul.f32 %v4418, %v4546
          %v4611 = vmul.f32 %v4419, %v4547
          %v4612 = vmul.f32 %v4420, %v4548
          %v4613 = vmul.f32 %v4421, %v4549
          %v4614 = vmul.f32 %v4422, %v4550
          %v4615 = vmul.f32 %v4423, %v4551
          %v4616 = vmul.f32 %v4424, %v4552
          %v4617 = vmul.f32 %v4425, %v4553
          %v4618 = vmul.f32 %v4426, %v4554
          %v4619 = vmul.f32 %v4427, %v4555
          %v4620 = vmul.f32 %v4428, %v4556
          %v4621 = vmul.f32 %v4429, %v4557
          %v4622 = vmul.f32 %v4430, %v4558
          %v4623 = vmul.f32 %v4431, %v4559
          %v4624 = vmul.f32 %v4432, %v4560
          %v4625 = vmul.f32 %v4433, %v4561
          %v4626 = vmul.f32 %v4434, %v4562
          %v4627 = vmul.f32 %v4435, %v4563
          %v4628 = vmul.f32 %v4436, %v4564
          %v4629 = vpack.c.bf16 %v4566, %v4565
          %v4630 = vpack.c.bf16 %v4568, %v4567
          %v4631 = vpack.c.bf16 %v4570, %v4569
          %v4632 = vpack.c.bf16 %v4572, %v4571
          %v4633 = vpack.c.bf16 %v4574, %v4573
          %v4634 = vpack.c.bf16 %v4576, %v4575
          %v4635 = vpack.c.bf16 %v4578, %v4577
          %v4636 = vpack.c.bf16 %v4580, %v4579
          %v4637 = vpack.c.bf16 %v4582, %v4581
          %v4638 = vpack.c.bf16 %v4584, %v4583
          %v4639 = vpack.c.bf16 %v4586, %v4585
          %v4640 = vpack.c.bf16 %v4588, %v4587
          %v4641 = vpack.c.bf16 %v4590, %v4589
          %v4642 = vpack.c.bf16 %v4592, %v4591
          %v4643 = vpack.c.bf16 %v4594, %v4593
          %v4644 = vpack.c.bf16 %v4596, %v4595
          %v4645 = vpack.c.bf16 %v4598, %v4597
          %v4646 = vpack.c.bf16 %v4600, %v4599
          %v4647 = vpack.c.bf16 %v4602, %v4601
          %v4648 = vpack.c.bf16 %v4604, %v4603
          %v4649 = vpack.c.bf16 %v4606, %v4605
          %v4650 = vpack.c.bf16 %v4608, %v4607
          %v4651 = vpack.c.bf16 %v4610, %v4609
          %v4652 = vpack.c.bf16 %v4612, %v4611
          %v4653 = vpack.c.bf16 %v4614, %v4613
          %v4654 = vpack.c.bf16 %v4616, %v4615
          %v4655 = vpack.c.bf16 %v4618, %v4617
          %v4656 = vpack.c.bf16 %v4620, %v4619
          %v4657 = vpack.c.bf16 %v4622, %v4621
          %v4658 = vpack.c.bf16 %v4624, %v4623
          %v4659 = vpack.c.bf16 %v4626, %v4625
          %v4660 = vpack.c.bf16 %v4628, %v4627
          %v4693 = vunpack.c.l.b16 %v4629
          %v4694 = vunpack.c.h.b16 %v4629
          %v4695 = vunpack.c.l.b16 %v4630
          %v4696 = vunpack.c.h.b16 %v4630
          %v4697 = vunpack.c.l.b16 %v4631
          %v4698 = vunpack.c.h.b16 %v4631
          %v4699 = vunpack.c.l.b16 %v4632
          %v4700 = vunpack.c.h.b16 %v4632
          %v4701 = vunpack.c.l.b16 %v4633
          %v4702 = vunpack.c.h.b16 %v4633
          %v4703 = vunpack.c.l.b16 %v4634
          %v4704 = vunpack.c.h.b16 %v4634
          %v4705 = vunpack.c.l.b16 %v4635
          %v4706 = vunpack.c.h.b16 %v4635
          %v4707 = vunpack.c.l.b16 %v4636
          %v4708 = vunpack.c.h.b16 %v4636
          %v4709 = vunpack.c.l.b16 %v4637
          %v4710 = vunpack.c.h.b16 %v4637
          %v4711 = vunpack.c.l.b16 %v4638
          %v4712 = vunpack.c.h.b16 %v4638
          %v4713 = vunpack.c.l.b16 %v4639
          %v4714 = vunpack.c.h.b16 %v4639
          %v4715 = vunpack.c.l.b16 %v4640
          %v4716 = vunpack.c.h.b16 %v4640
          %v4717 = vunpack.c.l.b16 %v4641
          %v4718 = vunpack.c.h.b16 %v4641
          %v4719 = vunpack.c.l.b16 %v4642
          %v4720 = vunpack.c.h.b16 %v4642
          %v4721 = vunpack.c.l.b16 %v4643
          %v4722 = vunpack.c.h.b16 %v4643
          %v4723 = vunpack.c.l.b16 %v4644
          %v4724 = vunpack.c.h.b16 %v4644
          %v4725 = vunpack.c.l.b16 %v4645
          %v4726 = vunpack.c.h.b16 %v4645
          %v4727 = vunpack.c.l.b16 %v4646
          %v4728 = vunpack.c.h.b16 %v4646
          %v4729 = vunpack.c.l.b16 %v4647
          %v4730 = vunpack.c.h.b16 %v4647
          %v4731 = vunpack.c.l.b16 %v4648
          %v4732 = vunpack.c.h.b16 %v4648
          %v4733 = vunpack.c.l.b16 %v4649
          %v4734 = vunpack.c.h.b16 %v4649
          %v4735 = vunpack.c.l.b16 %v4650
          %v4736 = vunpack.c.h.b16 %v4650
          %v4737 = vunpack.c.l.b16 %v4651
          %v4738 = vunpack.c.h.b16 %v4651
          %v4739 = vunpack.c.l.b16 %v4652
          %v4740 = vunpack.c.h.b16 %v4652
          %v4741 = vunpack.c.l.b16 %v4653
          %v4742 = vunpack.c.h.b16 %v4653
          %v4743 = vunpack.c.l.b16 %v4654
          %v4744 = vunpack.c.h.b16 %v4654
          %v4745 = vunpack.c.l.b16 %v4655
          %v4746 = vunpack.c.h.b16 %v4655
          %v4747 = vunpack.c.l.b16 %v4656
          %v4748 = vunpack.c.h.b16 %v4656
          %v4749 = vunpack.c.l.b16 %v4657
          %v4750 = vunpack.c.h.b16 %v4657
          %v4751 = vunpack.c.l.b16 %v4658
          %v4752 = vunpack.c.h.b16 %v4658
          %v4753 = vunpack.c.l.b16 %v4659
          %v4754 = vunpack.c.h.b16 %v4659
          %v4755 = vunpack.c.l.b16 %v4660
          %v4756 = vunpack.c.h.b16 %v4660
          %v4757 = vpack.c.b16 %v4693, %v4693
          %v4758 = vpack.c.b16 %v4694, %v4694
          %v4759 = vpack.c.b16 %v4695, %v4695
          %v4760 = vpack.c.b16 %v4696, %v4696
          %v4761 = vpack.c.b16 %v4697, %v4697
          %v4762 = vpack.c.b16 %v4698, %v4698
          %v4763 = vpack.c.b16 %v4699, %v4699
          %v4764 = vpack.c.b16 %v4700, %v4700
          %v4765 = vpack.c.b16 %v4701, %v4701
          %v4766 = vpack.c.b16 %v4702, %v4702
          %v4767 = vpack.c.b16 %v4703, %v4703
          %v4768 = vpack.c.b16 %v4704, %v4704
          %v4769 = vpack.c.b16 %v4705, %v4705
          %v4770 = vpack.c.b16 %v4706, %v4706
          %v4771 = vpack.c.b16 %v4707, %v4707
          %v4772 = vpack.c.b16 %v4708, %v4708
          %v4773 = vpack.c.b16 %v4709, %v4709
          %v4774 = vpack.c.b16 %v4710, %v4710
          %v4775 = vpack.c.b16 %v4711, %v4711
          %v4776 = vpack.c.b16 %v4712, %v4712
          %v4777 = vpack.c.b16 %v4713, %v4713
          %v4778 = vpack.c.b16 %v4714, %v4714
          %v4779 = vpack.c.b16 %v4715, %v4715
          %v4780 = vpack.c.b16 %v4716, %v4716
          %v4781 = vpack.c.b16 %v4717, %v4717
          %v4782 = vpack.c.b16 %v4718, %v4718
          %v4783 = vpack.c.b16 %v4719, %v4719
          %v4784 = vpack.c.b16 %v4720, %v4720
          %v4785 = vpack.c.b16 %v4721, %v4721
          %v4786 = vpack.c.b16 %v4722, %v4722
          %v4787 = vpack.c.b16 %v4723, %v4723
          %v4788 = vpack.c.b16 %v4724, %v4724
          %v4789 = vpack.c.b16 %v4725, %v4725
          %v4790 = vpack.c.b16 %v4726, %v4726
          %v4791 = vpack.c.b16 %v4727, %v4727
          %v4792 = vpack.c.b16 %v4728, %v4728
          %v4793 = vpack.c.b16 %v4729, %v4729
          %v4794 = vpack.c.b16 %v4730, %v4730
          %v4795 = vpack.c.b16 %v4731, %v4731
          %v4796 = vpack.c.b16 %v4732, %v4732
          %v4797 = vpack.c.b16 %v4733, %v4733
          %v4798 = vpack.c.b16 %v4734, %v4734
          %v4799 = vpack.c.b16 %v4735, %v4735
          %v4800 = vpack.c.b16 %v4736, %v4736
          %v4801 = vpack.c.b16 %v4737, %v4737
          %v4802 = vpack.c.b16 %v4738, %v4738
          %v4803 = vpack.c.b16 %v4739, %v4739
          %v4804 = vpack.c.b16 %v4740, %v4740
          %v4805 = vpack.c.b16 %v4741, %v4741
          %v4806 = vpack.c.b16 %v4742, %v4742
          %v4807 = vpack.c.b16 %v4743, %v4743
          %v4808 = vpack.c.b16 %v4744, %v4744
          %v4809 = vpack.c.b16 %v4745, %v4745
          %v4810 = vpack.c.b16 %v4746, %v4746
          %v4811 = vpack.c.b16 %v4747, %v4747
          %v4812 = vpack.c.b16 %v4748, %v4748
          %v4813 = vpack.c.b16 %v4749, %v4749
          %v4814 = vpack.c.b16 %v4750, %v4750
          %v4815 = vpack.c.b16 %v4751, %v4751
          %v4816 = vpack.c.b16 %v4752, %v4752
          %v4817 = vpack.c.b16 %v4753, %v4753
          %v4818 = vpack.c.b16 %v4754, %v4754
          %v4819 = vpack.c.b16 %v4755, %v4755
          %v4820 = vpack.c.b16 %v4756, %v4756
          %4885 = vst [vmem:[%s457] sm:$0xf] %v4757
          %4886 = vst [vmem:[%s457 + $0x4] sm:$0xf] %v4758
          %4887 = vst [vmem:[%s457 + $0x8] sm:$0xf] %v4759
          %4888 = vst [vmem:[%s457 + $0xc] sm:$0xf] %v4760
          %4889 = vst [vmem:[%s457 + $0x10] sm:$0xf] %v4761
          %4890 = vst [vmem:[%s457 + $0x14] sm:$0xf] %v4762
          %4891 = vst [vmem:[%s457 + $0x18] sm:$0xf] %v4763
          %4892 = vst [vmem:[%s457 + $0x1c] sm:$0xf] %v4764
          %4893 = vst [vmem:[%s457 + $0x20] sm:$0xf] %v4765
          %4894 = vst [vmem:[%s457 + $0x24] sm:$0xf] %v4766
          %4895 = vst [vmem:[%s457 + $0x28] sm:$0xf] %v4767
          %4896 = vst [vmem:[%s457 + $0x2c] sm:$0xf] %v4768
          %4897 = vst [vmem:[%s457 + $0x30] sm:$0xf] %v4769
          %4898 = vst [vmem:[%s457 + $0x34] sm:$0xf] %v4770
          %4899 = vst [vmem:[%s457 + $0x38] sm:$0xf] %v4771
          %4900 = vst [vmem:[%s457 + $0x3c] sm:$0xf] %v4772
          %4901 = vst [vmem:[%s457 + $0x40] sm:$0xf] %v4773
          %4902 = vst [vmem:[%s457 + $0x44] sm:$0xf] %v4774
          %4903 = vst [vmem:[%s457 + $0x48] sm:$0xf] %v4775
          %4904 = vst [vmem:[%s457 + $0x4c] sm:$0xf] %v4776
          %4905 = vst [vmem:[%s457 + $0x50] sm:$0xf] %v4777
          %4906 = vst [vmem:[%s457 + $0x54] sm:$0xf] %v4778
          %4907 = vst [vmem:[%s457 + $0x58] sm:$0xf] %v4779
          %4908 = vst [vmem:[%s457 + $0x5c] sm:$0xf] %v4780
          %4909 = vst [vmem:[%s457 + $0x60] sm:$0xf] %v4781
          %4910 = vst [vmem:[%s457 + $0x64] sm:$0xf] %v4782
          %4911 = vst [vmem:[%s457 + $0x68] sm:$0xf] %v4783
          %4912 = vst [vmem:[%s457 + $0x6c] sm:$0xf] %v4784
          %4913 = vst [vmem:[%s457 + $0x70] sm:$0xf] %v4785
          %4914 = vst [vmem:[%s457 + $0x74] sm:$0xf] %v4786
          %4915 = vst [vmem:[%s457 + $0x78] sm:$0xf] %v4787
          %4916 = vst [vmem:[%s457 + $0x7c] sm:$0xf] %v4788
          %4917 = vst [vmem:[%s457 + $0x80] sm:$0xf] %v4789
          %4918 = vst [vmem:[%s457 + $0x84] sm:$0xf] %v4790
          %4919 = vst [vmem:[%s457 + $0x88] sm:$0xf] %v4791
          %4920 = vst [vmem:[%s457 + $0x8c] sm:$0xf] %v4792
          %4921 = vst [vmem:[%s457 + $0x90] sm:$0xf] %v4793
          %4922 = vst [vmem:[%s457 + $0x94] sm:$0xf] %v4794
          %4923 = vst [vmem:[%s457 + $0x98] sm:$0xf] %v4795
          %4924 = vst [vmem:[%s457 + $0x9c] sm:$0xf] %v4796
          %4925 = vst [vmem:[%s457 + $0xa0] sm:$0xf] %v4797
          %4926 = vst [vmem:[%s457 + $0xa4] sm:$0xf] %v4798
          %4927 = vst [vmem:[%s457 + $0xa8] sm:$0xf] %v4799
          %4928 = vst [vmem:[%s457 + $0xac] sm:$0xf] %v4800
          %4929 = vst [vmem:[%s457 + $0xb0] sm:$0xf] %v4801
          %4930 = vst [vmem:[%s457 + $0xb4] sm:$0xf] %v4802
          %4931 = vst [vmem:[%s457 + $0xb8] sm:$0xf] %v4803
          %4932 = vst [vmem:[%s457 + $0xbc] sm:$0xf] %v4804
          %4933 = vst [vmem:[%s457 + $0xc0] sm:$0xf] %v4805
          %4934 = vst [vmem:[%s457 + $0xc4] sm:$0xf] %v4806
          %4935 = vst [vmem:[%s457 + $0xc8] sm:$0xf] %v4807
          %4936 = vst [vmem:[%s457 + $0xcc] sm:$0xf] %v4808
          %4937 = vst [vmem:[%s457 + $0xd0] sm:$0xf] %v4809
          %4938 = vst [vmem:[%s457 + $0xd4] sm:$0xf] %v4810
          %4939 = vst [vmem:[%s457 + $0xd8] sm:$0xf] %v4811
          %4940 = vst [vmem:[%s457 + $0xdc] sm:$0xf] %v4812
          %4941 = vst [vmem:[%s457 + $0xe0] sm:$0xf] %v4813
          %4942 = vst [vmem:[%s457 + $0xe4] sm:$0xf] %v4814
          %4943 = vst [vmem:[%s457 + $0xe8] sm:$0xf] %v4815
          %4944 = vst [vmem:[%s457 + $0xec] sm:$0xf] %v4816
          %4945 = vst [vmem:[%s457 + $0xf0] sm:$0xf] %v4817
          %4946 = vst [vmem:[%s457 + $0xf4] sm:$0xf] %v4818
          %4947 = vst [vmem:[%s457 + $0xf8] sm:$0xf] %v4819
          %4948 = vst [vmem:[%s457 + $0xfc] sm:$0xf] %v4820
        $region76: #{tpu_custom_call.1} parent=51 // pred_fallthru
          _
        %s4949 = sand.u32 %s244, 1
        %s4950 = scalar_lea.sflag [#allocation5], %s4949
        %s4951 = sand.u32 %s244, 1
        %s4952 = smul.addr %s4951, 256
        %s4953 = scalar_lea.vmem [#allocation11], %s4952
        // Predicated region
        $region77: #{tpu_custom_call.1} parent=51 // pred_check
          %p4954 = pneg %p254
        $region78: #{tpu_custom_call.1} parent=51 // pred_check_branch
          %4956 = sbr.rel (%p4954) target = $region80
        $region79: #{tpu_custom_call.1} parent=51 // pred_region
          %s4957 = smul.u32 64, %s33
          %s4959 = ssub.s32 4096, 4096
          %4960 = vsyncadd %s4950, %s4959
          %s4961 = smul.addr %s4957, 64
          %s4962 = scalar_lea.hbm %s8, %s4961
          %s4963 = sshll.u32 %s4953, 4
          %s4964 = int_to_ptr.vmem [resolvable:$true] %s4963
          %4969 = dma.vmem_to_hbm [thread:$0]  %s4964, 4096, %s4962, %s4950, 64, 64, 4
        $region80: #{tpu_custom_call.1} parent=51 // pred_fallthru
          _
      $region52: #{tpu_custom_call.1} parent=5 // pred_fallthru
        _
      %p4970 = scmp.le.s32.totalorder 2, %s24
      // Predicated region
      $region81: #{tpu_custom_call.1} parent=5 // pred_check
        %p4971 = pneg %p4970
      $region82: #{tpu_custom_call.1} parent=5 // pred_check_branch
        %4973 = sbr.rel (%p4971) target = $region84
      $region83: #{tpu_custom_call.1} parent=5 // pred_region
        %s4974 = ssub.s32 %s24, 2
        // Predicated region
        $region85: #{tpu_custom_call.1} parent=83 // pred_check
          %p4975 = pneg %p260
        $region86: #{tpu_custom_call.1} parent=83 // pred_check_branch
          %4977 = sbr.rel (%p4975) target = $region88
        $region87: #{tpu_custom_call.1} parent=83 // pred_region
          %s4978 = sand.u32 %s245, 1
          %s4979 = scalar_lea.sflag [#allocation5], %s4978
          %s4980 = sand.u32 %s245, 1
          %s4981 = smul.addr %s4980, 256
          %s4982 = scalar_lea.vmem [#allocation11], %s4981
          %4983 = dma.done %s4979, 4096
        $region88: #{tpu_custom_call.1} parent=83 // pred_fallthru
          _
      $region84: #{tpu_custom_call.1} parent=5 // pred_fallthru
        _
    $region6: #{tpu_custom_call.1} parent=1 // loop_footer
      %s28 = sadd.s32 1, %s24
    $region7: #{tpu_custom_call.1} parent=1 // loop_footer_branch
      %23 = sbr.rel target = $region3
    $region8: #{tpu_custom_call.1} parent=1 // loop_exit
      _
    %4984 = vsyncpa [#allocation4], 1
    %s4985 = scalar_lea.sflag [#allocation4], 1
    %4986 = vsyncpa %s4985, 1
    %4987 = vsyncpa [#allocation7], 1
    %4988 = vsyncpa [#allocation10], 1
    %s4989 = scalar_lea.sflag [#allocation10], 1
    %4990 = vsyncpa %s4989, 1
    %4991 = vsyncpa [#allocation5], 1
    %s4992 = scalar_lea.sflag [#allocation5], 1
    %4993 = vsyncpa %s4992, 1

</llo_original>
